<compile_context>
chip_gen: v7x
topology: tpu7x:2x2x1
jax: 0.10.0
libtpu: 0.0.40
codegen_flags: <defaults>
</compile_context>

<pallas_src>
import math
import functools
from collections import OrderedDict

import jax
import jax.numpy as jnp
from jax.experimental import pallas as pl
from jax.experimental.pallas import tpu as pltpu


_EPS = 1e-6


def _ln(x, g, b, eps=_EPS):
    """LayerNorm over the last dim of a 2-D f32 value; g/b are (1, D)."""
    mu = jnp.mean(x, axis=-1, keepdims=True)
    var = jnp.mean(jnp.square(x - mu), axis=-1, keepdims=True)
    return (x - mu) * jax.lax.rsqrt(var + eps) * g + b


# --------------------------- kernel: patch embed -----------------------------

def _embed_kernel(p_ref, w_ref, b_ref, pos_ref, o_ref):
    """Fused patch-embed matmul + pos-embed add for one batch row.

    p_ref: (1, Ntot, Cp) bf16 -- train+test patches already concatenated.
    One (Ntot, Cp) x (Cp, D) matmul, one full lane-dense store.
    """
    _, ntot, cp = p_ref.shape
    d = w_ref.shape[1]
    tok = jnp.dot(p_ref[...].reshape(ntot, cp), w_ref[...],
                  preferred_element_type=jnp.float32) + b_ref[...]
    tok = tok + pos_ref[...].reshape(ntot, d)
    o_ref[...] = tok.reshape(1, ntot, d).astype(o_ref.dtype)


def pallas_embed(p_all, w, b, pos_all):
    B, Ntot, Cp = p_all.shape
    D = w.shape[1]
    return pl.pallas_call(
        _embed_kernel,
        out_shape=jax.ShapeDtypeStruct((B, Ntot, D), jnp.bfloat16),
        grid=(B,),
        in_specs=[
            pl.BlockSpec((1, Ntot, Cp), lambda i: (i, 0, 0)),
            pl.BlockSpec((Cp, D), lambda i: (0, 0)),
            pl.BlockSpec((1, D), lambda i: (0, 0)),
            pl.BlockSpec((1, Ntot, D), lambda i: (0, 0, 0)),
        ],
        out_specs=pl.BlockSpec((1, Ntot, D), lambda i: (i, 0, 0)),
        compiler_params=pltpu.CompilerParams(dimension_semantics=("parallel",)),
    )(p_all, w, b, pos_all)


# ------------------- kernel: fused depth-stacked ViT blocks ------------------

def _blocks_kernel(x_ref, ln1g_ref, ln1b_ref, wqkv_ref, bqkv_ref,
                   wproj_ref, bproj_ref, ln2g_ref, ln2b_ref,
                   wfc1_ref, bfc1_ref, wfc2_ref, bfc2_ref,
                   lnfg_ref, lnfb_ref, o_ref, x_acc, *, heads):
    """One pre-norm transformer block per (batch, depth) grid step.

    The residual stream lives in the VMEM scratch `x_acc` across the depth
    axis; the final LayerNorm + bf16 store happen only at the last depth step.
    """
    d_idx = pl.program_id(1)
    depth = pl.num_programs(1)
    N, D = x_acc.shape
    dh = D // heads
    scale = 1.0 / math.sqrt(dh)

    @pl.when(d_idx == 0)
    def _init():
        x_acc[...] = x_ref[...].reshape(N, D).astype(jnp.float32)

    x = x_acc[...]

    # ---- attention branch (head-batched, feature-major QKV) ----
    h1 = _ln(x, ln1g_ref[...], ln1b_ref[...])
    h1t = jnp.transpose(h1).astype(jnp.bfloat16)                       # (D, N)
    # w_qkv stored transposed (3D, D): output is feature-major, so the head
    # split below is a leading-dim reshape/slice (no lane shuffles / concat).
    qkv_t = jnp.dot(wqkv_ref[...], h1t,
                    preferred_element_type=jnp.float32) + bqkv_ref[...]  # (3D, N)
    qkv_t = qkv_t.reshape(3 * heads, dh, N)
    q_t = qkv_t[0:heads]                                         # (heads, dh, N)
    k_t = qkv_t[heads:2 * heads]
    v_t = qkv_t[2 * heads:3 * heads]
    q_h = jnp.transpose(q_t, (0, 2, 1))                          # (heads, N, dh)

    s = jnp.einsum('hnd,hdm->hnm', q_h.astype(jnp.bfloat16),
                   k_t.astype(jnp.bfloat16),
                   preferred_element_type=jnp.float32) * scale   # (heads, N, N)
    s = s - jnp.max(s, axis=-1, keepdims=True)
    p = jnp.exp(s)
    p = p * pl.reciprocal(jnp.sum(p, axis=-1, keepdims=True), approx=True)
    o_t = jnp.einsum('hdj,hij->hdi', v_t.astype(jnp.bfloat16),
                     p.astype(jnp.bfloat16),
                     preferred_element_type=jnp.float32)         # (heads, dh, N)
    attn = jnp.transpose(o_t.reshape(D, N))                      # (N, D)
    proj = jnp.dot(attn.astype(jnp.bfloat16), wproj_ref[...],
                   preferred_element_type=jnp.float32) + bproj_ref[...]
    x1 = x + proj

    # ---- MLP branch ----
    h2 = _ln(x1, ln2g_ref[...], ln2b_ref[...])
    m = jnp.dot(h2.astype(jnp.bfloat16), wfc1_ref[...],
                preferred_element_type=jnp.float32) + bfc1_ref[...]
    # TODO(synk): PyTorch nn.GELU default is the exact erf form; tanh approx here.
    m = jax.nn.gelu(m, approximate=True)
    y = jnp.dot(m.astype(jnp.bfloat16), wfc2_ref[...],
                preferred_element_type=jnp.float32) + bfc2_ref[...]
    x2 = x1 + y
    x_acc[...] = x2

    @pl.when(d_idx == depth - 1)
    def _finalize():
        out = _ln(x2, lnfg_ref[...], lnfb_ref[...])
        o_ref[...] = out.reshape(1, N, D).astype(o_ref.dtype)


def pallas_blocks(x, sp, heads):
    B, N, D = x.shape
    depth = sp['w_qkv_t'].shape[0]
    kern = functools.partial(_blocks_kernel, heads=heads)

    def stacked(name):
        a = sp[name]
        nd = a.ndim
        return pl.BlockSpec((None,) + a.shape[1:],
                            lambda b, d, _nd=nd: (d,) + (0,) * (_nd - 1))

    def shared(name):
        a = sp[name]
        nd = a.ndim
        return pl.BlockSpec(a.shape, lambda b, d, _nd=nd: (0,) * _nd)

    names = ('ln1_g', 'ln1_b', 'w_qkv_t', 'b_qkv_t', 'w_proj', 'b_proj',
             'ln2_g', 'ln2_b', 'w_fc1', 'b_fc1', 'w_fc2', 'b_fc2')
    args = (x,) + tuple(sp[n] for n in names) + (sp['lnf_g'], sp['lnf_b'])
    in_specs = ([pl.BlockSpec((1, N, D), lambda b, d: (b, 0, 0))]
                + [stacked(n) for n in names]
                + [shared('lnf_g'), shared('lnf_b')])

    return pl.pallas_call(
        kern,
        out_shape=jax.ShapeDtypeStruct((B, N, D), jnp.bfloat16),
        grid=(B, depth),
        in_specs=in_specs,
        out_specs=pl.BlockSpec((1, N, D), lambda b, d: (b, 0, 0)),
        scratch_shapes=[pltpu.VMEM((N, D), jnp.float32)],
        compiler_params=pltpu.CompilerParams(
            dimension_semantics=("parallel", "arbitrary")),
    )(*args)


# ----------------------------- kernel: head ----------------------------------

def _head_kernel(tr_ref, te_ref, pos_ref, bb_ref, wbb_ref, bbb_ref,
                 wbox_ref, bboxb_ref, o_ref):
    """Fused tracking head for one batch row.

    Writes a single lane-dense (1, Nx, 128) slab: columns 0..3 hold the raw
    bbox regression (pre-exp), column 4 holds the classification score.
    """
    tr = tr_ref[...].astype(jnp.float32)                     # (1, Nz, D)
    te = te_ref[...].astype(jnp.float32) + pos_ref[...]      # (1, Nx, D)
    _, nx, d = te.shape
    p_lanes = wbox_ref.shape[1]

    # bbox embedding: K=4 contraction done as 4 VPU broadcast multiply-adds
    bb = bb_ref[...].reshape(1, 4)
    bb_emb = bbb_ref[...]
    for i in range(4):
        bb_emb = bb_emb + bb[:, i:i + 1] * wbb_ref[i:i + 1, :]
    # target "filter": pooled train-token prototype + bbox embedding
    filt = jnp.mean(tr, axis=1) + bb_emb                     # (1, D)

    te2 = te.reshape(nx, d)
    scores = jnp.sum(te2 * filt, axis=-1, keepdims=True)     # (Nx, 1) f32
    raw = jnp.dot(te2.astype(jnp.bfloat16), wbox_ref[...],
                  preferred_element_type=jnp.float32) + bboxb_ref[...]  # (Nx, P)
    # column 4 of the padded weight/bias is zero, so raw[:, 4] == 0; fold the
    # score into it so there is a single unmasked lane-dense store.
    col = jax.lax.broadcasted_iota(jnp.int32, (nx, p_lanes), 1)
    slab = raw + jnp.where(col == 4, scores, 0.0)
    o_ref[...] = slab.reshape(1, nx, p_lanes)


def pallas_head_call(train_feat, test_feat, pos_test, bb,
                     w_bb, b_bb, w_box_pad, b_box_pad):
    B, Nz, D = train_feat.shape
    _, Nx, _ = test_feat.shape
    P = w_box_pad.shape[1]
    return pl.pallas_call(
        _head_kernel,
        out_shape=jax.ShapeDtypeStruct((B, Nx, P), jnp.float32),
        grid=(B,),
        in_specs=[
            pl.BlockSpec((1, Nz, D), lambda i: (i, 0, 0)),
            pl.BlockSpec((1, Nx, D), lambda i: (i, 0, 0)),
            pl.BlockSpec((1, Nx, D), lambda i: (0, 0, 0)),
            pl.BlockSpec((1, 1, 4), lambda i: (i, 0, 0)),
            pl.BlockSpec((4, D), lambda i: (0, 0)),
            pl.BlockSpec((1, D), lambda i: (0, 0)),
            pl.BlockSpec((D, P), lambda i: (0, 0)),
            pl.BlockSpec((1, P), lambda i: (0, 0)),
        ],
        out_specs=pl.BlockSpec((1, Nx, P), lambda i: (i, 0, 0)),
        compiler_params=pltpu.CompilerParams(dimension_semantics=("parallel",)),
    )(train_feat, test_feat, pos_test, bb,
      w_bb, b_bb.reshape(1, D), w_box_pad, b_box_pad.reshape(1, P))


# ------------------------- synthetic sub-modules -----------------------------

def _dense(key, fan_in, fan_out, scale=0.02):
    return scale * jax.random.normal(key, (fan_in, fan_out), jnp.float32)


def _patchify(imgs, patch):
    # imgs: (B, 3, H, W) -> (B, N, 3*patch*patch)   (wrapper glue, not hot path)
    B, C, H, W = imgs.shape
    gh, gw = H // patch, W // patch
    x = imgs.reshape(B, C, gh, patch, gw, patch)
    x = x.transpose(0, 2, 4, 1, 3, 5).reshape(B, gh * gw, C * patch * patch)
    return x


class ViTBackbone:
    """Joint template/search ViT-style feature extractor (synthetic)."""

    def __init__(self, key, img_size=32, patch=8, dim=32, depth=2, heads=4,
                 mlp_ratio=2, layer_name='layer3'):
        assert dim % heads == 0
        self.patch, self.dim, self.heads, self.depth = patch, dim, heads, depth
        self.layer_name = layer_name
        self.n_tok = (img_size // patch) ** 2
        hidden = dim * mlp_ratio
        keys = jax.random.split(key, 3 + depth)

        self.w_embed = _dense(keys[0], 3 * patch * patch, dim).astype(jnp.bfloat16)
        self.b_embed = jnp.zeros((1, dim), jnp.float32)
        self.pos_embed_z = 0.02 * jax.random.normal(
            keys[1], (1, self.n_tok, dim), jnp.float32)
        self.pos_embed_x = 0.02 * jax.random.normal(
            keys[2], (1, self.n_tok, dim), jnp.float32)
        self.pos_all = jnp.concatenate([self.pos_embed_z, self.pos_embed_x], axis=1)

        # Depth-stacked block parameters (leading axis = block index) so one
        # grid=(B, depth) pallas_call double-buffers the next block's weights.
        wq, wp, w1, w2 = [], [], [], []
        for i in range(depth):
            bk = jax.random.split(keys[3 + i], 4)
            # QKV weight stored transposed (3D, D): the kernel's QKV matmul then
            # produces a feature/head-major result (no lane-dim shuffles).
            wq.append(_dense(bk[0], dim, 3 * dim).T)
            wp.append(_dense(bk[1], dim, dim))
            w1.append(_dense(bk[2], dim, hidden))
            w2.append(_dense(bk[3], hidden, dim))
        self.params = dict(
            ln1_g=jnp.ones((depth, 1, dim), jnp.float32),
            ln1_b=jnp.zeros((depth, 1, dim), jnp.float32),
            w_qkv_t=jnp.stack(wq).astype(jnp.bfloat16),     # (depth, 3D, D)
            b_qkv_t=jnp.zeros((depth, 3 * dim, 1), jnp.float32),
            w_proj=jnp.stack(wp).astype(jnp.bfloat16),       # (depth, D, D)
            b_proj=jnp.zeros((depth, 1, dim), jnp.float32),
            ln2_g=jnp.ones((depth, 1, dim), jnp.float32),
            ln2_b=jnp.zeros((depth, 1, dim), jnp.float32),
            w_fc1=jnp.stack(w1).astype(jnp.bfloat16),        # (depth, D, H)
            b_fc1=jnp.zeros((depth, 1, hidden), jnp.float32),
            w_fc2=jnp.stack(w2).astype(jnp.bfloat16),        # (depth, H, D)
            b_fc2=jnp.zeros((depth, 1, dim), jnp.float32),
            lnf_g=jnp.ones((1, dim), jnp.float32),
            lnf_b=jnp.zeros((1, dim), jnp.float32),
        )

    def __call__(self, im_z, im_x, layers):
        pz = _patchify(im_z, self.patch)     # (B, Nz, 3*p*p)
        px = _patchify(im_x, self.patch)     # (B, Nx, 3*p*p)
        p_all = jnp.concatenate([pz, px], axis=1).astype(jnp.bfloat16)
        x = pallas_embed(p_all, self.w_embed, self.b_embed, self.pos_all)
        x = pallas_blocks(x, self.params, self.heads)        # (B, Nz+Nx, D) bf16
        return OrderedDict([(self.layer_name, x),
                            ('pos_embed_x', self.pos_embed_x)])


class TrackingHead:
    """Synthetic correlation classifier + per-token bbox regressor."""

    def __init__(self, key, dim=32, lane_pad=128):
        k1, k2 = jax.random.split(key)
        self.w_bb = _dense(k1, 4, dim)                    # f32, K=4 (VPU in kernel)
        self.b_bb = jnp.zeros((dim,), jnp.float32)
        w_box = _dense(k2, dim, 4)
        # lane-dense padded regression weights: cols 0..3 are the real head,
        # col 4 (zero) is reused to carry the classification score.
        self.w_box_pad = (jnp.zeros((dim, lane_pad), jnp.float32)
                          .at[:, :4].set(w_box).astype(jnp.bfloat16))
        self.b_box_pad = jnp.zeros((lane_pad,), jnp.float32)

    def __call__(self, train_feat_list, test_feat_list, pos_train, pos_test,
                 train_bb, *args, **kwargs):
        train_feat = train_feat_list[0]                   # (B, Nz, D) bf16
        test_feat = test_feat_list[0]                     # (B, Nx, D) bf16
        B, Nx, D = test_feat.shape
        bb = train_bb.reshape(-1, 1, 4)                   # (B, 1, 4)
        slab = pallas_head_call(train_feat, test_feat, pos_test, bb,
                                self.w_bb, self.b_bb,
                                self.w_box_pad, self.b_box_pad)
        scores = slab[..., 4]                             # (B, Nx) f32
        boxes = jnp.exp(slab[..., :4])                    # exp only on real cols
        sx = int(round(math.sqrt(Nx)))
        seq = train_bb.shape[1]
        n_test = B // seq
        test_scores = scores.reshape(n_test, seq, sx, sx)
        bbox_preds = jnp.transpose(boxes.reshape(n_test, seq, sx, sx, 4),
                                   (0, 1, 4, 2, 3))       # (n_test, seq, 4, sx, sx)
        return test_scores, bbox_preds


# ------------------------------- AViTMPnet -----------------------------------

class AViTMPnet:
    def __init__(self, feature_extractor, head, head_layer):
        self.feature_extractor = feature_extractor
        self.head = head
        self.head_layer = [head_layer] if isinstance(head_layer, str) else head_layer
        self.output_layers = sorted(list(set(self.head_layer)))

    def forward(self, train_imgs, test_imgs, train_bb, *args, **kwargs):
        assert train_imgs.ndim == 5 and test_imgs.ndim == 5, 'Expect 5 dimensional inputs'
        train_feat = self.extract_backbone_features(
            train_imgs.reshape(-1, *train_imgs.shape[-3:]),
            test_imgs.reshape(-1, *test_imgs.shape[-3:]))
        feat_head, pos_train = self.get_backbone_head_feat(train_feat)
        test_feat_head, train_feat_head = [], []
        for key in feat_head:
            test_feat_head.append(feat_head[key][:, -pos_train.shape[1]:, ...])
            train_feat_head.append(feat_head[key][:, :-pos_train.shape[1], ...])
        pos_test = pos_train
        test_scores, bbox_preds = self.head(train_feat_head, test_feat_head,
                                            pos_train, pos_test, train_bb,
                                            *args, **kwargs)
        return test_scores, bbox_preds

    def get_backbone_head_feat(self, backbone_feat):
        pos = backbone_feat['pos_embed_x']
        del backbone_feat['pos_embed_x']
        if len(self.head_layer) == 1:
            # single-key dict so the split loop in forward() works (mirrors the
            # reference, whose single-layer value is itself iterable)
            return OrderedDict(
                [(self.head_layer[0], backbone_feat[self.head_layer[0]])]), pos
        return backbone_feat, pos

    def extract_backbone_features(self, im12, im3, layers=None):
        if layers is None:
            layers = self.output_layers
        return self.feature_extractor(im12, im3, layers)


# --------------------------------- main ---------------------------------------

if __name__ == "__main__":
    key = jax.random.PRNGKey(0)
    k_img1, k_img2, k_bb, k_net, k_head = jax.random.split(key, 5)

    n_train, n_test, seq = 1, 1, 2
    H = W = 32

    train_imgs = jax.random.normal(k_img1, (n_train, seq, 3, H, W), jnp.float32)
    test_imgs = jax.random.normal(k_img2, (n_test, seq, 3, H, W), jnp.float32)
    train_bb = jax.random.uniform(k_bb, (n_train, seq, 4), jnp.float32) * H

    backbone = ViTBackbone(k_net, img_size=H, patch=8, dim=32, depth=2,
                           heads=4, mlp_ratio=2, layer_name='layer3')
    head = TrackingHead(k_head, dim=32)
    net = AViTMPnet(feature_extractor=backbone, head=head, head_layer='layer3')

    # Jit the whole forward: one executable, intermediates stay on-device.
    forward = jax.jit(net.forward)
    test_scores, bbox_preds = forward(train_imgs, test_imgs, train_bb)
    jax.block_until_ready((test_scores, bbox_preds))

    assert test_scores.shape == (n_test, seq, 4, 4)
    assert bbox_preds.shape == (n_test, seq, 4, 4, 4)
    print("KERNEL_OK")
</pallas_src>

<mosaic_0001>
module attributes {stable_mosaic.version = 11 : i64} {
  func.func @_head_kernel(%arg0: i32, %arg1: memref<1x16x32xbf16, #tpu.memory_space<vmem>>, %arg2: memref<1x16x32xbf16, #tpu.memory_space<vmem>>, %arg3: memref<1x16x32xf32, #tpu.memory_space<vmem>>, %arg4: memref<1x1x4xf32, #tpu.memory_space<vmem>>, %arg5: memref<4x32xf32, #tpu.memory_space<vmem>>, %arg6: memref<1x32xf32, #tpu.memory_space<vmem>>, %arg7: memref<32x128xbf16, #tpu.memory_space<vmem>>, %arg8: memref<1x128xf32, #tpu.memory_space<vmem>>, %arg9: memref<1x16x128xf32, #tpu.memory_space<vmem>>) attributes {dimension_semantics = [#tpu.dimension_semantics<parallel>], iteration_bounds = array<i64: 2>, scalar_prefetch = 0 : i64, scratch_operands = 0 : i64, tpu.core_type = #tpu.core_type<tc>, window_params = [{transform_indices = @transform_0, window_bounds = array<i64: 1, 16, 32>}, {transform_indices = @transform_1, window_bounds = array<i64: 1, 16, 32>}, {pipeline_mode = #tpu.pipeline_mode<synchronous>, transform_indices = @transform_2, window_bounds = array<i64: 1, 16, 32>}, {transform_indices = @transform_3, window_bounds = array<i64: 1, 1, 4>}, {pipeline_mode = #tpu.pipeline_mode<synchronous>, transform_indices = @transform_4, window_bounds = array<i64: 4, 32>}, {pipeline_mode = #tpu.pipeline_mode<synchronous>, transform_indices = @transform_5, window_bounds = array<i64: 1, 32>}, {pipeline_mode = #tpu.pipeline_mode<synchronous>, transform_indices = @transform_6, window_bounds = array<i64: 32, 128>}, {pipeline_mode = #tpu.pipeline_mode<synchronous>, transform_indices = @transform_7, window_bounds = array<i64: 1, 128>}, {transform_indices = @transform_8, window_bounds = array<i64: 1, 16, 128>}]} {
    %c0 = arith.constant 0 : index
    %c0_0 = arith.constant 0 : index
    %c0_1 = arith.constant 0 : index
    %0 = vector.load %arg1[%c0, %c0_0, %c0_1] : memref<1x16x32xbf16, #tpu.memory_space<vmem>>, vector<1x16x32xbf16>
    %1 = arith.extf %0 : vector<1x16x32xbf16> to vector<1x16x32xf32>
    %c0_2 = arith.constant 0 : index
    %c0_3 = arith.constant 0 : index
    %c0_4 = arith.constant 0 : index
    %2 = vector.load %arg2[%c0_2, %c0_3, %c0_4] : memref<1x16x32xbf16, #tpu.memory_space<vmem>>, vector<1x16x32xbf16>
    %3 = arith.extf %2 : vector<1x16x32xbf16> to vector<1x16x32xf32>
    %c0_5 = arith.constant 0 : index
    %c0_6 = arith.constant 0 : index
    %c0_7 = arith.constant 0 : index
    %4 = vector.load %arg3[%c0_5, %c0_6, %c0_7] : memref<1x16x32xf32, #tpu.memory_space<vmem>>, vector<1x16x32xf32>
    %5 = arith.addf %3, %4 : vector<1x16x32xf32>
    %c0_8 = arith.constant 0 : index
    %c0_9 = arith.constant 0 : index
    %c0_10 = arith.constant 0 : index
    %6 = vector.load %arg4[%c0_8, %c0_9, %c0_10] : memref<1x1x4xf32, #tpu.memory_space<vmem>>, vector<1x1x4xf32>
    %7 = vector.shape_cast %6 : vector<1x1x4xf32> to vector<1x4xf32>
    %c0_11 = arith.constant 0 : index
    %c0_12 = arith.constant 0 : index
    %8 = vector.load %arg6[%c0_11, %c0_12] : memref<1x32xf32, #tpu.memory_space<vmem>>, vector<1x32xf32>
    %9 = vector.extract_strided_slice %7 {offsets = [0, 0], sizes = [1, 1], strides = [1, 1]} : vector<1x4xf32> to vector<1x1xf32>
    %c0_13 = arith.constant 0 : index
    %c0_14 = arith.constant 0 : index
    %10 = vector.load %arg5[%c0_13, %c0_14] : memref<4x32xf32, #tpu.memory_space<vmem>>, vector<1x32xf32>
    %11 = vector.broadcast %9 : vector<1x1xf32> to vector<1x32xf32>
    %12 = arith.mulf %11, %10 : vector<1x32xf32>
    %13 = arith.addf %8, %12 : vector<1x32xf32>
    %14 = vector.extract_strided_slice %7 {offsets = [0, 1], sizes = [1, 1], strides = [1, 1]} : vector<1x4xf32> to vector<1x1xf32>
    %c1 = arith.constant 1 : index
    %c0_15 = arith.constant 0 : index
    %15 = vector.load %arg5[%c1, %c0_15] : memref<4x32xf32, #tpu.memory_space<vmem>>, vector<1x32xf32>
    %16 = vector.broadcast %14 : vector<1x1xf32> to vector<1x32xf32>
    %17 = arith.mulf %16, %15 : vector<1x32xf32>
    %18 = arith.addf %13, %17 : vector<1x32xf32>
    %19 = vector.extract_strided_slice %7 {offsets = [0, 2], sizes = [1, 1], strides = [1, 1]} : vector<1x4xf32> to vector<1x1xf32>
    %c2 = arith.constant 2 : index
    %c0_16 = arith.constant 0 : index
    %20 = vector.load %arg5[%c2, %c0_16] : memref<4x32xf32, #tpu.memory_space<vmem>>, vector<1x32xf32>
    %21 = vector.broadcast %19 : vector<1x1xf32> to vector<1x32xf32>
    %22 = arith.mulf %21, %20 : vector<1x32xf32>
    %23 = arith.addf %18, %22 : vector<1x32xf32>
    %24 = vector.extract_strided_slice %7 {offsets = [0, 3], sizes = [1, 1], strides = [1, 1]} : vector<1x4xf32> to vector<1x1xf32>
    %c3 = arith.constant 3 : index
    %c0_17 = arith.constant 0 : index
    %25 = vector.load %arg5[%c3, %c0_17] : memref<4x32xf32, #tpu.memory_space<vmem>>, vector<1x32xf32>
    %26 = vector.broadcast %24 : vector<1x1xf32> to vector<1x32xf32>
    %27 = arith.mulf %26, %25 : vector<1x32xf32>
    %28 = arith.addf %23, %27 : vector<1x32xf32>
    %cst = arith.constant dense<0.000000e+00> : vector<1x32xf32>
    %29 = vector.multi_reduction <add>, %1, %cst [1] : vector<1x16x32xf32> to vector<1x32xf32>
    %cst_18 = arith.constant 1.600000e+01 : f32
    %30 = vector.broadcast %cst_18 : f32 to vector<1x32xf32>
    %31 = arith.divf %29, %30 : vector<1x32xf32>
    %32 = arith.addf %31, %28 : vector<1x32xf32>
    %33 = vector.shape_cast %5 : vector<1x16x32xf32> to vector<16x32xf32>
    %34 = vector.broadcast %32 : vector<1x32xf32> to vector<16x32xf32>
    %35 = arith.mulf %33, %34 : vector<16x32xf32>
    %cst_19 = arith.constant dense<0.000000e+00> : vector<16xf32>
    %36 = vector.multi_reduction <add>, %35, %cst_19 [1] : vector<16x32xf32> to vector<16xf32>
    %37 = vector.shape_cast %36 : vector<16xf32> to vector<16x1xf32>
    %38 = arith.truncf %33 : vector<16x32xf32> to vector<16x32xbf16>
    %c0_20 = arith.constant 0 : index
    %c0_21 = arith.constant 0 : index
    %39 = vector.load %arg7[%c0_20, %c0_21] : memref<32x128xbf16, #tpu.memory_space<vmem>>, vector<32x128xbf16>
    %cst_22 = arith.constant dense<0.000000e+00> : vector<16x128xf32>
    %40 = tpu.matmul %38, %39, %cst_22 {dimension_numbers = #tpu.dot_dimension_numbers<[1], [0], [0], [1], [0, 0, 1, 1], [], []>} : vector<16x32xbf16>, vector<32x128xbf16>, vector<16x128xf32> -> vector<16x128xf32>
    %c0_23 = arith.constant 0 : index
    %c0_24 = arith.constant 0 : index
    %41 = vector.load %arg8[%c0_23, %c0_24] : memref<1x128xf32, #tpu.memory_space<vmem>>, vector<1x128xf32>
    %42 = vector.broadcast %41 : vector<1x128xf32> to vector<16x128xf32>
    %43 = arith.addf %40, %42 : vector<16x128xf32>
    %44 = tpu.iota {dimensions = array<i32: 1>} : vector<16x128xi32>
    %c4_i32 = arith.constant 4 : i32
    %45 = vector.broadcast %c4_i32 : i32 to vector<16x128xi32>
    %46 = arith.cmpi eq, %44, %45 : vector<16x128xi32>
    %cst_25 = arith.constant 0.000000e+00 : f32
    %47 = vector.shape_cast %37 : vector<16x1xf32> to vector<16x1xf32>
    %48 = vector.broadcast %47 : vector<16x1xf32> to vector<16x128xf32>
    %49 = vector.broadcast %cst_25 : f32 to vector<16x128xf32>
    %50 = arith.select %46, %48, %49 : vector<16x128xi1>, vector<16x128xf32>
    %51 = arith.addf %43, %50 : vector<16x128xf32>
    %52 = vector.shape_cast %51 : vector<16x128xf32> to vector<1x16x128xf32>
    %c0_26 = arith.constant 0 : index
    %c0_27 = arith.constant 0 : index
    %c0_28 = arith.constant 0 : index
    %53 = vector.load %arg9[%c0_26, %c0_27, %c0_28] : memref<1x16x128xf32, #tpu.memory_space<vmem>>, vector<1x16x128xf32>
    tpu.vector_store %arg9[%c0_26, %c0_27, %c0_28], %52 {strides = array<i32>} : memref<1x16x128xf32, #tpu.memory_space<vmem>>, vector<1x16x128xf32>,
    return
  }
  func.func @transform_0(%arg0: i32) -> (i32, i32, i32) {
    %c0_i32 = arith.constant 0 : i32
    %c0_i32_0 = arith.constant 0 : i32
    %c0_i32_1 = arith.constant 0 : i32
    return %arg0, %c0_i32, %c0_i32_0 : i32, i32, i32
  }
  func.func @transform_1(%arg0: i32) -> (i32, i32, i32) {
    %c0_i32 = arith.constant 0 : i32
    %c0_i32_0 = arith.constant 0 : i32
    %c0_i32_1 = arith.constant 0 : i32
    return %arg0, %c0_i32, %c0_i32_0 : i32, i32, i32
  }
  func.func @transform_2(%arg0: i32) -> (i32, i32, i32) {
    %c0_i32 = arith.constant 0 : i32
    %c0_i32_0 = arith.constant 0 : i32
    %c0_i32_1 = arith.constant 0 : i32
    %c0_i32_2 = arith.constant 0 : i32
    return %c0_i32, %c0_i32_0, %c0_i32_1 : i32, i32, i32
  }
  func.func @transform_3(%arg0: i32) -> (i32, i32, i32) {
    %c0_i32 = arith.constant 0 : i32
    %c0_i32_0 = arith.constant 0 : i32
    %c0_i32_1 = arith.constant 0 : i32
    return %arg0, %c0_i32, %c0_i32_0 : i32, i32, i32
  }
  func.func @transform_4(%arg0: i32) -> (i32, i32) {
    %c0_i32 = arith.constant 0 : i32
    %c0_i32_0 = arith.constant 0 : i32
    %c0_i32_1 = arith.constant 0 : i32
    return %c0_i32, %c0_i32_0 : i32, i32
  }
  func.func @transform_5(%arg0: i32) -> (i32, i32) {
    %c0_i32 = arith.constant 0 : i32
    %c0_i32_0 = arith.constant 0 : i32
    %c0_i32_1 = arith.constant 0 : i32
    return %c0_i32, %c0_i32_0 : i32, i32
  }
  func.func @transform_6(%arg0: i32) -> (i32, i32) {
    %c0_i32 = arith.constant 0 : i32
    %c0_i32_0 = arith.constant 0 : i32
    %c0_i32_1 = arith.constant 0 : i32
    return %c0_i32, %c0_i32_0 : i32, i32
  }
  func.func @transform_7(%arg0: i32) -> (i32, i32) {
    %c0_i32 = arith.constant 0 : i32
    %c0_i32_0 = arith.constant 0 : i32
    %c0_i32_1 = arith.constant 0 : i32
    return %c0_i32, %c0_i32_0 : i32, i32
  }
  func.func @transform_8(%arg0: i32) -> (i32, i32, i32) {
    %c0_i32 = arith.constant 0 : i32
    %c0_i32_0 = arith.constant 0 : i32
    %c0_i32_1 = arith.constant 0 : i32
    return %arg0, %c0_i32, %c0_i32_0 : i32, i32, i32
  }
}

module attributes {stable_mosaic.version = 11 : i64} {
  func.func @_embed_kernel(%arg0: i32, %arg1: memref<1x32x192xbf16, #tpu.memory_space<vmem>>, %arg2: memref<192x32xbf16, #tpu.memory_space<vmem>>, %arg3: memref<1x32xf32, #tpu.memory_space<vmem>>, %arg4: memref<1x32x32xf32, #tpu.memory_space<vmem>>, %arg5: memref<1x32x32xbf16, #tpu.memory_space<vmem>>) attributes {dimension_semantics = [#tpu.dimension_semantics<parallel>], iteration_bounds = array<i64: 2>, scalar_prefetch = 0 : i64, scratch_operands = 0 : i64, tpu.core_type = #tpu.core_type<tc>, window_params = [{transform_indices = @transform_0, window_bounds = array<i64: 1, 32, 192>}, {pipeline_mode = #tpu.pipeline_mode<synchronous>, transform_indices = @transform_1, window_bounds = array<i64: 192, 32>}, {pipeline_mode = #tpu.pipeline_mode<synchronous>, transform_indices = @transform_2, window_bounds = array<i64: 1, 32>}, {pipeline_mode = #tpu.pipeline_mode<synchronous>, transform_indices = @transform_3, window_bounds = array<i64: 1, 32, 32>}, {transform_indices = @transform_4, window_bounds = array<i64: 1, 32, 32>}]} {
    %c0 = arith.constant 0 : index
    %c0_0 = arith.constant 0 : index
    %c0_1 = arith.constant 0 : index
    %0 = vector.load %arg1[%c0, %c0_0, %c0_1] : memref<1x32x192xbf16, #tpu.memory_space<vmem>>, vector<1x32x192xbf16>
    %1 = vector.shape_cast %0 : vector<1x32x192xbf16> to vector<32x192xbf16>
    %c0_2 = arith.constant 0 : index
    %c0_3 = arith.constant 0 : index
    %2 = vector.load %arg2[%c0_2, %c0_3] : memref<192x32xbf16, #tpu.memory_space<vmem>>, vector<192x32xbf16>
    %cst = arith.constant dense<0.000000e+00> : vector<32x32xf32>
    %3 = tpu.matmul %1, %2, %cst {dimension_numbers = #tpu.dot_dimension_numbers<[1], [0], [0], [1], [0, 0, 1, 1], [], []>} : vector<32x192xbf16>, vector<192x32xbf16>, vector<32x32xf32> -> vector<32x32xf32>
    %c0_4 = arith.constant 0 : index
    %c0_5 = arith.constant 0 : index
    %4 = vector.load %arg3[%c0_4, %c0_5] : memref<1x32xf32, #tpu.memory_space<vmem>>, vector<1x32xf32>
    %5 = vector.broadcast %4 : vector<1x32xf32> to vector<32x32xf32>
    %6 = arith.addf %3, %5 : vector<32x32xf32>
    %c0_6 = arith.constant 0 : index
    %c0_7 = arith.constant 0 : index
    %c0_8 = arith.constant 0 : index
    %7 = vector.load %arg4[%c0_6, %c0_7, %c0_8] : memref<1x32x32xf32, #tpu.memory_space<vmem>>, vector<1x32x32xf32>
    %8 = vector.shape_cast %7 : vector<1x32x32xf32> to vector<32x32xf32>
    %9 = arith.addf %6, %8 : vector<32x32xf32>
    %10 = vector.shape_cast %9 : vector<32x32xf32> to vector<1x32x32xf32>
    %11 = arith.truncf %10 : vector<1x32x32xf32> to vector<1x32x32xbf16>
    %c0_9 = arith.constant 0 : index
    %c0_10 = arith.constant 0 : index
    %c0_11 = arith.constant 0 : index
    %12 = vector.load %arg5[%c0_9, %c0_10, %c0_11] : memref<1x32x32xbf16, #tpu.memory_space<vmem>>, vector<1x32x32xbf16>
    tpu.vector_store %arg5[%c0_9, %c0_10, %c0_11], %11 {strides = array<i32>} : memref<1x32x32xbf16, #tpu.memory_space<vmem>>, vector<1x32x32xbf16>,
    return
  }
  func.func @transform_0(%arg0: i32) -> (i32, i32, i32) {
    %c0_i32 = arith.constant 0 : i32
    %c0_i32_0 = arith.constant 0 : i32
    %c0_i32_1 = arith.constant 0 : i32
    return %arg0, %c0_i32, %c0_i32_0 : i32, i32, i32
  }
  func.func @transform_1(%arg0: i32) -> (i32, i32) {
    %c0_i32 = arith.constant 0 : i32
    %c0_i32_0 = arith.constant 0 : i32
    %c0_i32_1 = arith.constant 0 : i32
    return %c0_i32, %c0_i32_0 : i32, i32
  }
  func.func @transform_2(%arg0: i32) -> (i32, i32) {
    %c0_i32 = arith.constant 0 : i32
    %c0_i32_0 = arith.constant 0 : i32
    %c0_i32_1 = arith.constant 0 : i32
    return %c0_i32, %c0_i32_0 : i32, i32
  }
  func.func @transform_3(%arg0: i32) -> (i32, i32, i32) {
    %c0_i32 = arith.constant 0 : i32
    %c0_i32_0 = arith.constant 0 : i32
    %c0_i32_1 = arith.constant 0 : i32
    %c0_i32_2 = arith.constant 0 : i32
    return %c0_i32, %c0_i32_0, %c0_i32_1 : i32, i32, i32
  }
  func.func @transform_4(%arg0: i32) -> (i32, i32, i32) {
    %c0_i32 = arith.constant 0 : i32
    %c0_i32_0 = arith.constant 0 : i32
    %c0_i32_1 = arith.constant 0 : i32
    return %arg0, %c0_i32, %c0_i32_0 : i32, i32, i32
  }
}

module attributes {stable_mosaic.version = 11 : i64} {
  func.func @_blocks_kernel(%arg0: i32, %arg1: i32, %arg2: memref<1x32x32xbf16, #tpu.memory_space<vmem>>, %arg3: memref<1x1x32xf32, #tpu.memory_space<vmem>>, %arg4: memref<1x1x32xf32, #tpu.memory_space<vmem>>, %arg5: memref<1x96x32xbf16, #tpu.memory_space<vmem>>, %arg6: memref<1x96x1xf32, #tpu.memory_space<vmem>>, %arg7: memref<1x32x32xbf16, #tpu.memory_space<vmem>>, %arg8: memref<1x1x32xf32, #tpu.memory_space<vmem>>, %arg9: memref<1x1x32xf32, #tpu.memory_space<vmem>>, %arg10: memref<1x1x32xf32, #tpu.memory_space<vmem>>, %arg11: memref<1x32x64xbf16, #tpu.memory_space<vmem>>, %arg12: memref<1x1x64xf32, #tpu.memory_space<vmem>>, %arg13: memref<1x64x32xbf16, #tpu.memory_space<vmem>>, %arg14: memref<1x1x32xf32, #tpu.memory_space<vmem>>, %arg15: memref<1x32xf32, #tpu.memory_space<vmem>>, %arg16: memref<1x32xf32, #tpu.memory_space<vmem>>, %arg17: memref<1x32x32xbf16, #tpu.memory_space<vmem>>, %arg18: memref<32x32xf32, #tpu.memory_space<vmem>>) attributes {dimension_semantics = [#tpu.dimension_semantics<parallel>, #tpu.dimension_semantics<arbitrary>], iteration_bounds = array<i64: 2, 2>, scalar_prefetch = 0 : i64, scratch_operands = 1 : i64, tpu.core_type = #tpu.core_type<tc>, window_params = [{transform_indices = @transform_0, window_bounds = array<i64: 1, 32, 32>}, {transform_indices = @transform_1, window_bounds = array<i64: 1, 1, 32>}, {transform_indices = @transform_2, window_bounds = array<i64: 1, 1, 32>}, {transform_indices = @transform_3, window_bounds = array<i64: 1, 96, 32>}, {transform_indices = @transform_4, window_bounds = array<i64: 1, 96, 1>}, {transform_indices = @transform_5, window_bounds = array<i64: 1, 32, 32>}, {transform_indices = @transform_6, window_bounds = array<i64: 1, 1, 32>}, {transform_indices = @transform_7, window_bounds = array<i64: 1, 1, 32>}, {transform_indices = @transform_8, window_bounds = array<i64: 1, 1, 32>}, {transform_indices = @transform_9, window_bounds = array<i64: 1, 32, 64>}, {transform_indices = @transform_10, window_bounds = array<i64: 1, 1, 64>}, {transform_indices = @transform_11, window_bounds = array<i64: 1, 64, 32>}, {transform_indices = @transform_12, window_bounds = array<i64: 1, 1, 32>}, {pipeline_mode = #tpu.pipeline_mode<synchronous>, transform_indices = @transform_13, window_bounds = array<i64: 1, 32>}, {pipeline_mode = #tpu.pipeline_mode<synchronous>, transform_indices = @transform_14, window_bounds = array<i64: 1, 32>}, {transform_indices = @transform_15, window_bounds = array<i64: 1, 32, 32>}]} {
    %c0_i32 = arith.constant 0 : i32
    %0 = arith.cmpi eq, %arg1, %c0_i32 : i32
    %1 = arith.extui %0 : i1 to i32
    %c0_i32_0 = arith.constant 0 : i32
    %2 = arith.cmpi ne, %1, %c0_i32_0 : i32
    scf.if %2 {
      %c0_63 = arith.constant 0 : index
      %c0_64 = arith.constant 0 : index
      %c0_65 = arith.constant 0 : index
      %133 = vector.load %arg2[%c0_63, %c0_64, %c0_65] : memref<1x32x32xbf16, #tpu.memory_space<vmem>>, vector<1x32x32xbf16>
      %134 = vector.shape_cast %133 : vector<1x32x32xbf16> to vector<32x32xbf16>
      %135 = arith.extf %134 : vector<32x32xbf16> to vector<32x32xf32>
      %c0_66 = arith.constant 0 : index
      %c0_67 = arith.constant 0 : index
      %136 = vector.load %arg18[%c0_66, %c0_67] : memref<32x32xf32, #tpu.memory_space<vmem>>, vector<32x32xf32>
      tpu.vector_store %arg18[%c0_66, %c0_67], %135 {strides = array<i32>} : memref<32x32xf32, #tpu.memory_space<vmem>>, vector<32x32xf32>,
    } else {
    }
    %c0 = arith.constant 0 : index
    %c0_1 = arith.constant 0 : index
    %3 = vector.load %arg18[%c0, %c0_1] : memref<32x32xf32, #tpu.memory_space<vmem>>, vector<32x32xf32>
    %c0_2 = arith.constant 0 : index
    %c0_3 = arith.constant 0 : index
    %c0_4 = arith.constant 0 : index
    %4 = vector.load %arg3[%c0_2, %c0_3, %c0_4] : memref<1x1x32xf32, #tpu.memory_space<vmem>>, vector<1x1x32xf32>
    %5 = vector.shape_cast %4 : vector<1x1x32xf32> to vector<1x32xf32>
    %c0_5 = arith.constant 0 : index
    %c0_6 = arith.constant 0 : index
    %c0_7 = arith.constant 0 : index
    %6 = vector.load %arg4[%c0_5, %c0_6, %c0_7] : memref<1x1x32xf32, #tpu.memory_space<vmem>>, vector<1x1x32xf32>
    %7 = vector.shape_cast %6 : vector<1x1x32xf32> to vector<1x32xf32>
    %cst = arith.constant dense<0.000000e+00> : vector<32xf32>
    %8 = vector.multi_reduction <add>, %3, %cst [1] : vector<32x32xf32> to vector<32xf32>
    %9 = vector.shape_cast %8 : vector<32xf32> to vector<32x1xf32>
    %cst_8 = arith.constant 3.200000e+01 : f32
    %10 = vector.broadcast %cst_8 : f32 to vector<32x1xf32>
    %11 = arith.divf %9, %10 : vector<32x1xf32>
    %12 = vector.broadcast %11 : vector<32x1xf32> to vector<32x32xf32>
    %13 = arith.subf %3, %12 : vector<32x32xf32>
    %14 = arith.mulf %13, %13 : vector<32x32xf32>
    %cst_9 = arith.constant dense<0.000000e+00> : vector<32xf32>
    %15 = vector.multi_reduction <add>, %14, %cst_9 [1] : vector<32x32xf32> to vector<32xf32>
    %16 = vector.shape_cast %15 : vector<32xf32> to vector<32x1xf32>
    %cst_10 = arith.constant 3.200000e+01 : f32
    %17 = vector.broadcast %cst_10 : f32 to vector<32x1xf32>
    %18 = arith.divf %16, %17 : vector<32x1xf32>
    %19 = vector.broadcast %11 : vector<32x1xf32> to vector<32x32xf32>
    %20 = arith.subf %3, %19 : vector<32x32xf32>
    %cst_11 = arith.constant 9.99999997E-7 : f32
    %21 = vector.broadcast %cst_11 : f32 to vector<32x1xf32>
    %22 = arith.addf %18, %21 : vector<32x1xf32>
    %23 = math.rsqrt %22 : vector<32x1xf32>
    %24 = vector.broadcast %23 : vector<32x1xf32> to vector<32x32xf32>
    %25 = arith.mulf %20, %24 : vector<32x32xf32>
    %26 = vector.broadcast %5 : vector<1x32xf32> to vector<32x32xf32>
    %27 = arith.mulf %25, %26 : vector<32x32xf32>
    %28 = vector.broadcast %7 : vector<1x32xf32> to vector<32x32xf32>
    %29 = arith.addf %27, %28 : vector<32x32xf32>
    %30 = tpu.transpose %29, [1, 0] : vector<32x32xf32> -> vector<32x32xf32>
    %31 = arith.truncf %30 : vector<32x32xf32> to vector<32x32xbf16>
    %c0_12 = arith.constant 0 : index
    %c0_13 = arith.constant 0 : index
    %c0_14 = arith.constant 0 : index
    %32 = vector.load %arg5[%c0_12, %c0_13, %c0_14] : memref<1x96x32xbf16, #tpu.memory_space<vmem>>, vector<1x96x32xbf16>
    %33 = vector.shape_cast %32 : vector<1x96x32xbf16> to vector<96x32xbf16>
    %cst_15 = arith.constant dense<0.000000e+00> : vector<96x32xf32>
    %34 = tpu.matmul %33, %31, %cst_15 {dimension_numbers = #tpu.dot_dimension_numbers<[1], [0], [0], [1], [0, 0, 1, 1], [], []>} : vector<96x32xbf16>, vector<32x32xbf16>, vector<96x32xf32> -> vector<96x32xf32>
    %c0_16 = arith.constant 0 : index
    %c0_17 = arith.constant 0 : index
    %c0_18 = arith.constant 0 : index
    %35 = vector.load %arg6[%c0_16, %c0_17, %c0_18] : memref<1x96x1xf32, #tpu.memory_space<vmem>>, vector<1x96x1xf32>
    %36 = vector.shape_cast %35 : vector<1x96x1xf32> to vector<96x1xf32>
    %37 = vector.broadcast %36 : vector<96x1xf32> to vector<96x32xf32>
    %38 = arith.addf %34, %37 : vector<96x32xf32>
    %39 = vector.shape_cast %38 : vector<96x32xf32> to vector<12x8x32xf32>
    %40 = vector.extract_strided_slice %39 {offsets = [0, 0, 0], sizes = [4, 8, 32], strides = [1, 1, 1]} : vector<12x8x32xf32> to vector<4x8x32xf32>
    %41 = vector.extract_strided_slice %39 {offsets = [4, 0, 0], sizes = [4, 8, 32], strides = [1, 1, 1]} : vector<12x8x32xf32> to vector<4x8x32xf32>
    %42 = vector.extract_strided_slice %39 {offsets = [8, 0, 0], sizes = [4, 8, 32], strides = [1, 1, 1]} : vector<12x8x32xf32> to vector<4x8x32xf32>
    %43 = tpu.transpose %40, [0, 2, 1] : vector<4x8x32xf32> -> vector<4x32x8xf32>
    %44 = arith.truncf %43 : vector<4x32x8xf32> to vector<4x32x8xbf16>
    %45 = arith.truncf %41 : vector<4x8x32xf32> to vector<4x8x32xbf16>
    "tpu.trace_start"() <{level = 10 : i32, message = "hnd,hdm->hnm"}> : () -> ()
    %cst_19 = arith.constant dense<0.000000e+00> : vector<4x32x32xf32>
    %46 = tpu.matmul %44, %45, %cst_19 {dimension_numbers = #tpu.dot_dimension_numbers<[2], [1], [1], [2], [0, 0, 0, 1, 1, 2], [0], [0]>} : vector<4x32x8xbf16>, vector<4x8x32xbf16>, vector<4x32x32xf32> -> vector<4x32x32xf32>
    "tpu.trace_stop"() : () -> ()
    %cst_20 = arith.constant 0.353553385 : f32
    %47 = vector.broadcast %cst_20 : f32 to vector<4x32x32xf32>
    %48 = arith.mulf %46, %47 : vector<4x32x32xf32>
    %cst_21 = arith.constant dense<0xFF800000> : vector<4x32xf32>
    %49 = vector.multi_reduction <maximumf>, %48, %cst_21 [2] : vector<4x32x32xf32> to vector<4x32xf32>
    %50 = vector.shape_cast %49 : vector<4x32xf32> to vector<4x32x1xf32>
    %51 = vector.broadcast %50 : vector<4x32x1xf32> to vector<4x32x32xf32>
    %52 = arith.subf %48, %51 : vector<4x32x32xf32>
    %53 = math.exp %52 : vector<4x32x32xf32>
    %cst_22 = arith.constant dense<0.000000e+00> : vector<4x32xf32>
    %54 = vector.multi_reduction <add>, %53, %cst_22 [2] : vector<4x32x32xf32> to vector<4x32xf32>
    %55 = vector.shape_cast %54 : vector<4x32xf32> to vector<4x32x1xf32>
    %56 = tpu.reciprocal %55 {approx = true} : vector<4x32x1xf32> -> vector<4x32x1xf32>
    %57 = vector.broadcast %56 : vector<4x32x1xf32> to vector<4x32x32xf32>
    %58 = arith.mulf %53, %57 : vector<4x32x32xf32>
    %59 = arith.truncf %42 : vector<4x8x32xf32> to vector<4x8x32xbf16>
    %60 = arith.truncf %58 : vector<4x32x32xf32> to vector<4x32x32xbf16>
    "tpu.trace_start"() <{level = 10 : i32, message = "hdj,hij->hdi"}> : () -> ()
    %cst_23 = arith.constant dense<0.000000e+00> : vector<4x8x32xf32>
    %61 = tpu.matmul %59, %60, %cst_23 {dimension_numbers = #tpu.dot_dimension_numbers<[2], [2], [1], [1], [0, 0, 0, 1, 1, 1], [0], [0]>} : vector<4x8x32xbf16>, vector<4x32x32xbf16>, vector<4x8x32xf32> -> vector<4x8x32xf32>
    "tpu.trace_stop"() : () -> ()
    %62 = vector.shape_cast %61 : vector<4x8x32xf32> to vector<32x32xf32>
    %63 = tpu.transpose %62, [1, 0] : vector<32x32xf32> -> vector<32x32xf32>
    %64 = arith.truncf %63 : vector<32x32xf32> to vector<32x32xbf16>
    %c0_24 = arith.constant 0 : index
    %c0_25 = arith.constant 0 : index
    %c0_26 = arith.constant 0 : index
    %65 = vector.load %arg7[%c0_24, %c0_25, %c0_26] : memref<1x32x32xbf16, #tpu.memory_space<vmem>>, vector<1x32x32xbf16>
    %66 = vector.shape_cast %65 : vector<1x32x32xbf16> to vector<32x32xbf16>
    %cst_27 = arith.constant dense<0.000000e+00> : vector<32x32xf32>
    %67 = tpu.matmul %64, %66, %cst_27 {dimension_numbers = #tpu.dot_dimension_numbers<[1], [0], [0], [1], [0, 0, 1, 1], [], []>} : vector<32x32xbf16>, vector<32x32xbf16>, vector<32x32xf32> -> vector<32x32xf32>
    %c0_28 = arith.constant 0 : index
    %c0_29 = arith.constant 0 : index
    %c0_30 = arith.constant 0 : index
    %68 = vector.load %arg8[%c0_28, %c0_29, %c0_30] : memref<1x1x32xf32, #tpu.memory_space<vmem>>, vector<1x1x32xf32>
    %69 = vector.shape_cast %68 : vector<1x1x32xf32> to vector<1x32xf32>
    %70 = vector.broadcast %69 : vector<1x32xf32> to vector<32x32xf32>
    %71 = arith.addf %67, %70 : vector<32x32xf32>
    %72 = arith.addf %3, %71 : vector<32x32xf32>
    %c0_31 = arith.constant 0 : index
    %c0_32 = arith.constant 0 : index
    %c0_33 = arith.constant 0 : index
    %73 = vector.load %arg9[%c0_31, %c0_32, %c0_33] : memref<1x1x32xf32, #tpu.memory_space<vmem>>, vector<1x1x32xf32>
    %74 = vector.shape_cast %73 : vector<1x1x32xf32> to vector<1x32xf32>
    %c0_34 = arith.constant 0 : index
    %c0_35 = arith.constant 0 : index
    %c0_36 = arith.constant 0 : index
    %75 = vector.load %arg10[%c0_34, %c0_35, %c0_36] : memref<1x1x32xf32, #tpu.memory_space<vmem>>, vector<1x1x32xf32>
    %76 = vector.shape_cast %75 : vector<1x1x32xf32> to vector<1x32xf32>
    %cst_37 = arith.constant dense<0.000000e+00> : vector<32xf32>
    %77 = vector.multi_reduction <add>, %72, %cst_37 [1] : vector<32x32xf32> to vector<32xf32>
    %78 = vector.shape_cast %77 : vector<32xf32> to vector<32x1xf32>
    %cst_38 = arith.constant 3.200000e+01 : f32
    %79 = vector.broadcast %cst_38 : f32 to vector<32x1xf32>
    %80 = arith.divf %78, %79 : vector<32x1xf32>
    %81 = vector.broadcast %80 : vector<32x1xf32> to vector<32x32xf32>
    %82 = arith.subf %72, %81 : vector<32x32xf32>
    %83 = arith.mulf %82, %82 : vector<32x32xf32>
    %cst_39 = arith.constant dense<0.000000e+00> : vector<32xf32>
    %84 = vector.multi_reduction <add>, %83, %cst_39 [1] : vector<32x32xf32> to vector<32xf32>
    %85 = vector.shape_cast %84 : vector<32xf32> to vector<32x1xf32>
    %cst_40 = arith.constant 3.200000e+01 : f32
    %86 = vector.broadcast %cst_40 : f32 to vector<32x1xf32>
    %87 = arith.divf %85, %86 : vector<32x1xf32>
    %88 = vector.broadcast %80 : vector<32x1xf32> to vector<32x32xf32>
    %89 = arith.subf %72, %88 : vector<32x32xf32>
    %cst_41 = arith.constant 9.99999997E-7 : f32
    %90 = vector.broadcast %cst_41 : f32 to vector<32x1xf32>
    %91 = arith.addf %87, %90 : vector<32x1xf32>
    %92 = math.rsqrt %91 : vector<32x1xf32>
    %93 = vector.broadcast %92 : vector<32x1xf32> to vector<32x32xf32>
    %94 = arith.mulf %89, %93 : vector<32x32xf32>
    %95 = vector.broadcast %74 : vector<1x32xf32> to vector<32x32xf32>
    %96 = arith.mulf %94, %95 : vector<32x32xf32>
    %97 = vector.broadcast %76 : vector<1x32xf32> to vector<32x32xf32>
    %98 = arith.addf %96, %97 : vector<32x32xf32>
    %99 = arith.truncf %98 : vector<32x32xf32> to vector<32x32xbf16>
    %c0_42 = arith.constant 0 : index
    %c0_43 = arith.constant 0 : index
    %c0_44 = arith.constant 0 : index
    %100 = vector.load %arg11[%c0_42, %c0_43, %c0_44] : memref<1x32x64xbf16, #tpu.memory_space<vmem>>, vector<1x32x64xbf16>
    %101 = vector.shape_cast %100 : vector<1x32x64xbf16> to vector<32x64xbf16>
    %cst_45 = arith.constant dense<0.000000e+00> : vector<32x64xf32>
    %102 = tpu.matmul %99, %101, %cst_45 {dimension_numbers = #tpu.dot_dimension_numbers<[1], [0], [0], [1], [0, 0, 1, 1], [], []>} : vector<32x32xbf16>, vector<32x64xbf16>, vector<32x64xf32> -> vector<32x64xf32>
    %c0_46 = arith.constant 0 : index
    %c0_47 = arith.constant 0 : index
    %c0_48 = arith.constant 0 : index
    %103 = vector.load %arg12[%c0_46, %c0_47, %c0_48] : memref<1x1x64xf32, #tpu.memory_space<vmem>>, vector<1x1x64xf32>
    %104 = vector.shape_cast %103 : vector<1x1x64xf32> to vector<1x64xf32>
    %105 = vector.broadcast %104 : vector<1x64xf32> to vector<32x64xf32>
    %106 = arith.addf %102, %105 : vector<32x64xf32>
    %107 = arith.mulf %106, %106 : vector<32x64xf32>
    %108 = arith.mulf %106, %107 : vector<32x64xf32>
    %cst_49 = arith.constant 4.471500e-02 : f32
    %109 = vector.broadcast %cst_49 : f32 to vector<32x64xf32>
    %110 = arith.mulf %109, %108 : vector<32x64xf32>
    %111 = arith.addf %106, %110 : vector<32x64xf32>
    %cst_50 = arith.constant 0.797884583 : f32
    %112 = vector.broadcast %cst_50 : f32 to vector<32x64xf32>
    %113 = arith.mulf %112, %111 : vector<32x64xf32>
    %114 = math.tanh %113 : vector<32x64xf32>
    %cst_51 = arith.constant 1.000000e+00 : f32
    %115 = vector.broadcast %cst_51 : f32 to vector<32x64xf32>
    %116 = arith.addf %115, %114 : vector<32x64xf32>
    %cst_52 = arith.constant 5.000000e-01 : f32
    %117 = vector.broadcast %cst_52 : f32 to vector<32x64xf32>
    %118 = arith.mulf %117, %116 : vector<32x64xf32>
    %119 = arith.mulf %106, %118 : vector<32x64xf32>
    %120 = arith.truncf %119 : vector<32x64xf32> to vector<32x64xbf16>
    %c0_53 = arith.constant 0 : index
    %c0_54 = arith.constant 0 : index
    %c0_55 = arith.constant 0 : index
    %121 = vector.load %arg13[%c0_53, %c0_54, %c0_55] : memref<1x64x32xbf16, #tpu.memory_space<vmem>>, vector<1x64x32xbf16>
    %122 = vector.shape_cast %121 : vector<1x64x32xbf16> to vector<64x32xbf16>
    %cst_56 = arith.constant dense<0.000000e+00> : vector<32x32xf32>
    %123 = tpu.matmul %120, %122, %cst_56 {dimension_numbers = #tpu.dot_dimension_numbers<[1], [0], [0], [1], [0, 0, 1, 1], [], []>} : vector<32x64xbf16>, vector<64x32xbf16>, vector<32x32xf32> -> vector<32x32xf32>
    %c0_57 = arith.constant 0 : index
    %c0_58 = arith.constant 0 : index
    %c0_59 = arith.constant 0 : index
    %124 = vector.load %arg14[%c0_57, %c0_58, %c0_59] : memref<1x1x32xf32, #tpu.memory_space<vmem>>, vector<1x1x32xf32>
    %125 = vector.shape_cast %124 : vector<1x1x32xf32> to vector<1x32xf32>
    %126 = vector.broadcast %125 : vector<1x32xf32> to vector<32x32xf32>
    %127 = arith.addf %123, %126 : vector<32x32xf32>
    %128 = arith.addf %72, %127 : vector<32x32xf32>
    %c0_60 = arith.constant 0 : index
    %c0_61 = arith.constant 0 : index
    %129 = vector.load %arg18[%c0_60, %c0_61] : memref<32x32xf32, #tpu.memory_space<vmem>>, vector<32x32xf32>
    tpu.vector_store %arg18[%c0_60, %c0_61], %128 {strides = array<i32>} : memref<32x32xf32, #tpu.memory_space<vmem>>, vector<32x32xf32>,
    %c1_i32 = arith.constant 1 : i32
    %130 = arith.cmpi eq, %arg1, %c1_i32 : i32
    %131 = arith.extui %130 : i1 to i32
    %c0_i32_62 = arith.constant 0 : i32
    %132 = arith.cmpi ne, %131, %c0_i32_62 : i32
    scf.if %132 {
      %c0_63 = arith.constant 0 : index
      %c0_64 = arith.constant 0 : index
      %133 = vector.load %arg15[%c0_63, %c0_64] : memref<1x32xf32, #tpu.memory_space<vmem>>, vector<1x32xf32>
      %c0_65 = arith.constant 0 : index
      %c0_66 = arith.constant 0 : index
      %134 = vector.load %arg16[%c0_65, %c0_66] : memref<1x32xf32, #tpu.memory_space<vmem>>, vector<1x32xf32>
      %cst_67 = arith.constant dense<0.000000e+00> : vector<32xf32>
      %135 = vector.multi_reduction <add>, %128, %cst_67 [1] : vector<32x32xf32> to vector<32xf32>
      %136 = vector.shape_cast %135 : vector<32xf32> to vector<32x1xf32>
      %cst_68 = arith.constant 3.200000e+01 : f32
      %137 = vector.broadcast %cst_68 : f32 to vector<32x1xf32>
      %138 = arith.divf %136, %137 : vector<32x1xf32>
      %139 = vector.broadcast %138 : vector<32x1xf32> to vector<32x32xf32>
      %140 = arith.subf %128, %139 : vector<32x32xf32>
      %141 = arith.mulf %140, %140 : vector<32x32xf32>
      %cst_69 = arith.constant dense<0.000000e+00> : vector<32xf32>
      %142 = vector.multi_reduction <add>, %141, %cst_69 [1] : vector<32x32xf32> to vector<32xf32>
      %143 = vector.shape_cast %142 : vector<32xf32> to vector<32x1xf32>
      %cst_70 = arith.constant 3.200000e+01 : f32
      %144 = vector.broadcast %cst_70 : f32 to vector<32x1xf32>
      %145 = arith.divf %143, %144 : vector<32x1xf32>
      %146 = vector.broadcast %138 : vector<32x1xf32> to vector<32x32xf32>
      %147 = arith.subf %128, %146 : vector<32x32xf32>
      %cst_71 = arith.constant 9.99999997E-7 : f32
      %148 = vector.broadcast %cst_71 : f32 to vector<32x1xf32>
      %149 = arith.addf %145, %148 : vector<32x1xf32>
      %150 = math.rsqrt %149 : vector<32x1xf32>
      %151 = vector.broadcast %150 : vector<32x1xf32> to vector<32x32xf32>
      %152 = arith.mulf %147, %151 : vector<32x32xf32>
      %153 = vector.broadcast %133 : vector<1x32xf32> to vector<32x32xf32>
      %154 = arith.mulf %152, %153 : vector<32x32xf32>
      %155 = vector.broadcast %134 : vector<1x32xf32> to vector<32x32xf32>
      %156 = arith.addf %154, %155 : vector<32x32xf32>
      %157 = vector.shape_cast %156 : vector<32x32xf32> to vector<1x32x32xf32>
      %158 = arith.truncf %157 : vector<1x32x32xf32> to vector<1x32x32xbf16>
      %c0_72 = arith.constant 0 : index
      %c0_73 = arith.constant 0 : index
      %c0_74 = arith.constant 0 : index
      %159 = vector.load %arg17[%c0_72, %c0_73, %c0_74] : memref<1x32x32xbf16, #tpu.memory_space<vmem>>, vector<1x32x32xbf16>
      tpu.vector_store %arg17[%c0_72, %c0_73, %c0_74], %158 {strides = array<i32>} : memref<1x32x32xbf16, #tpu.memory_space<vmem>>, vector<1x32x32xbf16>,
    } else {
    }
    return
  }
  func.func @transform_0(%arg0: i32, %arg1: i32) -> (i32, i32, i32) {
    %c0_i32 = arith.constant 0 : i32
    %c0_i32_0 = arith.constant 0 : i32
    %c0_i32_1 = arith.constant 0 : i32
    return %arg0, %c0_i32, %c0_i32_0 : i32, i32, i32
  }
  func.func @transform_1(%arg0: i32, %arg1: i32) -> (i32, i32, i32) {
    %c0_i32 = arith.constant 0 : i32
    %c0_i32_0 = arith.constant 0 : i32
    %c0_i32_1 = arith.constant 0 : i32
    return %arg1, %c0_i32, %c0_i32_0 : i32, i32, i32
  }
  func.func @transform_2(%arg0: i32, %arg1: i32) -> (i32, i32, i32) {
    %c0_i32 = arith.constant 0 : i32
    %c0_i32_0 = arith.constant 0 : i32
    %c0_i32_1 = arith.constant 0 : i32
    return %arg1, %c0_i32, %c0_i32_0 : i32, i32, i32
  }
  func.func @transform_3(%arg0: i32, %arg1: i32) -> (i32, i32, i32) {
    %c0_i32 = arith.constant 0 : i32
    %c0_i32_0 = arith.constant 0 : i32
    %c0_i32_1 = arith.constant 0 : i32
    return %arg1, %c0_i32, %c0_i32_0 : i32, i32, i32
  }
  func.func @transform_4(%arg0: i32, %arg1: i32) -> (i32, i32, i32) {
    %c0_i32 = arith.constant 0 : i32
    %c0_i32_0 = arith.constant 0 : i32
    %c0_i32_1 = arith.constant 0 : i32
    return %arg1, %c0_i32, %c0_i32_0 : i32, i32, i32
  }
  func.func @transform_5(%arg0: i32, %arg1: i32) -> (i32, i32, i32) {
    %c0_i32 = arith.constant 0 : i32
    %c0_i32_0 = arith.constant 0 : i32
    %c0_i32_1 = arith.constant 0 : i32
    return %arg1, %c0_i32, %c0_i32_0 : i32, i32, i32
  }
  func.func @transform_6(%arg0: i32, %arg1: i32) -> (i32, i32, i32) {
    %c0_i32 = arith.constant 0 : i32
    %c0_i32_0 = arith.constant 0 : i32
    %c0_i32_1 = arith.constant 0 : i32
    return %arg1, %c0_i32, %c0_i32_0 : i32, i32, i32
  }
  func.func @transform_7(%arg0: i32, %arg1: i32) -> (i32, i32, i32) {
    %c0_i32 = arith.constant 0 : i32
    %c0_i32_0 = arith.constant 0 : i32
    %c0_i32_1 = arith.constant 0 : i32
    return %arg1, %c0_i32, %c0_i32_0 : i32, i32, i32
  }
  func.func @transform_8(%arg0: i32, %arg1: i32) -> (i32, i32, i32) {
    %c0_i32 = arith.constant 0 : i32
    %c0_i32_0 = arith.constant 0 : i32
    %c0_i32_1 = arith.constant 0 : i32
    return %arg1, %c0_i32, %c0_i32_0 : i32, i32, i32
  }
  func.func @transform_9(%arg0: i32, %arg1: i32) -> (i32, i32, i32) {
    %c0_i32 = arith.constant 0 : i32
    %c0_i32_0 = arith.constant 0 : i32
    %c0_i32_1 = arith.constant 0 : i32
    return %arg1, %c0_i32, %c0_i32_0 : i32, i32, i32
  }
  func.func @transform_10(%arg0: i32, %arg1: i32) -> (i32, i32, i32) {
    %c0_i32 = arith.constant 0 : i32
    %c0_i32_0 = arith.constant 0 : i32
    %c0_i32_1 = arith.constant 0 : i32
    return %arg1, %c0_i32, %c0_i32_0 : i32, i32, i32
  }
  func.func @transform_11(%arg0: i32, %arg1: i32) -> (i32, i32, i32) {
    %c0_i32 = arith.constant 0 : i32
    %c0_i32_0 = arith.constant 0 : i32
    %c0_i32_1 = arith.constant 0 : i32
    return %arg1, %c0_i32, %c0_i32_0 : i32, i32, i32
  }
  func.func @transform_12(%arg0: i32, %arg1: i32) -> (i32, i32, i32) {
    %c0_i32 = arith.constant 0 : i32
    %c0_i32_0 = arith.constant 0 : i32
    %c0_i32_1 = arith.constant 0 : i32
    return %arg1, %c0_i32, %c0_i32_0 : i32, i32, i32
  }
  func.func @transform_13(%arg0: i32, %arg1: i32) -> (i32, i32) {
    %c0_i32 = arith.constant 0 : i32
    %c0_i32_0 = arith.constant 0 : i32
    %c0_i32_1 = arith.constant 0 : i32
    return %c0_i32, %c0_i32_0 : i32, i32
  }
  func.func @transform_14(%arg0: i32, %arg1: i32) -> (i32, i32) {
    %c0_i32 = arith.constant 0 : i32
    %c0_i32_0 = arith.constant 0 : i32
    %c0_i32_1 = arith.constant 0 : i32
    return %c0_i32, %c0_i32_0 : i32, i32
  }
  func.func @transform_15(%arg0: i32, %arg1: i32) -> (i32, i32, i32) {
    %c0_i32 = arith.constant 0 : i32
    %c0_i32_0 = arith.constant 0 : i32
    %c0_i32_1 = arith.constant 0 : i32
    return %arg0, %c0_i32, %c0_i32_0 : i32, i32, i32
  }
}

</mosaic_0001>

<llo_original>
// kernel: squeeze.1
$region0: #{squeeze.1}
  %s0 = inlined_call_operand.vmem [shape: f32[2,16], index: 0, kind: input, shape index: {}]
  %s1 = inlined_call_operand.hbm [shape: f32[1,2,4,4], index: 1, kind: output, shape index: {}]
  $region1: #{squeeze.1} parent=0
    #allocation0 [shape = 'u8[4096]{0}', space=vmem, size = 0x1000, scoped, tag = 'operand span for operand 1']
    #allocation1 [shape = 's32[1]{0}', space=sflag, size = 0x4, scoped, tag = 'scoped memory for squeeze.1']
    #allocation2 [shape = 'u8[8192]{0}', space=vmem, size = 0x2000, scoped, tag = 'scoped mem for output reshape']
    #allocation3 [shape = 'u8[4096]{0}', space=vmem, size = 0x1000, scoped, tag = 'scoped mem for input reshape']
    %2 = vsyncpa [#allocation1], 0
    %s4 = sshllo.u32 0, 2
    %v5 = vld [vmem:[%s0] sm:%s4]
    %6 = vst [vmem:[#allocation3] sm:%s4] %v5
    %v7 = vld [vmem:[#allocation3] sm:$0x3]
    %vm8 = vcmask 31744
    %9 = vst.msk [vmem:[#allocation2] ss:$8 sm:$0x3] %vm8, %v7
    %v10 = vld [vmem:[#allocation3] sm:$0x3]
    %11 = vrot.lane.b32.xlu0 %v10, 124
    %v12 = vpop.permute.xlu0 %11
    %vm13 = vcmask 31744
    %s14 = scalar_lea.vmem [#allocation2], 1
    %15 = vst.msk [vmem:[%s14] ss:$8 sm:$0x3] %vm13, %v12
    %v16 = vld [vmem:[#allocation3] sm:$0x3]
    %17 = vrot.lane.b32.xlu0 %v16, 120
    %v18 = vpop.permute.xlu0 %17
    %vm19 = vcmask 31744
    %s20 = scalar_lea.vmem [#allocation2], 2
    %21 = vst.msk [vmem:[%s20] ss:$8 sm:$0x3] %vm19, %v18
    %v22 = vld [vmem:[#allocation3] sm:$0x3]
    %23 = vrot.lane.b32.xlu0 %v22, 116
    %v24 = vpop.permute.xlu0 %23
    %vm25 = vcmask 31744
    %s26 = scalar_lea.vmem [#allocation2], 3
    %27 = vst.msk [vmem:[%s26] ss:$8 sm:$0x3] %vm25, %v24
    %s29 = sshllo.u32 0, 4
    %v31 = vld [vmem:[#allocation2] sm:%s29]
    %s32 = sshllo.u32 0, 4
    %33 = vst [vmem:[#allocation0] sm:%s32] %v31
    %s34 = scalar_lea.vmem [#allocation2], 8
    %v35 = vld [vmem:[%s34] sm:%s29]
    %s36 = sshllo.u32 0, 4
    %s37 = scalar_lea.vmem [#allocation0], 4
    %38 = vst [vmem:[%s37] sm:%s36] %v35
    %s40 = ssub.s32 128, 128
    %41 = vsyncadd [#allocation1], %s40
    %s43 = sshll.u32 [#allocation0], 4
    %s44 = int_to_ptr.vmem [resolvable:$true] %s43
    %46 = dma.vmem_to_hbm [thread:$0]  %s44, 128, %s1, [#allocation1]
    %47 = dma.done [#allocation1], 128
    %48 = vsyncpa [#allocation1], 1

// kernel: forward.5
$region0: #{forward.5}
  #allocation0 [shape = 'u32[]', space=smem, size = 0x4, offset = 0x4, fixed_abs, tag = 'smem constant byte address 0x4 - core index']
  #allocation1 [shape = 'u32[144,128]{1,0:T(1,128)}', space=vmem, size = 0x12000, scoped, tag = 'internal scratch']
  %s0 = inlined_call_operand.vmem [shape: bf16[2,16,32], index: 0, kind: input, shape index: {}]
  %s1 = inlined_call_operand.vmem [shape: bf16[2,16,32], index: 1, kind: input, shape index: {}]
  %s2 = inlined_call_operand.vmem [shape: f32[1,16,32], index: 2, kind: input, shape index: {}]
  %s3 = inlined_call_operand.vmem [shape: f32[2,1,4], index: 3, kind: input, shape index: {}]
  %s4 = inlined_call_operand.vmem [shape: f32[4,32], index: 4, kind: input, shape index: {}]
  %s5 = inlined_call_operand.vmem [shape: f32[1,32], index: 5, kind: input, shape index: {}]
  %s6 = inlined_call_operand.vmem [shape: bf16[32,128], index: 6, kind: input, shape index: {}]
  %s7 = inlined_call_operand.vmem [shape: f32[1,128], index: 7, kind: input, shape index: {}]
  %s8 = inlined_call_operand.vmem [shape: f32[2,16,128], index: 8, kind: output, shape index: {}]
  %s9 = sld [smem:[#allocation0]]
  $region65: #{forward.5} parent=0
    _
  %s11 = ssub.s32 1, %s9
  %s12 = scalar_select 0, %s11, %s9
  loop: start=0, step=1, limit=4
  $region2: #{forward.5} parent=0 // loop_pre_header
    _
  $region3: #{forward.5} parent=0 // loop_header
    %s14 = sphi 0, %s18
    %p15 = scmp.ge.s32.totalorder %s14, 4
    %s24 = sphi 0, %s26
    %s27 = sphi 0, %s24
    %s28 = sphi 0, %s27
    %s44 = sphi 0, %s28
    %s50 = sphi 0, %s52
    %s53 = sphi 0, %s50
    %s54 = sphi 0, %s53
    %s70 = sphi 0, %s54
    %s74 = sphi 0, %s74
    %s76 = sphi 0, %s74
    %s77 = sphi 0, %s76
    %s91 = sphi 0, %s77
    %s97 = sphi 0, %s99
    %s100 = sphi 0, %s97
    %s101 = sphi 0, %s100
    %s117 = sphi 0, %s101
    %s121 = sphi 0, %s121
    %s123 = sphi 0, %s121
    %s124 = sphi 0, %s123
    %s138 = sphi 0, %s124
    %s142 = sphi 0, %s142
    %s144 = sphi 0, %s142
    %s145 = sphi 0, %s144
    %s159 = sphi 0, %s145
    %s163 = sphi 0, %s163
    %s165 = sphi 0, %s163
    %s166 = sphi 0, %s165
    %s180 = sphi 0, %s166
    %s184 = sphi 0, %s184
    %s186 = sphi 0, %s184
    %s187 = sphi 0, %s186
    %s201 = sphi 0, %s187
    %s207 = sphi 0, %s209
    %s210 = sphi 0, %s207
    %s211 = sphi 0, %s210
    %s227 = sphi 0, %s211
  $region4: #{forward.5} parent=0 // loop_header_branch
    %17 = sbr.rel (%p15) target = $region8
  $region5: #{forward.5} parent=0 // loop_body
    %s19 = ssub.s32 %s14, 1
    %s20 = ssub.s32 %s14, 2
    %s21 = sadd.s32 %s14, 1
    %s22 = ssub.s32 %s14, %s21
    %p23 = scmp.eq.s32.totalorder %s22, 0
    %s25 = sadd.s32 %s24, 1
    %s26 = scalar_select %p23, %s24, %s25
    %p29 = pneg %p23
    %p30 = scmp.eq.s32.totalorder %s14, 1
    %p31 = por %p29, %p30
    %p32 = scmp.ne.s32.totalorder %s24, %s27
    %p33 = scmp.eq.s32.totalorder %s14, 0
    %p34 = por %p32, %p33
    %p35 = scmp.ne.s32.totalorder %s24, %s27
    %p36 = scmp.eq.s32.totalorder %s19, 1
    %p37 = por %p35, %p36
    %p38 = scmp.ne.s32.totalorder %s27, %s28
    %p39 = scmp.eq.s32.totalorder %s19, 0
    %p40 = por %p38, %p39
    %p41 = scmp.ne.s32.totalorder %s27, %s28
    %p42 = scmp.eq.s32.totalorder %s20, 1
    %p43 = por %p41, %p42
    %p45 = scmp.ne.s32.totalorder %s28, %s44
    %p46 = scmp.eq.s32.totalorder %s20, 0
    %p47 = por %p45, %p46
    %s48 = ssub.s32 %s14, %s21
    %p49 = scmp.eq.s32.totalorder %s48, 0
    %s51 = sadd.s32 %s50, 1
    %s52 = scalar_select %p49, %s50, %s51
    %p55 = pneg %p49
    %p56 = scmp.eq.s32.totalorder %s14, 1
    %p57 = por %p55, %p56
    %p58 = scmp.ne.s32.totalorder %s50, %s53
    %p59 = scmp.eq.s32.totalorder %s14, 0
    %p60 = por %p58, %p59
    %p61 = scmp.ne.s32.totalorder %s50, %s53
    %p62 = scmp.eq.s32.totalorder %s19, 1
    %p63 = por %p61, %p62
    %p64 = scmp.ne.s32.totalorder %s53, %s54
    %p65 = scmp.eq.s32.totalorder %s19, 0
    %p66 = por %p64, %p65
    %p67 = scmp.ne.s32.totalorder %s53, %s54
    %p68 = scmp.eq.s32.totalorder %s20, 1
    %p69 = por %p67, %p68
    %p71 = scmp.ne.s32.totalorder %s54, %s70
    %p72 = scmp.eq.s32.totalorder %s20, 0
    %p73 = por %p71, %p72
    %s75 = sadd.s32 %s74, 1
    %p78 = scmp.eq.s32.totalorder %s14, 1
    %p79 = scmp.ne.s32.totalorder %s74, %s76
    %p80 = scmp.eq.s32.totalorder %s14, 0
    %p81 = por %p79, %p80
    %p82 = scmp.ne.s32.totalorder %s74, %s76
    %p83 = scmp.eq.s32.totalorder %s19, 1
    %p84 = por %p82, %p83
    %p85 = scmp.ne.s32.totalorder %s76, %s77
    %p86 = scmp.eq.s32.totalorder %s19, 0
    %p87 = por %p85, %p86
    %p88 = scmp.ne.s32.totalorder %s76, %s77
    %p89 = scmp.eq.s32.totalorder %s20, 1
    %p90 = por %p88, %p89
    %p92 = scmp.ne.s32.totalorder %s77, %s91
    %p93 = scmp.eq.s32.totalorder %s20, 0
    %p94 = por %p92, %p93
    %s95 = ssub.s32 %s14, %s21
    %p96 = scmp.eq.s32.totalorder %s95, 0
    %s98 = sadd.s32 %s97, 1
    %s99 = scalar_select %p96, %s97, %s98
    %p102 = pneg %p96
    %p103 = scmp.eq.s32.totalorder %s14, 1
    %p104 = por %p102, %p103
    %p105 = scmp.ne.s32.totalorder %s97, %s100
    %p106 = scmp.eq.s32.totalorder %s14, 0
    %p107 = por %p105, %p106
    %p108 = scmp.ne.s32.totalorder %s97, %s100
    %p109 = scmp.eq.s32.totalorder %s19, 1
    %p110 = por %p108, %p109
    %p111 = scmp.ne.s32.totalorder %s100, %s101
    %p112 = scmp.eq.s32.totalorder %s19, 0
    %p113 = por %p111, %p112
    %p114 = scmp.ne.s32.totalorder %s100, %s101
    %p115 = scmp.eq.s32.totalorder %s20, 1
    %p116 = por %p114, %p115
    %p118 = scmp.ne.s32.totalorder %s101, %s117
    %p119 = scmp.eq.s32.totalorder %s20, 0
    %p120 = por %p118, %p119
    %s122 = sadd.s32 %s121, 1
    %p125 = scmp.eq.s32.totalorder %s14, 1
    %p126 = scmp.ne.s32.totalorder %s121, %s123
    %p127 = scmp.eq.s32.totalorder %s14, 0
    %p128 = por %p126, %p127
    %p129 = scmp.ne.s32.totalorder %s121, %s123
    %p130 = scmp.eq.s32.totalorder %s19, 1
    %p131 = por %p129, %p130
    %p132 = scmp.ne.s32.totalorder %s123, %s124
    %p133 = scmp.eq.s32.totalorder %s19, 0
    %p134 = por %p132, %p133
    %p135 = scmp.ne.s32.totalorder %s123, %s124
    %p136 = scmp.eq.s32.totalorder %s20, 1
    %p137 = por %p135, %p136
    %p139 = scmp.ne.s32.totalorder %s124, %s138
    %p140 = scmp.eq.s32.totalorder %s20, 0
    %p141 = por %p139, %p140
    %s143 = sadd.s32 %s142, 1
    %p146 = scmp.eq.s32.totalorder %s14, 1
    %p147 = scmp.ne.s32.totalorder %s142, %s144
    %p148 = scmp.eq.s32.totalorder %s14, 0
    %p149 = por %p147, %p148
    %p150 = scmp.ne.s32.totalorder %s142, %s144
    %p151 = scmp.eq.s32.totalorder %s19, 1
    %p152 = por %p150, %p151
    %p153 = scmp.ne.s32.totalorder %s144, %s145
    %p154 = scmp.eq.s32.totalorder %s19, 0
    %p155 = por %p153, %p154
    %p156 = scmp.ne.s32.totalorder %s144, %s145
    %p157 = scmp.eq.s32.totalorder %s20, 1
    %p158 = por %p156, %p157
    %p160 = scmp.ne.s32.totalorder %s145, %s159
    %p161 = scmp.eq.s32.totalorder %s20, 0
    %p162 = por %p160, %p161
    %s164 = sadd.s32 %s163, 1
    %p167 = scmp.eq.s32.totalorder %s14, 1
    %p168 = scmp.ne.s32.totalorder %s163, %s165
    %p169 = scmp.eq.s32.totalorder %s14, 0
    %p170 = por %p168, %p169
    %p171 = scmp.ne.s32.totalorder %s163, %s165
    %p172 = scmp.eq.s32.totalorder %s19, 1
    %p173 = por %p171, %p172
    %p174 = scmp.ne.s32.totalorder %s165, %s166
    %p175 = scmp.eq.s32.totalorder %s19, 0
    %p176 = por %p174, %p175
    %p177 = scmp.ne.s32.totalorder %s165, %s166
    %p178 = scmp.eq.s32.totalorder %s20, 1
    %p179 = por %p177, %p178
    %p181 = scmp.ne.s32.totalorder %s166, %s180
    %p182 = scmp.eq.s32.totalorder %s20, 0
    %p183 = por %p181, %p182
    %s185 = sadd.s32 %s184, 1
    %p188 = scmp.eq.s32.totalorder %s14, 1
    %p189 = scmp.ne.s32.totalorder %s184, %s186
    %p190 = scmp.eq.s32.totalorder %s14, 0
    %p191 = por %p189, %p190
    %p192 = scmp.ne.s32.totalorder %s184, %s186
    %p193 = scmp.eq.s32.totalorder %s19, 1
    %p194 = por %p192, %p193
    %p195 = scmp.ne.s32.totalorder %s186, %s187
    %p196 = scmp.eq.s32.totalorder %s19, 0
    %p197 = por %p195, %p196
    %p198 = scmp.ne.s32.totalorder %s186, %s187
    %p199 = scmp.eq.s32.totalorder %s20, 1
    %p200 = por %p198, %p199
    %p202 = scmp.ne.s32.totalorder %s187, %s201
    %p203 = scmp.eq.s32.totalorder %s20, 0
    %p204 = por %p202, %p203
    %s205 = ssub.s32 %s14, %s21
    %p206 = scmp.eq.s32.totalorder %s205, 0
    %s208 = sadd.s32 %s207, 1
    %s209 = scalar_select %p206, %s207, %s208
    %p212 = pneg %p206
    %p213 = scmp.eq.s32.totalorder %s14, 1
    %p214 = por %p212, %p213
    %p215 = scmp.ne.s32.totalorder %s207, %s210
    %p216 = scmp.eq.s32.totalorder %s14, 0
    %p217 = por %p215, %p216
    %p218 = scmp.ne.s32.totalorder %s207, %s210
    %p219 = scmp.eq.s32.totalorder %s19, 1
    %p220 = por %p218, %p219
    %p221 = scmp.ne.s32.totalorder %s210, %s211
    %p222 = scmp.eq.s32.totalorder %s19, 0
    %p223 = por %p221, %p222
    %p224 = scmp.ne.s32.totalorder %s210, %s211
    %p225 = scmp.eq.s32.totalorder %s20, 1
    %p226 = por %p224, %p225
    %p228 = scmp.ne.s32.totalorder %s211, %s227
    %p229 = scmp.eq.s32.totalorder %s20, 0
    %p230 = por %p228, %p229
    %p231 = scmp.le.s32.totalorder 1, %s14
    %p232 = scmp.lt.s32.totalorder %s14, 3
    %p233 = pnand %p231, %p232
    %p234 = pneg %p233
    // Predicated region
    $region9: #{forward.5} parent=5 // pred_check
      _
    $region10: #{forward.5} parent=5 // pred_check_branch
      %236 = sbr.rel (%p233) target = $region12
    $region11: #{forward.5} parent=5 // pred_region
      %s237 = ssub.s32 %s14, 1
      // Predicated region
      $region13: #{forward.5} parent=11 // pred_check
        %p238 = pneg %p87
      $region14: #{forward.5} parent=11 // pred_check_branch
        %240 = sbr.rel (%p238) target = $region16
      $region15: #{forward.5} parent=11 // pred_region
        _
      $region16: #{forward.5} parent=11 // pred_fallthru
        _
      // Predicated region
      $region17: #{forward.5} parent=11 // pred_check
        %p241 = pneg %p134
      $region18: #{forward.5} parent=11 // pred_check_branch
        %243 = sbr.rel (%p241) target = $region20
      $region19: #{forward.5} parent=11 // pred_region
        _
      $region20: #{forward.5} parent=11 // pred_fallthru
        _
      // Predicated region
      $region21: #{forward.5} parent=11 // pred_check
        %p244 = pneg %p155
      $region22: #{forward.5} parent=11 // pred_check_branch
        %246 = sbr.rel (%p244) target = $region24
      $region23: #{forward.5} parent=11 // pred_region
        _
      $region24: #{forward.5} parent=11 // pred_fallthru
        _
      // Predicated region
      $region25: #{forward.5} parent=11 // pred_check
        %p247 = pneg %p176
      $region26: #{forward.5} parent=11 // pred_check_branch
        %249 = sbr.rel (%p247) target = $region28
      $region27: #{forward.5} parent=11 // pred_region
        _
      $region28: #{forward.5} parent=11 // pred_fallthru
        _
      // Predicated region
      $region29: #{forward.5} parent=11 // pred_check
        %p250 = pneg %p197
      $region30: #{forward.5} parent=11 // pred_check_branch
        %252 = sbr.rel (%p250) target = $region32
      $region31: #{forward.5} parent=11 // pred_region
        _
      $region32: #{forward.5} parent=11 // pred_fallthru
        _
    $region12: #{forward.5} parent=5 // pred_fallthru
      _
    %p253 = scmp.lt.s32.totalorder %s14, 2
    // Predicated region
    $region33: #{forward.5} parent=5 // pred_check
      %p254 = pneg %p253
    $region34: #{forward.5} parent=5 // pred_check_branch
      %256 = sbr.rel (%p254) target = $region36
    $region35: #{forward.5} parent=5 // pred_region
      // Predicated region
      $region37: #{forward.5} parent=35 // pred_check
        %p257 = pneg %p34
      $region38: #{forward.5} parent=35 // pred_check_branch
        %259 = sbr.rel (%p257) target = $region40
      $region39: #{forward.5} parent=35 // pred_region
        %p260 = scmp.lt.s32.totalorder %s14, 1
        %s261 = scalar_select %p260, %s14, 1
        %s262 = smul.addr %s261, 2
        %s263 = smul.addr %s262, 4
        %s264 = scalar_lea.vmem %s0, %s263
      $region40: #{forward.5} parent=35 // pred_fallthru
        _
      // Predicated region
      $region41: #{forward.5} parent=35 // pred_check
        %p265 = pneg %p60
      $region42: #{forward.5} parent=35 // pred_check_branch
        %267 = sbr.rel (%p265) target = $region44
      $region43: #{forward.5} parent=35 // pred_region
        %p268 = scmp.lt.s32.totalorder %s14, 1
        %s269 = scalar_select %p268, %s14, 1
        %s270 = smul.addr %s269, 2
        %s271 = smul.addr %s270, 4
        %s272 = scalar_lea.vmem %s1, %s271
      $region44: #{forward.5} parent=35 // pred_fallthru
        _
      // Predicated region
      $region45: #{forward.5} parent=35 // pred_check
        %p273 = pneg %p107
      $region46: #{forward.5} parent=35 // pred_check_branch
        %275 = sbr.rel (%p273) target = $region48
      $region47: #{forward.5} parent=35 // pred_region
        %p276 = scmp.lt.s32.totalorder %s14, 1
        %s277 = scalar_select %p276, %s14, 1
        %s278 = scalar_lea.vmem %s3, %s277
      $region48: #{forward.5} parent=35 // pred_fallthru
        _
    $region36: #{forward.5} parent=5 // pred_fallthru
      _
    %p279 = scmp.le.s32.totalorder 1, %s14
    %p280 = scmp.lt.s32.totalorder %s14, 3
    %p281 = pnand %p279, %p280
    %p282 = pneg %p281
    // Predicated region
    $region49: #{forward.5} parent=5 // pred_check
      _
    $region50: #{forward.5} parent=5 // pred_check_branch
      %284 = sbr.rel (%p281) target = $region52
    $region51: #{forward.5} parent=5 // pred_region
      %s285 = ssub.s32 %s14, 1
      %p286 = scmp.lt.s32.totalorder %s19, 1
      %s287 = scalar_select %p286, %s19, 1
      %s288 = smul.addr %s287, 2
      %s289 = smul.addr %s288, 4
      %s290 = scalar_lea.vmem %s0, %s289
      %p291 = pneg %p40
      %p292 = pneg %p37
      %p293 = scmp.lt.s32.totalorder %s19, 1
      %s294 = scalar_select %p293, %s19, 1
      %s295 = smul.addr %s294, 2
      %s296 = smul.addr %s295, 4
      %s297 = scalar_lea.vmem %s1, %s296
      %p298 = pneg %p66
      %p299 = pneg %p63
      %p300 = pneg %p87
      %p301 = pneg %p84
      %p302 = scmp.lt.s32.totalorder %s19, 1
      %s303 = scalar_select %p302, %s19, 1
      %s304 = scalar_lea.vmem %s3, %s303
      %p305 = pneg %p113
      %p306 = pneg %p110
      %p307 = pneg %p134
      %p308 = pneg %p131
      %p309 = pneg %p155
      %p310 = pneg %p152
      %p311 = pneg %p176
      %p312 = pneg %p173
      %p313 = pneg %p197
      %p314 = pneg %p194
      %p315 = pneg %p223
      %p316 = pneg %p220
      %p317 = scmp.lt.s32.totalorder %s19, 1
      %s318 = scalar_select %p317, %s19, 1
      %s319 = smul.addr %s318, 2
      %s320 = smul.addr %s319, 8
      %s321 = scalar_lea.vmem %s8, %s320
      %p322 = scmp.lt.s32.totalorder %s19, 1
      %s323 = scalar_select %p322, %s19, 1
      %s324 = smul.addr %s323, 2
      %s325 = smul.addr %s324, 4
      %s326 = scalar_lea.vmem %s0, %s325
      %p327 = scmp.lt.s32.totalorder %s19, 1
      %s328 = scalar_select %p327, %s19, 1
      %s329 = smul.addr %s328, 2
      %s330 = smul.addr %s329, 4
      %s331 = scalar_lea.vmem %s1, %s330
      %p332 = scmp.lt.s32.totalorder %s19, 1
      %s333 = scalar_select %p332, %s19, 1
      %s334 = scalar_lea.vmem %s3, %s333
      %p335 = scmp.lt.s32.totalorder %s19, 1
      %s336 = scalar_select %p335, %s19, 1
      %s337 = smul.addr %s336, 2
      %s338 = smul.addr %s337, 8
      %s339 = scalar_lea.vmem %s8, %s338
      %v341 = vld [vmem:[%s326] sm:$0xf]
      %v342 = vld [vmem:[%s326 + $0x4] sm:$0xf]
      %v343 = vunpack.c.l.bf16 %v341
      %v344 = vunpack.c.l.bf16 %v342
      %v345 = vld [vmem:[%s331] sm:$0xf]
      %v346 = vld [vmem:[%s331 + $0x4] sm:$0xf]
      %v347 = vunpack.c.l.bf16 %v345
      %v348 = vunpack.c.l.bf16 %v346
      %v349 = vld [vmem:[%s2] sm:$0xff]
      %v350 = vld [vmem:[%s2 + $0x8] sm:$0xff]
      %v351 = vadd.f32 %v347, %v349
      %v352 = vadd.f32 %v348, %v350
      %v353 = vld [vmem:[%s334] sm:$0x1]
      %v354 = vld [vmem:[%s5] sm:$0x1]
      %v355 = vld [vmem:[%s4] sm:$0x1]
      %357 = vset.pattern.permute.xlu0 0
      %358 = vperm.xlu0 %357, %v353
      %v359 = vpop.permute.xlu0 %358
      %v361 = vlaneseq
      %v362 = vshrl.u32 %v361, 7
      %v363 = vsub.s32 0, %v362
      %v364 = vrot.slane %v359, %v363
      %v365 = vmul.f32 %v364, %v355
      %v366 = vadd.f32 %v354, %v365
      %v367 = vld [vmem:[%s4 + $0x1] sm:$0x1]
      %368 = vset.pattern.permute.xlu0 1
      %369 = vperm.xlu0 %368, %v353
      %v370 = vpop.permute.xlu0 %369
      %v372 = vlaneseq
      %v373 = vshrl.u32 %v372, 7
      %v374 = vsub.s32 0, %v373
      %v375 = vrot.slane %v370, %v374
      %v376 = vmul.f32 %v375, %v367
      %v377 = vadd.f32 %v366, %v376
      %v378 = vld [vmem:[%s4 + $0x2] sm:$0x1]
      %379 = vset.pattern.permute.xlu0 2
      %380 = vperm.xlu0 %379, %v353
      %v381 = vpop.permute.xlu0 %380
      %v383 = vlaneseq
      %v384 = vshrl.u32 %v383, 7
      %v385 = vsub.s32 0, %v384
      %v386 = vrot.slane %v381, %v385
      %v387 = vmul.f32 %v386, %v378
      %v388 = vadd.f32 %v377, %v387
      %v389 = vld [vmem:[%s4 + $0x3] sm:$0x1]
      %390 = vset.pattern.permute.xlu0 3
      %391 = vperm.xlu0 %390, %v353
      %v392 = vpop.permute.xlu0 %391
      %v394 = vlaneseq
      %v395 = vshrl.u32 %v394, 7
      %v396 = vsub.s32 0, %v395
      %v397 = vrot.slane %v392, %v396
      %v398 = vmul.f32 %v397, %v389
      %v399 = vadd.f32 %v388, %v398
      %vm400 = vcmask 261120
      %v401 = vsel %vm400, %v343, 0.0
      %v402 = vsel %vm400, %v344, 0.0
      %v403 = vadd.f32 %v401, %v402
      %v404 = vrot.slane %v403, 4
      %v405 = vadd.f32 %v403, %v404
      %v406 = vrot.slane %v405, 2
      %v407 = vadd.f32 %v405, %v406
      %v408 = vrot.slane %v407, 1
      %v409 = vadd.f32 %v407, %v408
      %v410 = vrcp.pop 16.0
      %v411 = vmul.f32 %v409, %v410
      %v412 = vadd.f32 %v411, %v399
      %v413 = vlaneseq
      %v414 = vshrl.u32 %v413, 7
      %v415 = vsub.s32 0, %v414
      %v416 = vrot.slane %v412, %v415
      %v417 = vmul.f32 %v351, %v416
      %v418 = vmul.f32 %v352, %v416
      %v419 = vsel %vm400, %v417, 0.0
      %420 = vadd.xlane.f32.xlu0 %v419
      %v421 = vpop.xlane.xlu0 %420
      %v422 = vsel %vm400, %v418, 0.0
      %423 = vadd.xlane.f32.xlu0 %v422
      %v424 = vpop.xlane.xlu0 %423
      %v425 = vpack.c.bf16 %v352, %v351
      %v426 = vld [vmem:[%s6] sm:$0xf]
      %v427 = vld [vmem:[%s6 + $0x4] sm:$0xf]
      %v428 = vld [vmem:[%s6 + $0x8] sm:$0xf]
      %v429 = vld [vmem:[%s6 + $0xc] sm:$0xf]
      %v430 = vld [vmem:[%s7] sm:$0x1]
      %v432 = vlaneseq
      %v433 = vshrl.u32 %v432, 7
      %v434 = vsub.s32 0, %v433
      %v435 = vrot.slane %v430, %v434
      %v441 = vunpack.c.l.b16 %v426
      %v442 = vunpack.c.l.b16 %v427
      %v443 = vunpack.c.l.b16 %v428
      %v444 = vunpack.c.l.b16 %v429
      %v445 = vpack.c.b16 %v442, %v441
      %v446 = vpack.c.b16 %v444, %v443
      %v450 = vsel %vm400, %v425, 0
      %452 = vmatprep.subr.bf16.mxu0 0
      %453 = vmatpush1.bf16.msra.mxu0 %v445
      %454 = vmatprep.subr.bf16.mxu0 0
      %455 = vmatpush1.bf16.msra.mxu0 %v446
      %456 = vmatprep.subr.bf16.mxu0 0
      %457 = vmatpush1.bf16.msra.mxu0 0
      %458 = vmatprep.subr.bf16.mxu0 0
      %459 = vmatpush1.bf16.msra.mxu0 0
      %460 = vmatprep.subr.bf16.mxu0 0
      %461 = vmatpush1.bf16.msra.mxu0 0
      %462 = vmatprep.subr.bf16.mxu0 0
      %463 = vmatpush1.bf16.msra.mxu0 0
      %464 = vmatprep.subr.bf16.mxu0 0
      %465 = vmatpush1.bf16.msra.mxu0 0
      %466 = vmatprep.subr.bf16.mxu0 0
      %467 = vmatpush1.bf16.msra.mxu0 0
      %468 = vmatprep.subr.bf16.mxu0 0
      %469 = vmatpush1.bf16.msra.mxu0 0
      %470 = vmatprep.subr.bf16.mxu0 0
      %471 = vmatpush1.bf16.msra.mxu0 0
      %472 = vmatprep.subr.bf16.mxu0 0
      %473 = vmatpush1.bf16.msra.mxu0 0
      %474 = vmatprep.subr.bf16.mxu0 0
      %475 = vmatpush1.bf16.msra.mxu0 0
      %476 = vmatprep.subr.bf16.mxu0 0
      %477 = vmatpush1.bf16.msra.mxu0 0
      %478 = vmatprep.subr.bf16.mxu0 0
      %479 = vmatpush1.bf16.msra.mxu0 0
      %480 = vmatprep.subr.bf16.mxu0 0
      %481 = vmatpush1.bf16.msra.mxu0 0
      %482 = vmatprep.subr.bf16.mxu0 0
      %483 = vmatpush1.bf16.msra.mxu0 0
      %484 = vmatprep.mubr.bf16.mxu0 0
      %485 = vmatmul.mubr.bf16.gmra.mrb[0].mxu0 %v450
      %v486 = vpop.f32.mrb[0].mxu0
      %v487 = vadd.f32 %v435, %v486
      %v488 = vpop.f32.mrb[0].mxu0
      %v489 = vpop.f32.mrb[0].mxu0
      %v490 = vadd.f32 %v435, %v489
      %v491 = vpop.f32.mrb[0].mxu0
      %492 = vdwg.mxu0
      %v493 = vlaneseq
      %v494 = vand.u32 %v493, 127
      %vm495 = vcmp.eq.s32.totalorder %v494, 4
      %v496 = vsel %vm495, %v421, 0.0
      %v497 = vsel %vm495, %v424, 0.0
      %v498 = vadd.f32 %v487, %v496
      %v499 = vadd.f32 %v490, %v497
      %500 = vst [vmem:[%s339] sm:$0xff] %v498
      %501 = vst [vmem:[%s339 + $0x8] sm:$0xff] %v499
      %p502 = scmp.lt.s32.totalorder %s19, 1
      %s503 = scalar_select %p502, %s19, 1
      %s504 = smul.addr %s503, 2
      %s505 = smul.addr %s504, 8
      %s506 = scalar_lea.vmem %s8, %s505
      // Predicated region
      $region53: #{forward.5} parent=51 // pred_check
        %p507 = pneg %p220
      $region54: #{forward.5} parent=51 // pred_check_branch
        %509 = sbr.rel (%p507) target = $region56
      $region55: #{forward.5} parent=51 // pred_region
        _
      $region56: #{forward.5} parent=51 // pred_fallthru
        _
    $region52: #{forward.5} parent=5 // pred_fallthru
      _
    %p510 = scmp.le.s32.totalorder 2, %s14
    // Predicated region
    $region57: #{forward.5} parent=5 // pred_check
      %p511 = pneg %p510
    $region58: #{forward.5} parent=5 // pred_check_branch
      %513 = sbr.rel (%p511) target = $region60
    $region59: #{forward.5} parent=5 // pred_region
      %s514 = ssub.s32 %s14, 2
      // Predicated region
      $region61: #{forward.5} parent=59 // pred_check
        %p515 = pneg %p226
      $region62: #{forward.5} parent=59 // pred_check_branch
        %517 = sbr.rel (%p515) target = $region64
      $region63: #{forward.5} parent=59 // pred_region
        %p518 = scmp.lt.s32.totalorder %s20, 1
        %s519 = scalar_select %p518, %s20, 1
        %s520 = smul.addr %s519, 2
        %s521 = smul.addr %s520, 8
        %s522 = scalar_lea.vmem %s8, %s521
      $region64: #{forward.5} parent=59 // pred_fallthru
        _
    $region60: #{forward.5} parent=5 // pred_fallthru
      _
  $region6: #{forward.5} parent=0 // loop_footer
    %s18 = sadd.s32 1, %s14
  $region7: #{forward.5} parent=0 // loop_footer_branch
    %13 = sbr.rel target = $region3
  $region8: #{forward.5} parent=0 // loop_exit
    _

// kernel: forward.3
$region0: #{forward.3}
  #allocation0 [shape = 'u32[]', space=smem, size = 0x4, offset = 0x4, fixed_abs, tag = 'smem constant byte address 0x4 - core index']
  #allocation1 [shape = 'u32[144,128]{1,0:T(1,128)}', space=vmem, size = 0x12000, scoped, tag = 'internal scratch']
  %s0 = inlined_call_operand.vmem [shape: bf16[2,32,192], index: 0, kind: input, shape index: {}]
  %s1 = inlined_call_operand.vmem [shape: bf16[192,32], index: 1, kind: input, shape index: {}]
  %s2 = inlined_call_operand.vmem [shape: f32[1,32], index: 2, kind: input, shape index: {}]
  %s3 = inlined_call_operand.vmem [shape: f32[1,32,32], index: 3, kind: input, shape index: {}]
  %s4 = inlined_call_operand.vmem [shape: bf16[2,32,32], index: 4, kind: output, shape index: {}]
  %s5 = sld [smem:[#allocation0]]
  $region49: #{forward.3} parent=0
    _
  %s7 = ssub.s32 1, %s5
  %s8 = scalar_select 0, %s7, %s5
  loop: start=0, step=1, limit=4
  $region2: #{forward.3} parent=0 // loop_pre_header
    _
  $region3: #{forward.3} parent=0 // loop_header
    %s10 = sphi 0, %s14
    %p11 = scmp.ge.s32.totalorder %s10, 4
    %s20 = sphi 0, %s22
    %s23 = sphi 0, %s20
    %s24 = sphi 0, %s23
    %s40 = sphi 0, %s24
    %s44 = sphi 0, %s44
    %s46 = sphi 0, %s44
    %s47 = sphi 0, %s46
    %s61 = sphi 0, %s47
    %s65 = sphi 0, %s65
    %s67 = sphi 0, %s65
    %s68 = sphi 0, %s67
    %s82 = sphi 0, %s68
    %s86 = sphi 0, %s86
    %s88 = sphi 0, %s86
    %s89 = sphi 0, %s88
    %s103 = sphi 0, %s89
    %s109 = sphi 0, %s111
    %s112 = sphi 0, %s109
    %s113 = sphi 0, %s112
    %s129 = sphi 0, %s113
  $region4: #{forward.3} parent=0 // loop_header_branch
    %13 = sbr.rel (%p11) target = $region8
  $region5: #{forward.3} parent=0 // loop_body
    %s15 = ssub.s32 %s10, 1
    %s16 = ssub.s32 %s10, 2
    %s17 = sadd.s32 %s10, 1
    %s18 = ssub.s32 %s10, %s17
    %p19 = scmp.eq.s32.totalorder %s18, 0
    %s21 = sadd.s32 %s20, 1
    %s22 = scalar_select %p19, %s20, %s21
    %p25 = pneg %p19
    %p26 = scmp.eq.s32.totalorder %s10, 1
    %p27 = por %p25, %p26
    %p28 = scmp.ne.s32.totalorder %s20, %s23
    %p29 = scmp.eq.s32.totalorder %s10, 0
    %p30 = por %p28, %p29
    %p31 = scmp.ne.s32.totalorder %s20, %s23
    %p32 = scmp.eq.s32.totalorder %s15, 1
    %p33 = por %p31, %p32
    %p34 = scmp.ne.s32.totalorder %s23, %s24
    %p35 = scmp.eq.s32.totalorder %s15, 0
    %p36 = por %p34, %p35
    %p37 = scmp.ne.s32.totalorder %s23, %s24
    %p38 = scmp.eq.s32.totalorder %s16, 1
    %p39 = por %p37, %p38
    %p41 = scmp.ne.s32.totalorder %s24, %s40
    %p42 = scmp.eq.s32.totalorder %s16, 0
    %p43 = por %p41, %p42
    %s45 = sadd.s32 %s44, 1
    %p48 = scmp.eq.s32.totalorder %s10, 1
    %p49 = scmp.ne.s32.totalorder %s44, %s46
    %p50 = scmp.eq.s32.totalorder %s10, 0
    %p51 = por %p49, %p50
    %p52 = scmp.ne.s32.totalorder %s44, %s46
    %p53 = scmp.eq.s32.totalorder %s15, 1
    %p54 = por %p52, %p53
    %p55 = scmp.ne.s32.totalorder %s46, %s47
    %p56 = scmp.eq.s32.totalorder %s15, 0
    %p57 = por %p55, %p56
    %p58 = scmp.ne.s32.totalorder %s46, %s47
    %p59 = scmp.eq.s32.totalorder %s16, 1
    %p60 = por %p58, %p59
    %p62 = scmp.ne.s32.totalorder %s47, %s61
    %p63 = scmp.eq.s32.totalorder %s16, 0
    %p64 = por %p62, %p63
    %s66 = sadd.s32 %s65, 1
    %p69 = scmp.eq.s32.totalorder %s10, 1
    %p70 = scmp.ne.s32.totalorder %s65, %s67
    %p71 = scmp.eq.s32.totalorder %s10, 0
    %p72 = por %p70, %p71
    %p73 = scmp.ne.s32.totalorder %s65, %s67
    %p74 = scmp.eq.s32.totalorder %s15, 1
    %p75 = por %p73, %p74
    %p76 = scmp.ne.s32.totalorder %s67, %s68
    %p77 = scmp.eq.s32.totalorder %s15, 0
    %p78 = por %p76, %p77
    %p79 = scmp.ne.s32.totalorder %s67, %s68
    %p80 = scmp.eq.s32.totalorder %s16, 1
    %p81 = por %p79, %p80
    %p83 = scmp.ne.s32.totalorder %s68, %s82
    %p84 = scmp.eq.s32.totalorder %s16, 0
    %p85 = por %p83, %p84
    %s87 = sadd.s32 %s86, 1
    %p90 = scmp.eq.s32.totalorder %s10, 1
    %p91 = scmp.ne.s32.totalorder %s86, %s88
    %p92 = scmp.eq.s32.totalorder %s10, 0
    %p93 = por %p91, %p92
    %p94 = scmp.ne.s32.totalorder %s86, %s88
    %p95 = scmp.eq.s32.totalorder %s15, 1
    %p96 = por %p94, %p95
    %p97 = scmp.ne.s32.totalorder %s88, %s89
    %p98 = scmp.eq.s32.totalorder %s15, 0
    %p99 = por %p97, %p98
    %p100 = scmp.ne.s32.totalorder %s88, %s89
    %p101 = scmp.eq.s32.totalorder %s16, 1
    %p102 = por %p100, %p101
    %p104 = scmp.ne.s32.totalorder %s89, %s103
    %p105 = scmp.eq.s32.totalorder %s16, 0
    %p106 = por %p104, %p105
    %s107 = ssub.s32 %s10, %s17
    %p108 = scmp.eq.s32.totalorder %s107, 0
    %s110 = sadd.s32 %s109, 1
    %s111 = scalar_select %p108, %s109, %s110
    %p114 = pneg %p108
    %p115 = scmp.eq.s32.totalorder %s10, 1
    %p116 = por %p114, %p115
    %p117 = scmp.ne.s32.totalorder %s109, %s112
    %p118 = scmp.eq.s32.totalorder %s10, 0
    %p119 = por %p117, %p118
    %p120 = scmp.ne.s32.totalorder %s109, %s112
    %p121 = scmp.eq.s32.totalorder %s15, 1
    %p122 = por %p120, %p121
    %p123 = scmp.ne.s32.totalorder %s112, %s113
    %p124 = scmp.eq.s32.totalorder %s15, 0
    %p125 = por %p123, %p124
    %p126 = scmp.ne.s32.totalorder %s112, %s113
    %p127 = scmp.eq.s32.totalorder %s16, 1
    %p128 = por %p126, %p127
    %p130 = scmp.ne.s32.totalorder %s113, %s129
    %p131 = scmp.eq.s32.totalorder %s16, 0
    %p132 = por %p130, %p131
    %p133 = scmp.le.s32.totalorder 1, %s10
    %p134 = scmp.lt.s32.totalorder %s10, 3
    %p135 = pnand %p133, %p134
    %p136 = pneg %p135
    // Predicated region
    $region9: #{forward.3} parent=5 // pred_check
      _
    $region10: #{forward.3} parent=5 // pred_check_branch
      %138 = sbr.rel (%p135) target = $region12
    $region11: #{forward.3} parent=5 // pred_region
      %s139 = ssub.s32 %s10, 1
      // Predicated region
      $region13: #{forward.3} parent=11 // pred_check
        %p140 = pneg %p57
      $region14: #{forward.3} parent=11 // pred_check_branch
        %142 = sbr.rel (%p140) target = $region16
      $region15: #{forward.3} parent=11 // pred_region
        _
      $region16: #{forward.3} parent=11 // pred_fallthru
        _
      // Predicated region
      $region17: #{forward.3} parent=11 // pred_check
        %p143 = pneg %p78
      $region18: #{forward.3} parent=11 // pred_check_branch
        %145 = sbr.rel (%p143) target = $region20
      $region19: #{forward.3} parent=11 // pred_region
        _
      $region20: #{forward.3} parent=11 // pred_fallthru
        _
      // Predicated region
      $region21: #{forward.3} parent=11 // pred_check
        %p146 = pneg %p99
      $region22: #{forward.3} parent=11 // pred_check_branch
        %148 = sbr.rel (%p146) target = $region24
      $region23: #{forward.3} parent=11 // pred_region
        _
      $region24: #{forward.3} parent=11 // pred_fallthru
        _
    $region12: #{forward.3} parent=5 // pred_fallthru
      _
    %p149 = scmp.lt.s32.totalorder %s10, 2
    // Predicated region
    $region25: #{forward.3} parent=5 // pred_check
      %p150 = pneg %p149
    $region26: #{forward.3} parent=5 // pred_check_branch
      %152 = sbr.rel (%p150) target = $region28
    $region27: #{forward.3} parent=5 // pred_region
      // Predicated region
      $region29: #{forward.3} parent=27 // pred_check
        %p153 = pneg %p30
      $region30: #{forward.3} parent=27 // pred_check_branch
        %155 = sbr.rel (%p153) target = $region32
      $region31: #{forward.3} parent=27 // pred_region
        %p156 = scmp.lt.s32.totalorder %s10, 1
        %s157 = scalar_select %p156, %s10, 1
        %s158 = smul.addr %s157, 8
        %s159 = smul.addr %s158, 4
        %s160 = scalar_lea.vmem %s0, %s159
      $region32: #{forward.3} parent=27 // pred_fallthru
        _
    $region28: #{forward.3} parent=5 // pred_fallthru
      _
    %p161 = scmp.le.s32.totalorder 1, %s10
    %p162 = scmp.lt.s32.totalorder %s10, 3
    %p163 = pnand %p161, %p162
    %p164 = pneg %p163
    // Predicated region
    $region33: #{forward.3} parent=5 // pred_check
      _
    $region34: #{forward.3} parent=5 // pred_check_branch
      %166 = sbr.rel (%p163) target = $region36
    $region35: #{forward.3} parent=5 // pred_region
      %s167 = ssub.s32 %s10, 1
      %p168 = scmp.lt.s32.totalorder %s15, 1
      %s169 = scalar_select %p168, %s15, 1
      %s170 = smul.addr %s169, 8
      %s171 = smul.addr %s170, 4
      %s172 = scalar_lea.vmem %s0, %s171
      %p173 = pneg %p36
      %p174 = pneg %p33
      %p175 = pneg %p57
      %p176 = pneg %p54
      %p177 = pneg %p78
      %p178 = pneg %p75
      %p179 = pneg %p99
      %p180 = pneg %p96
      %p181 = pneg %p125
      %p182 = pneg %p122
      %p183 = scmp.lt.s32.totalorder %s15, 1
      %s184 = scalar_select %p183, %s15, 1
      %s185 = smul.addr %s184, 4
      %s186 = smul.addr %s185, 4
      %s187 = scalar_lea.vmem %s4, %s186
      %p188 = scmp.lt.s32.totalorder %s15, 1
      %s189 = scalar_select %p188, %s15, 1
      %s190 = smul.addr %s189, 8
      %s191 = smul.addr %s190, 4
      %s192 = scalar_lea.vmem %s0, %s191
      %p193 = scmp.lt.s32.totalorder %s15, 1
      %s194 = scalar_select %p193, %s15, 1
      %s195 = smul.addr %s194, 4
      %s196 = smul.addr %s195, 4
      %s197 = scalar_lea.vmem %s4, %s196
      %v199 = vld [vmem:[%s192] sm:$0xff]
      %v200 = vld [vmem:[%s192 + $0x8] sm:$0xff]
      %v201 = vld [vmem:[%s192 + $0x10] sm:$0xff]
      %v202 = vld [vmem:[%s192 + $0x18] sm:$0xff]
      %v203 = vld [vmem:[%s1] sm:$0xf]
      %v204 = vld [vmem:[%s1 + $0x4] sm:$0xf]
      %v205 = vld [vmem:[%s1 + $0x8] sm:$0xf]
      %v206 = vld [vmem:[%s1 + $0xc] sm:$0xf]
      %v207 = vld [vmem:[%s1 + $0x10] sm:$0xf]
      %v208 = vld [vmem:[%s1 + $0x14] sm:$0xf]
      %v209 = vld [vmem:[%s1 + $0x18] sm:$0xf]
      %v210 = vld [vmem:[%s1 + $0x1c] sm:$0xf]
      %v211 = vld [vmem:[%s1 + $0x20] sm:$0xf]
      %v212 = vld [vmem:[%s1 + $0x24] sm:$0xf]
      %v213 = vld [vmem:[%s1 + $0x28] sm:$0xf]
      %v214 = vld [vmem:[%s1 + $0x2c] sm:$0xf]
      %v215 = vld [vmem:[%s1 + $0x30] sm:$0xf]
      %v216 = vld [vmem:[%s1 + $0x34] sm:$0xf]
      %v217 = vld [vmem:[%s1 + $0x38] sm:$0xf]
      %v218 = vld [vmem:[%s1 + $0x3c] sm:$0xf]
      %v219 = vld [vmem:[%s1 + $0x40] sm:$0xf]
      %v220 = vld [vmem:[%s1 + $0x44] sm:$0xf]
      %v221 = vld [vmem:[%s1 + $0x48] sm:$0xf]
      %v222 = vld [vmem:[%s1 + $0x4c] sm:$0xf]
      %v223 = vld [vmem:[%s1 + $0x50] sm:$0xf]
      %v224 = vld [vmem:[%s1 + $0x54] sm:$0xf]
      %v225 = vld [vmem:[%s1 + $0x58] sm:$0xf]
      %v226 = vld [vmem:[%s1 + $0x5c] sm:$0xf]
      %v227 = vld [vmem:[%s2] sm:$0x1]
      %v229 = vlaneseq
      %v230 = vshrl.u32 %v229, 7
      %v231 = vsub.s32 0, %v230
      %v232 = vrot.slane %v227, %v231
      %v238 = vunpack.c.l.b16 %v199
      %v239 = vunpack.c.h.b16 %v199
      %v240 = vunpack.c.l.b16 %v200
      %v241 = vunpack.c.h.b16 %v200
      %v242 = vunpack.c.l.b16 %v201
      %v243 = vunpack.c.h.b16 %v201
      %v244 = vunpack.c.l.b16 %v202
      %v245 = vunpack.c.h.b16 %v202
      %v246 = vpack.c.b16 %v240, %v238
      %v247 = vpack.c.b16 %v241, %v239
      %v248 = vpack.c.b16 %v244, %v242
      %v249 = vpack.c.b16 %v245, %v243
      %v276 = vunpack.c.l.b16 %v203
      %v277 = vunpack.c.l.b16 %v204
      %v278 = vunpack.c.l.b16 %v205
      %v279 = vunpack.c.l.b16 %v206
      %v280 = vunpack.c.l.b16 %v207
      %v281 = vunpack.c.l.b16 %v208
      %v282 = vunpack.c.l.b16 %v209
      %v283 = vunpack.c.l.b16 %v210
      %v284 = vunpack.c.l.b16 %v211
      %v285 = vunpack.c.l.b16 %v212
      %v286 = vunpack.c.l.b16 %v213
      %v287 = vunpack.c.l.b16 %v214
      %v288 = vunpack.c.l.b16 %v215
      %v289 = vunpack.c.l.b16 %v216
      %v290 = vunpack.c.l.b16 %v217
      %v291 = vunpack.c.l.b16 %v218
      %v292 = vunpack.c.l.b16 %v219
      %v293 = vunpack.c.l.b16 %v220
      %v294 = vunpack.c.l.b16 %v221
      %v295 = vunpack.c.l.b16 %v222
      %v296 = vunpack.c.l.b16 %v223
      %v297 = vunpack.c.l.b16 %v224
      %v298 = vunpack.c.l.b16 %v225
      %v299 = vunpack.c.l.b16 %v226
      %v300 = vpack.c.b16 %v277, %v276
      %v301 = vpack.c.b16 %v279, %v278
      %v302 = vpack.c.b16 %v281, %v280
      %v303 = vpack.c.b16 %v283, %v282
      %v304 = vpack.c.b16 %v285, %v284
      %v305 = vpack.c.b16 %v287, %v286
      %v306 = vpack.c.b16 %v289, %v288
      %v307 = vpack.c.b16 %v291, %v290
      %v308 = vpack.c.b16 %v293, %v292
      %v309 = vpack.c.b16 %v295, %v294
      %v310 = vpack.c.b16 %v297, %v296
      %v311 = vpack.c.b16 %v299, %v298
      %vm324 = vcmask 523264
      %v326 = vsel %vm324, %v247, 0
      %v329 = vsel %vm324, %v249, 0
      %331 = vmatprep.subr.bf16.mxu0 0
      %332 = vmatpush1.bf16.msra.mxu0 %v300
      %333 = vmatprep.subr.bf16.mxu0 0
      %334 = vmatpush1.bf16.msra.mxu0 %v301
      %335 = vmatprep.subr.bf16.mxu0 0
      %336 = vmatpush1.bf16.msra.mxu0 %v302
      %337 = vmatprep.subr.bf16.mxu0 0
      %338 = vmatpush1.bf16.msra.mxu0 %v303
      %339 = vmatprep.subr.bf16.mxu0 0
      %340 = vmatpush1.bf16.msra.mxu0 %v304
      %341 = vmatprep.subr.bf16.mxu0 0
      %342 = vmatpush1.bf16.msra.mxu0 %v305
      %343 = vmatprep.subr.bf16.mxu0 0
      %344 = vmatpush1.bf16.msra.mxu0 %v306
      %345 = vmatprep.subr.bf16.mxu0 0
      %346 = vmatpush1.bf16.msra.mxu0 %v307
      %347 = vmatprep.subr.bf16.mxu0 0
      %348 = vmatpush1.bf16.msra.mxu0 %v308
      %349 = vmatprep.subr.bf16.mxu0 0
      %350 = vmatpush1.bf16.msra.mxu0 %v309
      %351 = vmatprep.subr.bf16.mxu0 0
      %352 = vmatpush1.bf16.msra.mxu0 %v310
      %353 = vmatprep.subr.bf16.mxu0 0
      %354 = vmatpush1.bf16.msra.mxu0 %v311
      %355 = vmatprep.subr.bf16.mxu0 0
      %356 = vmatpush1.bf16.msra.mxu0 0
      %357 = vmatprep.subr.bf16.mxu0 0
      %358 = vmatpush1.bf16.msra.mxu0 0
      %359 = vmatprep.subr.bf16.mxu0 0
      %360 = vmatpush1.bf16.msra.mxu0 0
      %361 = vmatprep.subr.bf16.mxu0 0
      %362 = vmatpush1.bf16.msra.mxu0 0
      %363 = vmatprep.mubr.bf16.mxu0 %v326
      %364 = vmatmul.mubr.bf16.gmra.mrb[0].mxu0 %v246
      %v365 = vpop.f32.mrb[0].mxu0
      %v366 = vadd.f32 %v232, %v365
      %v367 = vpop.f32.mrb[0].mxu0
      %v368 = vpop.f32.mrb[0].mxu0
      %v369 = vadd.f32 %v232, %v368
      %v370 = vpop.f32.mrb[0].mxu0
      %371 = vmatprep.mubr.bf16.mxu0 %v329
      %372 = vmatmul.mubr.bf16.gmra.mrb[0].mxu0 %v248
      %v373 = vpop.f32.mrb[0].mxu0
      %v374 = vadd.f32 %v232, %v373
      %v375 = vpop.f32.mrb[0].mxu0
      %v376 = vpop.f32.mrb[0].mxu0
      %v377 = vadd.f32 %v232, %v376
      %v378 = vpop.f32.mrb[0].mxu0
      %379 = vdwg.mxu0
      %v380 = vld [vmem:[%s3] sm:$0xff]
      %v381 = vld [vmem:[%s3 + $0x8] sm:$0xff]
      %v382 = vld [vmem:[%s3 + $0x10] sm:$0xff]
      %v383 = vld [vmem:[%s3 + $0x18] sm:$0xff]
      %v384 = vadd.f32 %v366, %v380
      %v385 = vadd.f32 %v369, %v381
      %v386 = vadd.f32 %v374, %v382
      %v387 = vadd.f32 %v377, %v383
      %v388 = vpack.c.bf16 %v385, %v384
      %v389 = vpack.c.bf16 %v387, %v386
      %v392 = vunpack.c.l.b16 %v388
      %v393 = vunpack.c.h.b16 %v388
      %v394 = vunpack.c.l.b16 %v389
      %v395 = vunpack.c.h.b16 %v389
      %v396 = vpack.c.b16 %v392, %v392
      %v397 = vpack.c.b16 %v393, %v393
      %v398 = vpack.c.b16 %v394, %v394
      %v399 = vpack.c.b16 %v395, %v395
      %vm404 = vcmask 257024
      %405 = vst.msk [vmem:[%s197] sm:$0xf] %vm404, %v396
      %406 = vst.msk [vmem:[%s197 + $0x4] sm:$0xf] %vm404, %v397
      %407 = vst.msk [vmem:[%s197 + $0x8] sm:$0xf] %vm404, %v398
      %408 = vst.msk [vmem:[%s197 + $0xc] sm:$0xf] %vm404, %v399
      %p409 = scmp.lt.s32.totalorder %s15, 1
      %s410 = scalar_select %p409, %s15, 1
      %s411 = smul.addr %s410, 4
      %s412 = smul.addr %s411, 4
      %s413 = scalar_lea.vmem %s4, %s412
      // Predicated region
      $region37: #{forward.3} parent=35 // pred_check
        %p414 = pneg %p122
      $region38: #{forward.3} parent=35 // pred_check_branch
        %416 = sbr.rel (%p414) target = $region40
      $region39: #{forward.3} parent=35 // pred_region
        _
      $region40: #{forward.3} parent=35 // pred_fallthru
        _
    $region36: #{forward.3} parent=5 // pred_fallthru
      _
    %p417 = scmp.le.s32.totalorder 2, %s10
    // Predicated region
    $region41: #{forward.3} parent=5 // pred_check
      %p418 = pneg %p417
    $region42: #{forward.3} parent=5 // pred_check_branch
      %420 = sbr.rel (%p418) target = $region44
    $region43: #{forward.3} parent=5 // pred_region
      %s421 = ssub.s32 %s10, 2
      // Predicated region
      $region45: #{forward.3} parent=43 // pred_check
        %p422 = pneg %p128
      $region46: #{forward.3} parent=43 // pred_check_branch
        %424 = sbr.rel (%p422) target = $region48
      $region47: #{forward.3} parent=43 // pred_region
        %p425 = scmp.lt.s32.totalorder %s16, 1
        %s426 = scalar_select %p425, %s16, 1
        %s427 = smul.addr %s426, 4
        %s428 = smul.addr %s427, 4
        %s429 = scalar_lea.vmem %s4, %s428
      $region48: #{forward.3} parent=43 // pred_fallthru
        _
    $region44: #{forward.3} parent=5 // pred_fallthru
      _
  $region6: #{forward.3} parent=0 // loop_footer
    %s14 = sadd.s32 1, %s10
  $region7: #{forward.3} parent=0 // loop_footer_branch
    %9 = sbr.rel target = $region3
  $region8: #{forward.3} parent=0 // loop_exit
    _

// kernel: forward.4
$region0: #{forward.4}
  #allocation0 [shape = 'u32[]', space=smem, size = 0x4, offset = 0x4, fixed_abs, tag = 'smem constant byte address 0x4 - core index']
  #allocation1 [shape = 'u32[144,128]{1,0:T(1,128)}', space=vmem, size = 0x12000, scoped, tag = 'internal scratch']
  #allocation2 [shape = 'f32[32,32]{1,0:T(8,128)}', space=vmem, size = 0x4000, scoped, tag = 'scratch operand']
  %s0 = inlined_call_operand.vmem [shape: bf16[2,32,32], index: 0, kind: input, shape index: {}]
  %s1 = inlined_call_operand.vmem [shape: f32[2,1,32], index: 1, kind: input, shape index: {}, may-alias: {1,7}]
  %s2 = inlined_call_operand.vmem [shape: f32[2,1,32], index: 2, kind: input, shape index: {}, may-alias: {2,6,8,12}]
  %s3 = inlined_call_operand.vmem [shape: bf16[2,96,32], index: 3, kind: input, shape index: {}]
  %s4 = inlined_call_operand.vmem [shape: f32[2,96,1], index: 4, kind: input, shape index: {}]
  %s5 = inlined_call_operand.vmem [shape: bf16[2,32,32], index: 5, kind: input, shape index: {}]
  %s6 = inlined_call_operand.vmem [shape: f32[2,1,32], index: 6, kind: input, shape index: {}, may-alias: {2,6,8,12}]
  %s7 = inlined_call_operand.vmem [shape: f32[2,1,32], index: 7, kind: input, shape index: {}, may-alias: {1,7}]
  %s8 = inlined_call_operand.vmem [shape: f32[2,1,32], index: 8, kind: input, shape index: {}, may-alias: {2,6,8,12}]
  %s9 = inlined_call_operand.vmem [shape: bf16[2,32,64], index: 9, kind: input, shape index: {}]
  %s10 = inlined_call_operand.vmem [shape: f32[2,1,64], index: 10, kind: input, shape index: {}]
  %s11 = inlined_call_operand.vmem [shape: bf16[2,64,32], index: 11, kind: input, shape index: {}]
  %s12 = inlined_call_operand.vmem [shape: f32[2,1,32], index: 12, kind: input, shape index: {}, may-alias: {2,6,8,12}]
  %s13 = inlined_call_operand.vmem [shape: f32[1,32], index: 13, kind: input, shape index: {}]
  %s14 = inlined_call_operand.vmem [shape: f32[1,32], index: 14, kind: input, shape index: {}]
  %s15 = inlined_call_operand.vmem [shape: bf16[2,32,32], index: 15, kind: output, shape index: {}]
  %s16 = sld [smem:[#allocation0]]
  $region101: #{forward.4} parent=0
    _
  %s18 = ssub.s32 1, %s16
  %s19 = scalar_select 0, %s18, %s16
  loop: start=0, step=1, limit=6
  $region2: #{forward.4} parent=0 // loop_pre_header
    _
  $region3: #{forward.4} parent=0 // loop_header
    %s21 = sphi 0, %s25
    %p22 = scmp.ge.s32.totalorder %s21, 6
    %s28 = sphi 0, %s40
    %s29 = sphi 0, %s36
    %s30 = sphi 0, %s28
    %s31 = sphi 0, %s29
    %s32 = sphi 0, %s30
    %s33 = sphi 0, %s31
    %s43 = sphi 0, %s45
    %s46 = sphi 0, %s43
    %s47 = sphi 0, %s46
    %s63 = sphi 0, %s47
    %s69 = sphi 0, %s71
    %s72 = sphi 0, %s69
    %s73 = sphi 0, %s72
    %s89 = sphi 0, %s73
    %s95 = sphi 0, %s97
    %s98 = sphi 0, %s95
    %s99 = sphi 0, %s98
    %s115 = sphi 0, %s99
    %s121 = sphi 0, %s123
    %s124 = sphi 0, %s121
    %s125 = sphi 0, %s124
    %s141 = sphi 0, %s125
    %s147 = sphi 0, %s149
    %s150 = sphi 0, %s147
    %s151 = sphi 0, %s150
    %s167 = sphi 0, %s151
    %s173 = sphi 0, %s175
    %s176 = sphi 0, %s173
    %s177 = sphi 0, %s176
    %s193 = sphi 0, %s177
    %s199 = sphi 0, %s201
    %s202 = sphi 0, %s199
    %s203 = sphi 0, %s202
    %s219 = sphi 0, %s203
    %s225 = sphi 0, %s227
    %s228 = sphi 0, %s225
    %s229 = sphi 0, %s228
    %s245 = sphi 0, %s229
    %s251 = sphi 0, %s253
    %s254 = sphi 0, %s251
    %s255 = sphi 0, %s254
    %s271 = sphi 0, %s255
    %s277 = sphi 0, %s279
    %s280 = sphi 0, %s277
    %s281 = sphi 0, %s280
    %s297 = sphi 0, %s281
    %s303 = sphi 0, %s305
    %s306 = sphi 0, %s303
    %s307 = sphi 0, %s306
    %s323 = sphi 0, %s307
    %s329 = sphi 0, %s331
    %s332 = sphi 0, %s329
    %s333 = sphi 0, %s332
    %s349 = sphi 0, %s333
    %s355 = sphi 0, %s357
    %s358 = sphi 0, %s355
    %s359 = sphi 0, %s358
    %s375 = sphi 0, %s359
    %s379 = sphi 0, %s379
    %s381 = sphi 0, %s379
    %s382 = sphi 0, %s381
    %s396 = sphi 0, %s382
    %s400 = sphi 0, %s400
    %s402 = sphi 0, %s400
    %s403 = sphi 0, %s402
    %s417 = sphi 0, %s403
    %s423 = sphi 0, %s425
    %s426 = sphi 0, %s423
    %s427 = sphi 0, %s426
    %s443 = sphi 0, %s427
  $region4: #{forward.4} parent=0 // loop_header_branch
    %24 = sbr.rel (%p22) target = $region8
  $region5: #{forward.4} parent=0 // loop_body
    %s26 = ssub.s32 %s21, 1
    %s27 = ssub.s32 %s21, 2
    %s34 = sadd.s32 1, %s29
    %p35 = scmp.ge.s32.totalorder %s34, 2
    %s36 = scalar_select %p35, 0, %s34
    %s37 = sadd.s32 1, %s28
    %s38 = scalar_select %p35, %s37, %s28
    %p39 = scmp.ge.s32.totalorder %s38, 2
    %s40 = scalar_select %p39, 0, %s38
    %s41 = ssub.s32 %s28, %s40
    %p42 = scmp.eq.s32.totalorder %s41, 0
    %s44 = sadd.s32 %s43, 1
    %s45 = scalar_select %p42, %s43, %s44
    %p48 = pneg %p42
    %p49 = scmp.eq.s32.totalorder %s21, 3
    %p50 = por %p48, %p49
    %p51 = scmp.ne.s32.totalorder %s43, %s46
    %p52 = scmp.eq.s32.totalorder %s21, 0
    %p53 = por %p51, %p52
    %p54 = scmp.ne.s32.totalorder %s43, %s46
    %p55 = scmp.eq.s32.totalorder %s26, 3
    %p56 = por %p54, %p55
    %p57 = scmp.ne.s32.totalorder %s46, %s47
    %p58 = scmp.eq.s32.totalorder %s26, 0
    %p59 = por %p57, %p58
    %p60 = scmp.ne.s32.totalorder %s46, %s47
    %p61 = scmp.eq.s32.totalorder %s27, 3
    %p62 = por %p60, %p61
    %p64 = scmp.ne.s32.totalorder %s47, %s63
    %p65 = scmp.eq.s32.totalorder %s27, 0
    %p66 = por %p64, %p65
    %s67 = ssub.s32 %s29, %s36
    %p68 = scmp.eq.s32.totalorder %s67, 0
    %s70 = sadd.s32 %s69, 1
    %s71 = scalar_select %p68, %s69, %s70
    %p74 = pneg %p68
    %p75 = scmp.eq.s32.totalorder %s21, 3
    %p76 = por %p74, %p75
    %p77 = scmp.ne.s32.totalorder %s69, %s72
    %p78 = scmp.eq.s32.totalorder %s21, 0
    %p79 = por %p77, %p78
    %p80 = scmp.ne.s32.totalorder %s69, %s72
    %p81 = scmp.eq.s32.totalorder %s26, 3
    %p82 = por %p80, %p81
    %p83 = scmp.ne.s32.totalorder %s72, %s73
    %p84 = scmp.eq.s32.totalorder %s26, 0
    %p85 = por %p83, %p84
    %p86 = scmp.ne.s32.totalorder %s72, %s73
    %p87 = scmp.eq.s32.totalorder %s27, 3
    %p88 = por %p86, %p87
    %p90 = scmp.ne.s32.totalorder %s73, %s89
    %p91 = scmp.eq.s32.totalorder %s27, 0
    %p92 = por %p90, %p91
    %s93 = ssub.s32 %s29, %s36
    %p94 = scmp.eq.s32.totalorder %s93, 0
    %s96 = sadd.s32 %s95, 1
    %s97 = scalar_select %p94, %s95, %s96
    %p100 = pneg %p94
    %p101 = scmp.eq.s32.totalorder %s21, 3
    %p102 = por %p100, %p101
    %p103 = scmp.ne.s32.totalorder %s95, %s98
    %p104 = scmp.eq.s32.totalorder %s21, 0
    %p105 = por %p103, %p104
    %p106 = scmp.ne.s32.totalorder %s95, %s98
    %p107 = scmp.eq.s32.totalorder %s26, 3
    %p108 = por %p106, %p107
    %p109 = scmp.ne.s32.totalorder %s98, %s99
    %p110 = scmp.eq.s32.totalorder %s26, 0
    %p111 = por %p109, %p110
    %p112 = scmp.ne.s32.totalorder %s98, %s99
    %p113 = scmp.eq.s32.totalorder %s27, 3
    %p114 = por %p112, %p113
    %p116 = scmp.ne.s32.totalorder %s99, %s115
    %p117 = scmp.eq.s32.totalorder %s27, 0
    %p118 = por %p116, %p117
    %s119 = ssub.s32 %s29, %s36
    %p120 = scmp.eq.s32.totalorder %s119, 0
    %s122 = sadd.s32 %s121, 1
    %s123 = scalar_select %p120, %s121, %s122
    %p126 = pneg %p120
    %p127 = scmp.eq.s32.totalorder %s21, 3
    %p128 = por %p126, %p127
    %p129 = scmp.ne.s32.totalorder %s121, %s124
    %p130 = scmp.eq.s32.totalorder %s21, 0
    %p131 = por %p129, %p130
    %p132 = scmp.ne.s32.totalorder %s121, %s124
    %p133 = scmp.eq.s32.totalorder %s26, 3
    %p134 = por %p132, %p133
    %p135 = scmp.ne.s32.totalorder %s124, %s125
    %p136 = scmp.eq.s32.totalorder %s26, 0
    %p137 = por %p135, %p136
    %p138 = scmp.ne.s32.totalorder %s124, %s125
    %p139 = scmp.eq.s32.totalorder %s27, 3
    %p140 = por %p138, %p139
    %p142 = scmp.ne.s32.totalorder %s125, %s141
    %p143 = scmp.eq.s32.totalorder %s27, 0
    %p144 = por %p142, %p143
    %s145 = ssub.s32 %s29, %s36
    %p146 = scmp.eq.s32.totalorder %s145, 0
    %s148 = sadd.s32 %s147, 1
    %s149 = scalar_select %p146, %s147, %s148
    %p152 = pneg %p146
    %p153 = scmp.eq.s32.totalorder %s21, 3
    %p154 = por %p152, %p153
    %p155 = scmp.ne.s32.totalorder %s147, %s150
    %p156 = scmp.eq.s32.totalorder %s21, 0
    %p157 = por %p155, %p156
    %p158 = scmp.ne.s32.totalorder %s147, %s150
    %p159 = scmp.eq.s32.totalorder %s26, 3
    %p160 = por %p158, %p159
    %p161 = scmp.ne.s32.totalorder %s150, %s151
    %p162 = scmp.eq.s32.totalorder %s26, 0
    %p163 = por %p161, %p162
    %p164 = scmp.ne.s32.totalorder %s150, %s151
    %p165 = scmp.eq.s32.totalorder %s27, 3
    %p166 = por %p164, %p165
    %p168 = scmp.ne.s32.totalorder %s151, %s167
    %p169 = scmp.eq.s32.totalorder %s27, 0
    %p170 = por %p168, %p169
    %s171 = ssub.s32 %s29, %s36
    %p172 = scmp.eq.s32.totalorder %s171, 0
    %s174 = sadd.s32 %s173, 1
    %s175 = scalar_select %p172, %s173, %s174
    %p178 = pneg %p172
    %p179 = scmp.eq.s32.totalorder %s21, 3
    %p180 = por %p178, %p179
    %p181 = scmp.ne.s32.totalorder %s173, %s176
    %p182 = scmp.eq.s32.totalorder %s21, 0
    %p183 = por %p181, %p182
    %p184 = scmp.ne.s32.totalorder %s173, %s176
    %p185 = scmp.eq.s32.totalorder %s26, 3
    %p186 = por %p184, %p185
    %p187 = scmp.ne.s32.totalorder %s176, %s177
    %p188 = scmp.eq.s32.totalorder %s26, 0
    %p189 = por %p187, %p188
    %p190 = scmp.ne.s32.totalorder %s176, %s177
    %p191 = scmp.eq.s32.totalorder %s27, 3
    %p192 = por %p190, %p191
    %p194 = scmp.ne.s32.totalorder %s177, %s193
    %p195 = scmp.eq.s32.totalorder %s27, 0
    %p196 = por %p194, %p195
    %s197 = ssub.s32 %s29, %s36
    %p198 = scmp.eq.s32.totalorder %s197, 0
    %s200 = sadd.s32 %s199, 1
    %s201 = scalar_select %p198, %s199, %s200
    %p204 = pneg %p198
    %p205 = scmp.eq.s32.totalorder %s21, 3
    %p206 = por %p204, %p205
    %p207 = scmp.ne.s32.totalorder %s199, %s202
    %p208 = scmp.eq.s32.totalorder %s21, 0
    %p209 = por %p207, %p208
    %p210 = scmp.ne.s32.totalorder %s199, %s202
    %p211 = scmp.eq.s32.totalorder %s26, 3
    %p212 = por %p210, %p211
    %p213 = scmp.ne.s32.totalorder %s202, %s203
    %p214 = scmp.eq.s32.totalorder %s26, 0
    %p215 = por %p213, %p214
    %p216 = scmp.ne.s32.totalorder %s202, %s203
    %p217 = scmp.eq.s32.totalorder %s27, 3
    %p218 = por %p216, %p217
    %p220 = scmp.ne.s32.totalorder %s203, %s219
    %p221 = scmp.eq.s32.totalorder %s27, 0
    %p222 = por %p220, %p221
    %s223 = ssub.s32 %s29, %s36
    %p224 = scmp.eq.s32.totalorder %s223, 0
    %s226 = sadd.s32 %s225, 1
    %s227 = scalar_select %p224, %s225, %s226
    %p230 = pneg %p224
    %p231 = scmp.eq.s32.totalorder %s21, 3
    %p232 = por %p230, %p231
    %p233 = scmp.ne.s32.totalorder %s225, %s228
    %p234 = scmp.eq.s32.totalorder %s21, 0
    %p235 = por %p233, %p234
    %p236 = scmp.ne.s32.totalorder %s225, %s228
    %p237 = scmp.eq.s32.totalorder %s26, 3
    %p238 = por %p236, %p237
    %p239 = scmp.ne.s32.totalorder %s228, %s229
    %p240 = scmp.eq.s32.totalorder %s26, 0
    %p241 = por %p239, %p240
    %p242 = scmp.ne.s32.totalorder %s228, %s229
    %p243 = scmp.eq.s32.totalorder %s27, 3
    %p244 = por %p242, %p243
    %p246 = scmp.ne.s32.totalorder %s229, %s245
    %p247 = scmp.eq.s32.totalorder %s27, 0
    %p248 = por %p246, %p247
    %s249 = ssub.s32 %s29, %s36
    %p250 = scmp.eq.s32.totalorder %s249, 0
    %s252 = sadd.s32 %s251, 1
    %s253 = scalar_select %p250, %s251, %s252
    %p256 = pneg %p250
    %p257 = scmp.eq.s32.totalorder %s21, 3
    %p258 = por %p256, %p257
    %p259 = scmp.ne.s32.totalorder %s251, %s254
    %p260 = scmp.eq.s32.totalorder %s21, 0
    %p261 = por %p259, %p260
    %p262 = scmp.ne.s32.totalorder %s251, %s254
    %p263 = scmp.eq.s32.totalorder %s26, 3
    %p264 = por %p262, %p263
    %p265 = scmp.ne.s32.totalorder %s254, %s255
    %p266 = scmp.eq.s32.totalorder %s26, 0
    %p267 = por %p265, %p266
    %p268 = scmp.ne.s32.totalorder %s254, %s255
    %p269 = scmp.eq.s32.totalorder %s27, 3
    %p270 = por %p268, %p269
    %p272 = scmp.ne.s32.totalorder %s255, %s271
    %p273 = scmp.eq.s32.totalorder %s27, 0
    %p274 = por %p272, %p273
    %s275 = ssub.s32 %s29, %s36
    %p276 = scmp.eq.s32.totalorder %s275, 0
    %s278 = sadd.s32 %s277, 1
    %s279 = scalar_select %p276, %s277, %s278
    %p282 = pneg %p276
    %p283 = scmp.eq.s32.totalorder %s21, 3
    %p284 = por %p282, %p283
    %p285 = scmp.ne.s32.totalorder %s277, %s280
    %p286 = scmp.eq.s32.totalorder %s21, 0
    %p287 = por %p285, %p286
    %p288 = scmp.ne.s32.totalorder %s277, %s280
    %p289 = scmp.eq.s32.totalorder %s26, 3
    %p290 = por %p288, %p289
    %p291 = scmp.ne.s32.totalorder %s280, %s281
    %p292 = scmp.eq.s32.totalorder %s26, 0
    %p293 = por %p291, %p292
    %p294 = scmp.ne.s32.totalorder %s280, %s281
    %p295 = scmp.eq.s32.totalorder %s27, 3
    %p296 = por %p294, %p295
    %p298 = scmp.ne.s32.totalorder %s281, %s297
    %p299 = scmp.eq.s32.totalorder %s27, 0
    %p300 = por %p298, %p299
    %s301 = ssub.s32 %s29, %s36
    %p302 = scmp.eq.s32.totalorder %s301, 0
    %s304 = sadd.s32 %s303, 1
    %s305 = scalar_select %p302, %s303, %s304
    %p308 = pneg %p302
    %p309 = scmp.eq.s32.totalorder %s21, 3
    %p310 = por %p308, %p309
    %p311 = scmp.ne.s32.totalorder %s303, %s306
    %p312 = scmp.eq.s32.totalorder %s21, 0
    %p313 = por %p311, %p312
    %p314 = scmp.ne.s32.totalorder %s303, %s306
    %p315 = scmp.eq.s32.totalorder %s26, 3
    %p316 = por %p314, %p315
    %p317 = scmp.ne.s32.totalorder %s306, %s307
    %p318 = scmp.eq.s32.totalorder %s26, 0
    %p319 = por %p317, %p318
    %p320 = scmp.ne.s32.totalorder %s306, %s307
    %p321 = scmp.eq.s32.totalorder %s27, 3
    %p322 = por %p320, %p321
    %p324 = scmp.ne.s32.totalorder %s307, %s323
    %p325 = scmp.eq.s32.totalorder %s27, 0
    %p326 = por %p324, %p325
    %s327 = ssub.s32 %s29, %s36
    %p328 = scmp.eq.s32.totalorder %s327, 0
    %s330 = sadd.s32 %s329, 1
    %s331 = scalar_select %p328, %s329, %s330
    %p334 = pneg %p328
    %p335 = scmp.eq.s32.totalorder %s21, 3
    %p336 = por %p334, %p335
    %p337 = scmp.ne.s32.totalorder %s329, %s332
    %p338 = scmp.eq.s32.totalorder %s21, 0
    %p339 = por %p337, %p338
    %p340 = scmp.ne.s32.totalorder %s329, %s332
    %p341 = scmp.eq.s32.totalorder %s26, 3
    %p342 = por %p340, %p341
    %p343 = scmp.ne.s32.totalorder %s332, %s333
    %p344 = scmp.eq.s32.totalorder %s26, 0
    %p345 = por %p343, %p344
    %p346 = scmp.ne.s32.totalorder %s332, %s333
    %p347 = scmp.eq.s32.totalorder %s27, 3
    %p348 = por %p346, %p347
    %p350 = scmp.ne.s32.totalorder %s333, %s349
    %p351 = scmp.eq.s32.totalorder %s27, 0
    %p352 = por %p350, %p351
    %s353 = ssub.s32 %s29, %s36
    %p354 = scmp.eq.s32.totalorder %s353, 0
    %s356 = sadd.s32 %s355, 1
    %s357 = scalar_select %p354, %s355, %s356
    %p360 = pneg %p354
    %p361 = scmp.eq.s32.totalorder %s21, 3
    %p362 = por %p360, %p361
    %p363 = scmp.ne.s32.totalorder %s355, %s358
    %p364 = scmp.eq.s32.totalorder %s21, 0
    %p365 = por %p363, %p364
    %p366 = scmp.ne.s32.totalorder %s355, %s358
    %p367 = scmp.eq.s32.totalorder %s26, 3
    %p368 = por %p366, %p367
    %p369 = scmp.ne.s32.totalorder %s358, %s359
    %p370 = scmp.eq.s32.totalorder %s26, 0
    %p371 = por %p369, %p370
    %p372 = scmp.ne.s32.totalorder %s358, %s359
    %p373 = scmp.eq.s32.totalorder %s27, 3
    %p374 = por %p372, %p373
    %p376 = scmp.ne.s32.totalorder %s359, %s375
    %p377 = scmp.eq.s32.totalorder %s27, 0
    %p378 = por %p376, %p377
    %s380 = sadd.s32 %s379, 1
    %p383 = scmp.eq.s32.totalorder %s21, 3
    %p384 = scmp.ne.s32.totalorder %s379, %s381
    %p385 = scmp.eq.s32.totalorder %s21, 0
    %p386 = por %p384, %p385
    %p387 = scmp.ne.s32.totalorder %s379, %s381
    %p388 = scmp.eq.s32.totalorder %s26, 3
    %p389 = por %p387, %p388
    %p390 = scmp.ne.s32.totalorder %s381, %s382
    %p391 = scmp.eq.s32.totalorder %s26, 0
    %p392 = por %p390, %p391
    %p393 = scmp.ne.s32.totalorder %s381, %s382
    %p394 = scmp.eq.s32.totalorder %s27, 3
    %p395 = por %p393, %p394
    %p397 = scmp.ne.s32.totalorder %s382, %s396
    %p398 = scmp.eq.s32.totalorder %s27, 0
    %p399 = por %p397, %p398
    %s401 = sadd.s32 %s400, 1
    %p404 = scmp.eq.s32.totalorder %s21, 3
    %p405 = scmp.ne.s32.totalorder %s400, %s402
    %p406 = scmp.eq.s32.totalorder %s21, 0
    %p407 = por %p405, %p406
    %p408 = scmp.ne.s32.totalorder %s400, %s402
    %p409 = scmp.eq.s32.totalorder %s26, 3
    %p410 = por %p408, %p409
    %p411 = scmp.ne.s32.totalorder %s402, %s403
    %p412 = scmp.eq.s32.totalorder %s26, 0
    %p413 = por %p411, %p412
    %p414 = scmp.ne.s32.totalorder %s402, %s403
    %p415 = scmp.eq.s32.totalorder %s27, 3
    %p416 = por %p414, %p415
    %p418 = scmp.ne.s32.totalorder %s403, %s417
    %p419 = scmp.eq.s32.totalorder %s27, 0
    %p420 = por %p418, %p419
    %s421 = ssub.s32 %s28, %s40
    %p422 = scmp.eq.s32.totalorder %s421, 0
    %s424 = sadd.s32 %s423, 1
    %s425 = scalar_select %p422, %s423, %s424
    %p428 = pneg %p422
    %p429 = scmp.eq.s32.totalorder %s21, 3
    %p430 = por %p428, %p429
    %p431 = scmp.ne.s32.totalorder %s423, %s426
    %p432 = scmp.eq.s32.totalorder %s21, 0
    %p433 = por %p431, %p432
    %p434 = scmp.ne.s32.totalorder %s423, %s426
    %p435 = scmp.eq.s32.totalorder %s26, 3
    %p436 = por %p434, %p435
    %p437 = scmp.ne.s32.totalorder %s426, %s427
    %p438 = scmp.eq.s32.totalorder %s26, 0
    %p439 = por %p437, %p438
    %p440 = scmp.ne.s32.totalorder %s426, %s427
    %p441 = scmp.eq.s32.totalorder %s27, 3
    %p442 = por %p440, %p441
    %p444 = scmp.ne.s32.totalorder %s427, %s443
    %p445 = scmp.eq.s32.totalorder %s27, 0
    %p446 = por %p444, %p445
    %p447 = scmp.le.s32.totalorder 1, %s21
    %p448 = scmp.lt.s32.totalorder %s21, 5
    %p449 = pnand %p447, %p448
    %p450 = pneg %p449
    // Predicated region
    $region9: #{forward.4} parent=5 // pred_check
      _
    $region10: #{forward.4} parent=5 // pred_check_branch
      %452 = sbr.rel (%p449) target = $region12
    $region11: #{forward.4} parent=5 // pred_region
      %s453 = ssub.s32 %s21, 1
      // Predicated region
      $region13: #{forward.4} parent=11 // pred_check
        %p454 = pneg %p392
      $region14: #{forward.4} parent=11 // pred_check_branch
        %456 = sbr.rel (%p454) target = $region16
      $region15: #{forward.4} parent=11 // pred_region
        _
      $region16: #{forward.4} parent=11 // pred_fallthru
        _
      // Predicated region
      $region17: #{forward.4} parent=11 // pred_check
        %p457 = pneg %p413
      $region18: #{forward.4} parent=11 // pred_check_branch
        %459 = sbr.rel (%p457) target = $region20
      $region19: #{forward.4} parent=11 // pred_region
        _
      $region20: #{forward.4} parent=11 // pred_fallthru
        _
    $region12: #{forward.4} parent=5 // pred_fallthru
      _
    %p460 = scmp.lt.s32.totalorder %s21, 4
    // Predicated region
    $region21: #{forward.4} parent=5 // pred_check
      %p461 = pneg %p460
    $region22: #{forward.4} parent=5 // pred_check_branch
      %463 = sbr.rel (%p461) target = $region24
    $region23: #{forward.4} parent=5 // pred_region
      // Predicated region
      $region25: #{forward.4} parent=23 // pred_check
        %p464 = pneg %p53
      $region26: #{forward.4} parent=23 // pred_check_branch
        %466 = sbr.rel (%p464) target = $region28
      $region27: #{forward.4} parent=23 // pred_region
        %p467 = scmp.lt.s32.totalorder %s28, 1
        %s468 = scalar_select %p467, %s28, 1
        %s469 = smul.addr %s468, 4
        %s470 = smul.addr %s469, 4
        %s471 = scalar_lea.vmem %s0, %s470
      $region28: #{forward.4} parent=23 // pred_fallthru
        _
      // Predicated region
      $region29: #{forward.4} parent=23 // pred_check
        %p472 = pneg %p79
      $region30: #{forward.4} parent=23 // pred_check_branch
        %474 = sbr.rel (%p472) target = $region32
      $region31: #{forward.4} parent=23 // pred_region
        %p475 = scmp.lt.s32.totalorder %s29, 1
        %s476 = scalar_select %p475, %s29, 1
        %s477 = scalar_lea.vmem %s1, %s476
      $region32: #{forward.4} parent=23 // pred_fallthru
        _
      // Predicated region
      $region33: #{forward.4} parent=23 // pred_check
        %p478 = pneg %p105
      $region34: #{forward.4} parent=23 // pred_check_branch
        %480 = sbr.rel (%p478) target = $region36
      $region35: #{forward.4} parent=23 // pred_region
        %p481 = scmp.lt.s32.totalorder %s29, 1
        %s482 = scalar_select %p481, %s29, 1
        %s483 = scalar_lea.vmem %s2, %s482
      $region36: #{forward.4} parent=23 // pred_fallthru
        _
      // Predicated region
      $region37: #{forward.4} parent=23 // pred_check
        %p484 = pneg %p131
      $region38: #{forward.4} parent=23 // pred_check_branch
        %486 = sbr.rel (%p484) target = $region40
      $region39: #{forward.4} parent=23 // pred_region
        %p487 = scmp.lt.s32.totalorder %s29, 1
        %s488 = scalar_select %p487, %s29, 1
        %s489 = smul.addr %s488, 12
        %s490 = smul.addr %s489, 4
        %s491 = scalar_lea.vmem %s3, %s490
      $region40: #{forward.4} parent=23 // pred_fallthru
        _
      // Predicated region
      $region41: #{forward.4} parent=23 // pred_check
        %p492 = pneg %p157
      $region42: #{forward.4} parent=23 // pred_check_branch
        %494 = sbr.rel (%p492) target = $region44
      $region43: #{forward.4} parent=23 // pred_region
        %p495 = scmp.lt.s32.totalorder %s29, 1
        %s496 = scalar_select %p495, %s29, 1
        %s497 = smul.addr %s496, 12
        %s498 = smul.addr %s497, 8
        %s499 = scalar_lea.vmem %s4, %s498
      $region44: #{forward.4} parent=23 // pred_fallthru
        _
      // Predicated region
      $region45: #{forward.4} parent=23 // pred_check
        %p500 = pneg %p183
      $region46: #{forward.4} parent=23 // pred_check_branch
        %502 = sbr.rel (%p500) target = $region48
      $region47: #{forward.4} parent=23 // pred_region
        %p503 = scmp.lt.s32.totalorder %s29, 1
        %s504 = scalar_select %p503, %s29, 1
        %s505 = smul.addr %s504, 4
        %s506 = smul.addr %s505, 4
        %s507 = scalar_lea.vmem %s5, %s506
      $region48: #{forward.4} parent=23 // pred_fallthru
        _
      // Predicated region
      $region49: #{forward.4} parent=23 // pred_check
        %p508 = pneg %p209
      $region50: #{forward.4} parent=23 // pred_check_branch
        %510 = sbr.rel (%p508) target = $region52
      $region51: #{forward.4} parent=23 // pred_region
        %p511 = scmp.lt.s32.totalorder %s29, 1
        %s512 = scalar_select %p511, %s29, 1
        %s513 = scalar_lea.vmem %s6, %s512
      $region52: #{forward.4} parent=23 // pred_fallthru
        _
      // Predicated region
      $region53: #{forward.4} parent=23 // pred_check
        %p514 = pneg %p235
      $region54: #{forward.4} parent=23 // pred_check_branch
        %516 = sbr.rel (%p514) target = $region56
      $region55: #{forward.4} parent=23 // pred_region
        %p517 = scmp.lt.s32.totalorder %s29, 1
        %s518 = scalar_select %p517, %s29, 1
        %s519 = scalar_lea.vmem %s7, %s518
      $region56: #{forward.4} parent=23 // pred_fallthru
        _
      // Predicated region
      $region57: #{forward.4} parent=23 // pred_check
        %p520 = pneg %p261
      $region58: #{forward.4} parent=23 // pred_check_branch
        %522 = sbr.rel (%p520) target = $region60
      $region59: #{forward.4} parent=23 // pred_region
        %p523 = scmp.lt.s32.totalorder %s29, 1
        %s524 = scalar_select %p523, %s29, 1
        %s525 = scalar_lea.vmem %s8, %s524
      $region60: #{forward.4} parent=23 // pred_fallthru
        _
      // Predicated region
      $region61: #{forward.4} parent=23 // pred_check
        %p526 = pneg %p287
      $region62: #{forward.4} parent=23 // pred_check_branch
        %528 = sbr.rel (%p526) target = $region64
      $region63: #{forward.4} parent=23 // pred_region
        %p529 = scmp.lt.s32.totalorder %s29, 1
        %s530 = scalar_select %p529, %s29, 1
        %s531 = smul.addr %s530, 4
        %s532 = smul.addr %s531, 4
        %s533 = scalar_lea.vmem %s9, %s532
      $region64: #{forward.4} parent=23 // pred_fallthru
        _
      // Predicated region
      $region65: #{forward.4} parent=23 // pred_check
        %p534 = pneg %p313
      $region66: #{forward.4} parent=23 // pred_check_branch
        %536 = sbr.rel (%p534) target = $region68
      $region67: #{forward.4} parent=23 // pred_region
        %p537 = scmp.lt.s32.totalorder %s29, 1
        %s538 = scalar_select %p537, %s29, 1
        %s539 = scalar_lea.vmem %s10, %s538
      $region68: #{forward.4} parent=23 // pred_fallthru
        _
      // Predicated region
      $region69: #{forward.4} parent=23 // pred_check
        %p540 = pneg %p339
      $region70: #{forward.4} parent=23 // pred_check_branch
        %542 = sbr.rel (%p540) target = $region72
      $region71: #{forward.4} parent=23 // pred_region
        %p543 = scmp.lt.s32.totalorder %s29, 1
        %s544 = scalar_select %p543, %s29, 1
        %s545 = smul.addr %s544, 8
        %s546 = smul.addr %s545, 4
        %s547 = scalar_lea.vmem %s11, %s546
      $region72: #{forward.4} parent=23 // pred_fallthru
        _
      // Predicated region
      $region73: #{forward.4} parent=23 // pred_check
        %p548 = pneg %p365
      $region74: #{forward.4} parent=23 // pred_check_branch
        %550 = sbr.rel (%p548) target = $region76
      $region75: #{forward.4} parent=23 // pred_region
        %p551 = scmp.lt.s32.totalorder %s29, 1
        %s552 = scalar_select %p551, %s29, 1
        %s553 = scalar_lea.vmem %s12, %s552
      $region76: #{forward.4} parent=23 // pred_fallthru
        _
    $region24: #{forward.4} parent=5 // pred_fallthru
      _
    %p554 = scmp.le.s32.totalorder 1, %s21
    %p555 = scmp.lt.s32.totalorder %s21, 5
    %p556 = pnand %p554, %p555
    %p557 = pneg %p556
    // Predicated region
    $region77: #{forward.4} parent=5 // pred_check
      _
    $region78: #{forward.4} parent=5 // pred_check_branch
      %559 = sbr.rel (%p556) target = $region80
    $region79: #{forward.4} parent=5 // pred_region
      %s560 = ssub.s32 %s21, 1
      %p561 = scmp.lt.s32.totalorder %s30, 1
      %s562 = scalar_select %p561, %s30, 1
      %s563 = smul.addr %s562, 4
      %s564 = smul.addr %s563, 4
      %s565 = scalar_lea.vmem %s0, %s564
      %p566 = pneg %p59
      %p567 = pneg %p56
      %p568 = scmp.lt.s32.totalorder %s31, 1
      %s569 = scalar_select %p568, %s31, 1
      %s570 = scalar_lea.vmem %s1, %s569
      %p571 = pneg %p85
      %p572 = pneg %p82
      %p573 = scmp.lt.s32.totalorder %s31, 1
      %s574 = scalar_select %p573, %s31, 1
      %s575 = scalar_lea.vmem %s2, %s574
      %p576 = pneg %p111
      %p577 = pneg %p108
      %p578 = scmp.lt.s32.totalorder %s31, 1
      %s579 = scalar_select %p578, %s31, 1
      %s580 = smul.addr %s579, 12
      %s581 = smul.addr %s580, 4
      %s582 = scalar_lea.vmem %s3, %s581
      %p583 = pneg %p137
      %p584 = pneg %p134
      %p585 = scmp.lt.s32.totalorder %s31, 1
      %s586 = scalar_select %p585, %s31, 1
      %s587 = smul.addr %s586, 12
      %s588 = smul.addr %s587, 8
      %s589 = scalar_lea.vmem %s4, %s588
      %p590 = pneg %p163
      %p591 = pneg %p160
      %p592 = scmp.lt.s32.totalorder %s31, 1
      %s593 = scalar_select %p592, %s31, 1
      %s594 = smul.addr %s593, 4
      %s595 = smul.addr %s594, 4
      %s596 = scalar_lea.vmem %s5, %s595
      %p597 = pneg %p189
      %p598 = pneg %p186
      %p599 = scmp.lt.s32.totalorder %s31, 1
      %s600 = scalar_select %p599, %s31, 1
      %s601 = scalar_lea.vmem %s6, %s600
      %p602 = pneg %p215
      %p603 = pneg %p212
      %p604 = scmp.lt.s32.totalorder %s31, 1
      %s605 = scalar_select %p604, %s31, 1
      %s606 = scalar_lea.vmem %s7, %s605
      %p607 = pneg %p241
      %p608 = pneg %p238
      %p609 = scmp.lt.s32.totalorder %s31, 1
      %s610 = scalar_select %p609, %s31, 1
      %s611 = scalar_lea.vmem %s8, %s610
      %p612 = pneg %p267
      %p613 = pneg %p264
      %p614 = scmp.lt.s32.totalorder %s31, 1
      %s615 = scalar_select %p614, %s31, 1
      %s616 = smul.addr %s615, 4
      %s617 = smul.addr %s616, 4
      %s618 = scalar_lea.vmem %s9, %s617
      %p619 = pneg %p293
      %p620 = pneg %p290
      %p621 = scmp.lt.s32.totalorder %s31, 1
      %s622 = scalar_select %p621, %s31, 1
      %s623 = scalar_lea.vmem %s10, %s622
      %p624 = pneg %p319
      %p625 = pneg %p316
      %p626 = scmp.lt.s32.totalorder %s31, 1
      %s627 = scalar_select %p626, %s31, 1
      %s628 = smul.addr %s627, 8
      %s629 = smul.addr %s628, 4
      %s630 = scalar_lea.vmem %s11, %s629
      %p631 = pneg %p345
      %p632 = pneg %p342
      %p633 = scmp.lt.s32.totalorder %s31, 1
      %s634 = scalar_select %p633, %s31, 1
      %s635 = scalar_lea.vmem %s12, %s634
      %p636 = pneg %p371
      %p637 = pneg %p368
      %p638 = pneg %p392
      %p639 = pneg %p389
      %p640 = pneg %p413
      %p641 = pneg %p410
      %p642 = pneg %p439
      %p643 = pneg %p436
      %p644 = scmp.lt.s32.totalorder %s30, 1
      %s645 = scalar_select %p644, %s30, 1
      %s646 = smul.addr %s645, 4
      %s647 = smul.addr %s646, 4
      %s648 = scalar_lea.vmem %s15, %s647
      %p649 = scmp.lt.s32.totalorder %s30, 1
      %s650 = scalar_select %p649, %s30, 1
      %s651 = smul.addr %s650, 4
      %s652 = smul.addr %s651, 4
      %s653 = scalar_lea.vmem %s0, %s652
      %p654 = scmp.lt.s32.totalorder %s31, 1
      %s655 = scalar_select %p654, %s31, 1
      %s656 = scalar_lea.vmem %s1, %s655
      %p657 = scmp.lt.s32.totalorder %s31, 1
      %s658 = scalar_select %p657, %s31, 1
      %s659 = scalar_lea.vmem %s2, %s658
      %p660 = scmp.lt.s32.totalorder %s31, 1
      %s661 = scalar_select %p660, %s31, 1
      %s662 = smul.addr %s661, 12
      %s663 = smul.addr %s662, 4
      %s664 = scalar_lea.vmem %s3, %s663
      %p665 = scmp.lt.s32.totalorder %s31, 1
      %s666 = scalar_select %p665, %s31, 1
      %s667 = smul.addr %s666, 12
      %s668 = smul.addr %s667, 8
      %s669 = scalar_lea.vmem %s4, %s668
      %p670 = scmp.lt.s32.totalorder %s31, 1
      %s671 = scalar_select %p670, %s31, 1
      %s672 = smul.addr %s671, 4
      %s673 = smul.addr %s672, 4
      %s674 = scalar_lea.vmem %s5, %s673
      %p675 = scmp.lt.s32.totalorder %s31, 1
      %s676 = scalar_select %p675, %s31, 1
      %s677 = scalar_lea.vmem %s6, %s676
      %p678 = scmp.lt.s32.totalorder %s31, 1
      %s679 = scalar_select %p678, %s31, 1
      %s680 = scalar_lea.vmem %s7, %s679
      %p681 = scmp.lt.s32.totalorder %s31, 1
      %s682 = scalar_select %p681, %s31, 1
      %s683 = scalar_lea.vmem %s8, %s682
      %p684 = scmp.lt.s32.totalorder %s31, 1
      %s685 = scalar_select %p684, %s31, 1
      %s686 = smul.addr %s685, 4
      %s687 = smul.addr %s686, 4
      %s688 = scalar_lea.vmem %s9, %s687
      %p689 = scmp.lt.s32.totalorder %s31, 1
      %s690 = scalar_select %p689, %s31, 1
      %s691 = scalar_lea.vmem %s10, %s690
      %p692 = scmp.lt.s32.totalorder %s31, 1
      %s693 = scalar_select %p692, %s31, 1
      %s694 = smul.addr %s693, 8
      %s695 = smul.addr %s694, 4
      %s696 = scalar_lea.vmem %s11, %s695
      %p697 = scmp.lt.s32.totalorder %s31, 1
      %s698 = scalar_select %p697, %s31, 1
      %s699 = scalar_lea.vmem %s12, %s698
      %p700 = scmp.lt.s32.totalorder %s30, 1
      %s701 = scalar_select %p700, %s30, 1
      %s702 = smul.addr %s701, 4
      %s703 = smul.addr %s702, 4
      %s704 = scalar_lea.vmem %s15, %s703
      %p706 = scmp.eq.s32.totalorder %s31, 0
      // Predicated region
      $region81: #{forward.4} parent=79 // pred_check
        %p707 = pneg %p706
      $region82: #{forward.4} parent=79 // pred_check_branch
        %709 = sbr.rel (%p707) target = $region84
      $region83: #{forward.4} parent=79 // pred_region
        %v710 = vld [vmem:[%s653] sm:$0xf]
        %v711 = vld [vmem:[%s653 + $0x4] sm:$0xf]
        %v712 = vld [vmem:[%s653 + $0x8] sm:$0xf]
        %v713 = vld [vmem:[%s653 + $0xc] sm:$0xf]
        %v714 = vunpack.c.l.bf16 %v710
        %v715 = vunpack.c.l.bf16 %v711
        %v716 = vunpack.c.l.bf16 %v712
        %v717 = vunpack.c.l.bf16 %v713
        %vm718 = vcmask 261120
        %719 = vst.msk [vmem:[#allocation2] sm:$0xff] %vm718, %v714
        %720 = vst.msk [vmem:[#allocation2 + $0x8] sm:$0xff] %vm718, %v715
        %721 = vst.msk [vmem:[#allocation2 + $0x10] sm:$0xff] %vm718, %v716
        %722 = vst.msk [vmem:[#allocation2 + $0x18] sm:$0xff] %vm718, %v717
      $region84: #{forward.4} parent=79 // pred_fallthru
        _
      %v723 = vld [vmem:[#allocation2] sm:$0xff]
      %v724 = vld [vmem:[#allocation2 + $0x8] sm:$0xff]
      %v725 = vld [vmem:[#allocation2 + $0x10] sm:$0xff]
      %v726 = vld [vmem:[#allocation2 + $0x18] sm:$0xff]
      %v727 = vld [vmem:[%s656] sm:$0x1]
      %v728 = vld [vmem:[%s659] sm:$0x1]
      %vm729 = vcmask 261120
      %v730 = vsel %vm729, %v723, 0.0
      %731 = vadd.xlane.f32.xlu0 %v730
      %v732 = vpop.xlane.xlu0 %731
      %v733 = vsel %vm729, %v724, 0.0
      %734 = vadd.xlane.f32.xlu0 %v733
      %v735 = vpop.xlane.xlu0 %734
      %v736 = vsel %vm729, %v725, 0.0
      %737 = vadd.xlane.f32.xlu0 %v736
      %v738 = vpop.xlane.xlu0 %737
      %v739 = vsel %vm729, %v726, 0.0
      %740 = vadd.xlane.f32.xlu0 %v739
      %v741 = vpop.xlane.xlu0 %740
      %v742 = vrcp.pop 32.0
      %v743 = vmul.f32 %v732, %v742
      %v744 = vmul.f32 %v735, %v742
      %v745 = vmul.f32 %v738, %v742
      %v746 = vmul.f32 %v741, %v742
      %v747 = vsub.f32 %v723, %v743
      %v748 = vsub.f32 %v724, %v744
      %v749 = vsub.f32 %v725, %v745
      %v750 = vsub.f32 %v726, %v746
      %v751 = vmul.f32 %v747, %v747
      %v752 = vmul.f32 %v748, %v748
      %v753 = vmul.f32 %v749, %v749
      %v754 = vmul.f32 %v750, %v750
      %v755 = vsel %vm729, %v751, 0.0
      %756 = vadd.xlane.f32.xlu0 %v755
      %v757 = vpop.xlane.xlu0 %756
      %v758 = vsel %vm729, %v752, 0.0
      %759 = vadd.xlane.f32.xlu0 %v758
      %v760 = vpop.xlane.xlu0 %759
      %v761 = vsel %vm729, %v753, 0.0
      %762 = vadd.xlane.f32.xlu0 %v761
      %v763 = vpop.xlane.xlu0 %762
      %v764 = vsel %vm729, %v754, 0.0
      %765 = vadd.xlane.f32.xlu0 %v764
      %v766 = vpop.xlane.xlu0 %765
      %v767 = vmul.f32 %v757, %v742
      %v768 = vmul.f32 %v760, %v742
      %v769 = vmul.f32 %v763, %v742
      %v770 = vmul.f32 %v766, %v742
      %v771 = vadd.f32 %v767, 1e-06
      %v772 = vadd.f32 %v768, 1e-06
      %v773 = vadd.f32 %v769, 1e-06
      %v774 = vadd.f32 %v770, 1e-06
      %v775 = vrsqrt.pop %v771
      %v776 = vrsqrt.pop %v772
      %v777 = vrsqrt.pop %v773
      %v778 = vrsqrt.pop %v774
      %v779 = vmul.f32 %v747, %v775
      %v780 = vmul.f32 %v748, %v776
      %v781 = vmul.f32 %v749, %v777
      %v782 = vmul.f32 %v750, %v778
      %v784 = vlaneseq
      %v785 = vshrl.u32 %v784, 7
      %v786 = vsub.s32 0, %v785
      %v787 = vrot.slane %v727, %v786
      %v789 = vmul.f32 %v779, %v787
      %v790 = vmul.f32 %v780, %v787
      %v791 = vmul.f32 %v781, %v787
      %v792 = vmul.f32 %v782, %v787
      %v794 = vlaneseq
      %v795 = vshrl.u32 %v794, 7
      %v796 = vsub.s32 0, %v795
      %v797 = vrot.slane %v728, %v796
      %v799 = vadd.f32 %v789, %v797
      %v800 = vadd.f32 %v790, %v797
      %v801 = vadd.f32 %v791, %v797
      %v802 = vadd.f32 %v792, %v797
      %803 = vxpose.xlu0.b32.start [1/16] %v799, 128
      %804 = vxpose.xlu0.b32.cont [2/16] %v800, 128
      %805 = vxpose.xlu0.b32.cont [3/16] %v801, 128
      %806 = vxpose.xlu0.b32.cont [4/16] %v802, 128
      %807 = vxpose.xlu0.b32.cont [5/16] 0.0, 128
      %808 = vxpose.xlu0.b32.cont [6/16] 0.0, 128
      %809 = vxpose.xlu0.b32.cont [7/16] 0.0, 128
      %810 = vxpose.xlu0.b32.cont [8/16] 0.0, 128
      %811 = vxpose.xlu0.b32.cont [9/16] 0.0, 128
      %812 = vxpose.xlu0.b32.cont [10/16] 0.0, 128
      %813 = vxpose.xlu0.b32.cont [11/16] 0.0, 128
      %814 = vxpose.xlu0.b32.cont [12/16] 0.0, 128
      %815 = vxpose.xlu0.b32.cont [13/16] 0.0, 128
      %816 = vxpose.xlu0.b32.cont [14/16] 0.0, 128
      %817 = vxpose.xlu0.b32.cont [15/16] 0.0, 128
      %818 = vxpose.xlu0.b32.end [16/16] 0.0, 128
      %v819 = vpop.trf.xlu0
      %v820 = vpop.trf.xlu0
      %v821 = vpop.trf.xlu0
      %v822 = vpop.trf.xlu0
      %v823 = vpop.trf.xlu0
      %v824 = vpop.trf.xlu0
      %v825 = vpop.trf.xlu0
      %v826 = vpop.trf.xlu0
      %v827 = vpop.trf.xlu0
      %v828 = vpop.trf.xlu0
      %v829 = vpop.trf.xlu0
      %v830 = vpop.trf.xlu0
      %v831 = vpop.trf.xlu0
      %v832 = vpop.trf.xlu0
      %v833 = vpop.trf.xlu0
      %v834 = vpop.trf.xlu0
      %v835 = vpack.c.bf16 %v820, %v819
      %v836 = vpack.c.bf16 %v822, %v821
      %v837 = vld [vmem:[%s664] sm:$0xf]
      %v838 = vld [vmem:[%s664 + $0x4] sm:$0xf]
      %v839 = vld [vmem:[%s664 + $0x8] sm:$0xf]
      %v840 = vld [vmem:[%s664 + $0xc] sm:$0xf]
      %v841 = vld [vmem:[%s664 + $0x10] sm:$0xf]
      %v842 = vld [vmem:[%s664 + $0x14] sm:$0xf]
      %v843 = vld [vmem:[%s664 + $0x18] sm:$0xf]
      %v844 = vld [vmem:[%s664 + $0x1c] sm:$0xf]
      %v845 = vld [vmem:[%s664 + $0x20] sm:$0xf]
      %v846 = vld [vmem:[%s664 + $0x24] sm:$0xf]
      %v847 = vld [vmem:[%s664 + $0x28] sm:$0xf]
      %v848 = vld [vmem:[%s664 + $0x2c] sm:$0xf]
      %v849 = vld [vmem:[%s669] sm:$0xff]
      %v850 = vld [vmem:[%s669 + $0x8] sm:$0xff]
      %v851 = vld [vmem:[%s669 + $0x10] sm:$0xff]
      %v852 = vld [vmem:[%s669 + $0x18] sm:$0xff]
      %v853 = vld [vmem:[%s669 + $0x20] sm:$0xff]
      %v854 = vld [vmem:[%s669 + $0x28] sm:$0xff]
      %v855 = vld [vmem:[%s669 + $0x30] sm:$0xff]
      %v856 = vld [vmem:[%s669 + $0x38] sm:$0xff]
      %v857 = vld [vmem:[%s669 + $0x40] sm:$0xff]
      %v858 = vld [vmem:[%s669 + $0x48] sm:$0xff]
      %v859 = vld [vmem:[%s669 + $0x50] sm:$0xff]
      %v860 = vld [vmem:[%s669 + $0x58] sm:$0xff]
      %862 = vset.pattern.permute.xlu0 0
      %863 = vperm.xlu0 %862, %v849
      %v864 = vpop.permute.xlu0 %863
      %867 = vset.pattern.permute.xlu0 0
      %868 = vperm.xlu0 %867, %v850
      %v869 = vpop.permute.xlu0 %868
      %872 = vset.pattern.permute.xlu0 0
      %873 = vperm.xlu0 %872, %v851
      %v874 = vpop.permute.xlu0 %873
      %877 = vset.pattern.permute.xlu0 0
      %878 = vperm.xlu0 %877, %v852
      %v879 = vpop.permute.xlu0 %878
      %882 = vset.pattern.permute.xlu0 0
      %883 = vperm.xlu0 %882, %v853
      %v884 = vpop.permute.xlu0 %883
      %887 = vset.pattern.permute.xlu0 0
      %888 = vperm.xlu0 %887, %v854
      %v889 = vpop.permute.xlu0 %888
      %892 = vset.pattern.permute.xlu0 0
      %893 = vperm.xlu0 %892, %v855
      %v894 = vpop.permute.xlu0 %893
      %897 = vset.pattern.permute.xlu0 0
      %898 = vperm.xlu0 %897, %v856
      %v899 = vpop.permute.xlu0 %898
      %902 = vset.pattern.permute.xlu0 0
      %903 = vperm.xlu0 %902, %v857
      %v904 = vpop.permute.xlu0 %903
      %907 = vset.pattern.permute.xlu0 0
      %908 = vperm.xlu0 %907, %v858
      %v909 = vpop.permute.xlu0 %908
      %912 = vset.pattern.permute.xlu0 0
      %913 = vperm.xlu0 %912, %v859
      %v914 = vpop.permute.xlu0 %913
      %917 = vset.pattern.permute.xlu0 0
      %918 = vperm.xlu0 %917, %v860
      %v919 = vpop.permute.xlu0 %918
      %v933 = vunpack.c.l.b16 %v837
      %v934 = vunpack.c.l.b16 %v838
      %v935 = vunpack.c.l.b16 %v839
      %v936 = vunpack.c.l.b16 %v840
      %v937 = vunpack.c.l.b16 %v841
      %v938 = vunpack.c.l.b16 %v842
      %v939 = vunpack.c.l.b16 %v843
      %v940 = vunpack.c.l.b16 %v844
      %v941 = vunpack.c.l.b16 %v845
      %v942 = vunpack.c.l.b16 %v846
      %v943 = vunpack.c.l.b16 %v847
      %v944 = vunpack.c.l.b16 %v848
      %v945 = vpack.c.b16 %v934, %v933
      %v946 = vpack.c.b16 %v936, %v935
      %v947 = vpack.c.b16 %v938, %v937
      %v948 = vpack.c.b16 %v940, %v939
      %v949 = vpack.c.b16 %v942, %v941
      %v950 = vpack.c.b16 %v944, %v943
      %v952 = vsel %vm729, %v945, 0
      %v955 = vsel %vm729, %v946, 0
      %v958 = vsel %vm729, %v947, 0
      %v961 = vsel %vm729, %v948, 0
      %v964 = vsel %vm729, %v949, 0
      %v967 = vsel %vm729, %v950, 0
      %969 = vmatprep.subr.bf16.mxu0 0
      %970 = vmatpush1.bf16.msra.mxu0 %v835
      %971 = vmatprep.subr.bf16.mxu0 0
      %972 = vmatpush1.bf16.msra.mxu0 %v836
      %973 = vmatprep.subr.bf16.mxu0 0
      %974 = vmatpush1.bf16.msra.mxu0 0
      %975 = vmatprep.subr.bf16.mxu0 0
      %976 = vmatpush1.bf16.msra.mxu0 0
      %977 = vmatprep.subr.bf16.mxu0 0
      %978 = vmatpush1.bf16.msra.mxu0 0
      %979 = vmatprep.subr.bf16.mxu0 0
      %980 = vmatpush1.bf16.msra.mxu0 0
      %981 = vmatprep.subr.bf16.mxu0 0
      %982 = vmatpush1.bf16.msra.mxu0 0
      %983 = vmatprep.subr.bf16.mxu0 0
      %984 = vmatpush1.bf16.msra.mxu0 0
      %985 = vmatprep.subr.bf16.mxu0 0
      %986 = vmatpush1.bf16.msra.mxu0 0
      %987 = vmatprep.subr.bf16.mxu0 0
      %988 = vmatpush1.bf16.msra.mxu0 0
      %989 = vmatprep.subr.bf16.mxu0 0
      %990 = vmatpush1.bf16.msra.mxu0 0
      %991 = vmatprep.subr.bf16.mxu0 0
      %992 = vmatpush1.bf16.msra.mxu0 0
      %993 = vmatprep.subr.bf16.mxu0 0
      %994 = vmatpush1.bf16.msra.mxu0 0
      %995 = vmatprep.subr.bf16.mxu0 0
      %996 = vmatpush1.bf16.msra.mxu0 0
      %997 = vmatprep.subr.bf16.mxu0 0
      %998 = vmatpush1.bf16.msra.mxu0 0
      %999 = vmatprep.subr.bf16.mxu0 0
      %1000 = vmatpush1.bf16.msra.mxu0 0
      %1001 = vmatprep.mubr.bf16.mxu0 0
      %1002 = vmatmul.mubr.bf16.gmra.mrb[0].mxu0 %v952
      %v1003 = vpop.f32.mrb[0].mxu0
      %v1004 = vadd.f32 %v864, %v1003
      %v1005 = vpop.f32.mrb[0].mxu0
      %v1006 = vpop.f32.mrb[0].mxu0
      %v1007 = vadd.f32 %v869, %v1006
      %v1008 = vpop.f32.mrb[0].mxu0
      %1009 = vmatprep.mubr.bf16.mxu0 0
      %1010 = vmatmul.mubr.bf16.gmra.mrb[0].mxu0 %v955
      %v1011 = vpop.f32.mrb[0].mxu0
      %v1012 = vadd.f32 %v874, %v1011
      %v1013 = vpop.f32.mrb[0].mxu0
      %v1014 = vpop.f32.mrb[0].mxu0
      %v1015 = vadd.f32 %v879, %v1014
      %v1016 = vpop.f32.mrb[0].mxu0
      %1017 = vmatprep.mubr.bf16.mxu0 0
      %1018 = vmatmul.mubr.bf16.gmra.mrb[0].mxu0 %v958
      %v1019 = vpop.f32.mrb[0].mxu0
      %v1020 = vadd.f32 %v884, %v1019
      %v1021 = vpop.f32.mrb[0].mxu0
      %v1022 = vpop.f32.mrb[0].mxu0
      %v1023 = vadd.f32 %v889, %v1022
      %v1024 = vpop.f32.mrb[0].mxu0
      %1025 = vmatprep.mubr.bf16.mxu0 0
      %1026 = vmatmul.mubr.bf16.gmra.mrb[0].mxu0 %v961
      %v1027 = vpop.f32.mrb[0].mxu0
      %v1028 = vadd.f32 %v894, %v1027
      %v1029 = vpop.f32.mrb[0].mxu0
      %v1030 = vpop.f32.mrb[0].mxu0
      %v1031 = vadd.f32 %v899, %v1030
      %v1032 = vpop.f32.mrb[0].mxu0
      %1033 = vmatprep.mubr.bf16.mxu0 0
      %1034 = vmatmul.mubr.bf16.gmra.mrb[0].mxu0 %v964
      %v1035 = vpop.f32.mrb[0].mxu0
      %v1036 = vadd.f32 %v904, %v1035
      %v1037 = vpop.f32.mrb[0].mxu0
      %v1038 = vpop.f32.mrb[0].mxu0
      %v1039 = vadd.f32 %v909, %v1038
      %v1040 = vpop.f32.mrb[0].mxu0
      %1041 = vmatprep.mubr.bf16.mxu0 0
      %1042 = vmatmul.mubr.bf16.gmra.mrb[0].mxu0 %v967
      %v1043 = vpop.f32.mrb[0].mxu0
      %v1044 = vadd.f32 %v914, %v1043
      %v1045 = vpop.f32.mrb[0].mxu0
      %v1046 = vpop.f32.mrb[0].mxu0
      %v1047 = vadd.f32 %v919, %v1046
      %v1048 = vpop.f32.mrb[0].mxu0
      %1049 = vdwg.mxu0
      %1050 = vxpose.xlu0.b32.start [1/16] %v1004, 128
      %1051 = vxpose.xlu0.b32.cont [2/16] 0.0, 128
      %1052 = vxpose.xlu0.b32.cont [3/16] 0.0, 128
      %1053 = vxpose.xlu0.b32.cont [4/16] 0.0, 128
      %1054 = vxpose.xlu0.b32.cont [5/16] 0.0, 128
      %1055 = vxpose.xlu0.b32.cont [6/16] 0.0, 128
      %1056 = vxpose.xlu0.b32.cont [7/16] 0.0, 128
      %1057 = vxpose.xlu0.b32.cont [8/16] 0.0, 128
      %1058 = vxpose.xlu0.b32.cont [9/16] 0.0, 128
      %1059 = vxpose.xlu0.b32.cont [10/16] 0.0, 128
      %1060 = vxpose.xlu0.b32.cont [11/16] 0.0, 128
      %1061 = vxpose.xlu0.b32.cont [12/16] 0.0, 128
      %1062 = vxpose.xlu0.b32.cont [13/16] 0.0, 128
      %1063 = vxpose.xlu0.b32.cont [14/16] 0.0, 128
      %1064 = vxpose.xlu0.b32.cont [15/16] 0.0, 128
      %1065 = vxpose.xlu0.b32.end [16/16] 0.0, 128
      %v1066 = vpop.trf.xlu0
      %v1067 = vpop.trf.xlu0
      %v1068 = vpop.trf.xlu0
      %v1069 = vpop.trf.xlu0
      %v1070 = vpop.trf.xlu0
      %v1071 = vpop.trf.xlu0
      %v1072 = vpop.trf.xlu0
      %v1073 = vpop.trf.xlu0
      %v1074 = vpop.trf.xlu0
      %v1075 = vpop.trf.xlu0
      %v1076 = vpop.trf.xlu0
      %v1077 = vpop.trf.xlu0
      %v1078 = vpop.trf.xlu0
      %v1079 = vpop.trf.xlu0
      %v1080 = vpop.trf.xlu0
      %v1081 = vpop.trf.xlu0
      %1082 = vxpose.xlu0.b32.start [1/16] %v1007, 128
      %1083 = vxpose.xlu0.b32.cont [2/16] 0.0, 128
      %1084 = vxpose.xlu0.b32.cont [3/16] 0.0, 128
      %1085 = vxpose.xlu0.b32.cont [4/16] 0.0, 128
      %1086 = vxpose.xlu0.b32.cont [5/16] 0.0, 128
      %1087 = vxpose.xlu0.b32.cont [6/16] 0.0, 128
      %1088 = vxpose.xlu0.b32.cont [7/16] 0.0, 128
      %1089 = vxpose.xlu0.b32.cont [8/16] 0.0, 128
      %1090 = vxpose.xlu0.b32.cont [9/16] 0.0, 128
      %1091 = vxpose.xlu0.b32.cont [10/16] 0.0, 128
      %1092 = vxpose.xlu0.b32.cont [11/16] 0.0, 128
      %1093 = vxpose.xlu0.b32.cont [12/16] 0.0, 128
      %1094 = vxpose.xlu0.b32.cont [13/16] 0.0, 128
      %1095 = vxpose.xlu0.b32.cont [14/16] 0.0, 128
      %1096 = vxpose.xlu0.b32.cont [15/16] 0.0, 128
      %1097 = vxpose.xlu0.b32.end [16/16] 0.0, 128
      %v1098 = vpop.trf.xlu0
      %v1099 = vpop.trf.xlu0
      %v1100 = vpop.trf.xlu0
      %v1101 = vpop.trf.xlu0
      %v1102 = vpop.trf.xlu0
      %v1103 = vpop.trf.xlu0
      %v1104 = vpop.trf.xlu0
      %v1105 = vpop.trf.xlu0
      %v1106 = vpop.trf.xlu0
      %v1107 = vpop.trf.xlu0
      %v1108 = vpop.trf.xlu0
      %v1109 = vpop.trf.xlu0
      %v1110 = vpop.trf.xlu0
      %v1111 = vpop.trf.xlu0
      %v1112 = vpop.trf.xlu0
      %v1113 = vpop.trf.xlu0
      %1114 = vxpose.xlu0.b32.start [1/16] %v1012, 128
      %1115 = vxpose.xlu0.b32.cont [2/16] 0.0, 128
      %1116 = vxpose.xlu0.b32.cont [3/16] 0.0, 128
      %1117 = vxpose.xlu0.b32.cont [4/16] 0.0, 128
      %1118 = vxpose.xlu0.b32.cont [5/16] 0.0, 128
      %1119 = vxpose.xlu0.b32.cont [6/16] 0.0, 128
      %1120 = vxpose.xlu0.b32.cont [7/16] 0.0, 128
      %1121 = vxpose.xlu0.b32.cont [8/16] 0.0, 128
      %1122 = vxpose.xlu0.b32.cont [9/16] 0.0, 128
      %1123 = vxpose.xlu0.b32.cont [10/16] 0.0, 128
      %1124 = vxpose.xlu0.b32.cont [11/16] 0.0, 128
      %1125 = vxpose.xlu0.b32.cont [12/16] 0.0, 128
      %1126 = vxpose.xlu0.b32.cont [13/16] 0.0, 128
      %1127 = vxpose.xlu0.b32.cont [14/16] 0.0, 128
      %1128 = vxpose.xlu0.b32.cont [15/16] 0.0, 128
      %1129 = vxpose.xlu0.b32.end [16/16] 0.0, 128
      %v1130 = vpop.trf.xlu0
      %v1131 = vpop.trf.xlu0
      %v1132 = vpop.trf.xlu0
      %v1133 = vpop.trf.xlu0
      %v1134 = vpop.trf.xlu0
      %v1135 = vpop.trf.xlu0
      %v1136 = vpop.trf.xlu0
      %v1137 = vpop.trf.xlu0
      %v1138 = vpop.trf.xlu0
      %v1139 = vpop.trf.xlu0
      %v1140 = vpop.trf.xlu0
      %v1141 = vpop.trf.xlu0
      %v1142 = vpop.trf.xlu0
      %v1143 = vpop.trf.xlu0
      %v1144 = vpop.trf.xlu0
      %v1145 = vpop.trf.xlu0
      %1146 = vxpose.xlu0.b32.start [1/16] %v1015, 128
      %1147 = vxpose.xlu0.b32.cont [2/16] 0.0, 128
      %1148 = vxpose.xlu0.b32.cont [3/16] 0.0, 128
      %1149 = vxpose.xlu0.b32.cont [4/16] 0.0, 128
      %1150 = vxpose.xlu0.b32.cont [5/16] 0.0, 128
      %1151 = vxpose.xlu0.b32.cont [6/16] 0.0, 128
      %1152 = vxpose.xlu0.b32.cont [7/16] 0.0, 128
      %1153 = vxpose.xlu0.b32.cont [8/16] 0.0, 128
      %1154 = vxpose.xlu0.b32.cont [9/16] 0.0, 128
      %1155 = vxpose.xlu0.b32.cont [10/16] 0.0, 128
      %1156 = vxpose.xlu0.b32.cont [11/16] 0.0, 128
      %1157 = vxpose.xlu0.b32.cont [12/16] 0.0, 128
      %1158 = vxpose.xlu0.b32.cont [13/16] 0.0, 128
      %1159 = vxpose.xlu0.b32.cont [14/16] 0.0, 128
      %1160 = vxpose.xlu0.b32.cont [15/16] 0.0, 128
      %1161 = vxpose.xlu0.b32.end [16/16] 0.0, 128
      %v1162 = vpop.trf.xlu0
      %v1163 = vpop.trf.xlu0
      %v1164 = vpop.trf.xlu0
      %v1165 = vpop.trf.xlu0
      %v1166 = vpop.trf.xlu0
      %v1167 = vpop.trf.xlu0
      %v1168 = vpop.trf.xlu0
      %v1169 = vpop.trf.xlu0
      %v1170 = vpop.trf.xlu0
      %v1171 = vpop.trf.xlu0
      %v1172 = vpop.trf.xlu0
      %v1173 = vpop.trf.xlu0
      %v1174 = vpop.trf.xlu0
      %v1175 = vpop.trf.xlu0
      %v1176 = vpop.trf.xlu0
      %v1177 = vpop.trf.xlu0
      %v1178 = vpack.c.bf16 %v1067, %v1066
      %v1179 = vpack.c.bf16 %v1069, %v1068
      %v1180 = vpack.c.bf16 %v1099, %v1098
      %v1181 = vpack.c.bf16 %v1101, %v1100
      %v1182 = vpack.c.bf16 %v1131, %v1130
      %v1183 = vpack.c.bf16 %v1133, %v1132
      %v1184 = vpack.c.bf16 %v1163, %v1162
      %v1185 = vpack.c.bf16 %v1165, %v1164
      %v1186 = vpack.c.bf16 %v1020, %v1020
      %v1187 = vpack.c.bf16 %v1023, %v1023
      %v1188 = vpack.c.bf16 %v1028, %v1028
      %v1189 = vpack.c.bf16 %v1031, %v1031
      %vm1190 = vcmask 64512
      %v1192 = vsel %vm1190, %v1178, 0
      %v1195 = vsel %vm1190, %v1179, 0
      %vm1197 = vcmask 1043456
      %v1199 = vsel %vm1197, %v1186, 0
      %1201 = vmatprep.subr.bf16.mxu0 0
      %1202 = vmatpush1.bf16.msra.mxu0 %v1199
      %1203 = vmatprep.subr.bf16.mxu0 0
      %1204 = vmatpush1.bf16.msra.mxu0 0
      %1205 = vmatprep.subr.bf16.mxu0 0
      %1206 = vmatpush1.bf16.msra.mxu0 0
      %1207 = vmatprep.subr.bf16.mxu0 0
      %1208 = vmatpush1.bf16.msra.mxu0 0
      %1209 = vmatprep.subr.bf16.mxu0 0
      %1210 = vmatpush1.bf16.msra.mxu0 0
      %1211 = vmatprep.subr.bf16.mxu0 0
      %1212 = vmatpush1.bf16.msra.mxu0 0
      %1213 = vmatprep.subr.bf16.mxu0 0
      %1214 = vmatpush1.bf16.msra.mxu0 0
      %1215 = vmatprep.subr.bf16.mxu0 0
      %1216 = vmatpush1.bf16.msra.mxu0 0
      %1217 = vmatprep.subr.bf16.mxu0 0
      %1218 = vmatpush1.bf16.msra.mxu0 0
      %1219 = vmatprep.subr.bf16.mxu0 0
      %1220 = vmatpush1.bf16.msra.mxu0 0
      %1221 = vmatprep.subr.bf16.mxu0 0
      %1222 = vmatpush1.bf16.msra.mxu0 0
      %1223 = vmatprep.subr.bf16.mxu0 0
      %1224 = vmatpush1.bf16.msra.mxu0 0
      %1225 = vmatprep.subr.bf16.mxu0 0
      %1226 = vmatpush1.bf16.msra.mxu0 0
      %1227 = vmatprep.subr.bf16.mxu0 0
      %1228 = vmatpush1.bf16.msra.mxu0 0
      %1229 = vmatprep.subr.bf16.mxu0 0
      %1230 = vmatpush1.bf16.msra.mxu0 0
      %1231 = vmatprep.subr.bf16.mxu0 0
      %1232 = vmatpush1.bf16.msra.mxu0 0
      %1233 = vmatprep.mubr.bf16.mxu0 0
      %1234 = vmatmul.mubr.bf16.gmra.mrb[0].mxu0 %v1192
      %v1235 = vpop.f32.mrb[0].mxu0
      %v1236 = vadd.f32 0.0, %v1235
      %v1237 = vpop.f32.mrb[0].mxu0
      %v1238 = vpop.f32.mrb[0].mxu0
      %v1239 = vadd.f32 0.0, %v1238
      %v1240 = vpop.f32.mrb[0].mxu0
      %1241 = vmatprep.mubr.bf16.mxu0 0
      %1242 = vmatmul.mubr.bf16.gmra.mrb[0].mxu0 %v1195
      %v1243 = vpop.f32.mrb[0].mxu0
      %v1244 = vadd.f32 0.0, %v1243
      %v1245 = vpop.f32.mrb[0].mxu0
      %v1246 = vpop.f32.mrb[0].mxu0
      %v1247 = vadd.f32 0.0, %v1246
      %v1248 = vpop.f32.mrb[0].mxu0
      %1249 = vdwg.mxu0
      %v1251 = vsel %vm1190, %v1180, 0
      %v1254 = vsel %vm1190, %v1181, 0
      %v1257 = vsel %vm1197, %v1187, 0
      %1259 = vmatprep.subr.bf16.mxu0 0
      %1260 = vmatpush1.bf16.msra.mxu0 %v1257
      %1261 = vmatprep.subr.bf16.mxu0 0
      %1262 = vmatpush1.bf16.msra.mxu0 0
      %1263 = vmatprep.subr.bf16.mxu0 0
      %1264 = vmatpush1.bf16.msra.mxu0 0
      %1265 = vmatprep.subr.bf16.mxu0 0
      %1266 = vmatpush1.bf16.msra.mxu0 0
      %1267 = vmatprep.subr.bf16.mxu0 0
      %1268 = vmatpush1.bf16.msra.mxu0 0
      %1269 = vmatprep.subr.bf16.mxu0 0
      %1270 = vmatpush1.bf16.msra.mxu0 0
      %1271 = vmatprep.subr.bf16.mxu0 0
      %1272 = vmatpush1.bf16.msra.mxu0 0
      %1273 = vmatprep.subr.bf16.mxu0 0
      %1274 = vmatpush1.bf16.msra.mxu0 0
      %1275 = vmatprep.subr.bf16.mxu0 0
      %1276 = vmatpush1.bf16.msra.mxu0 0
      %1277 = vmatprep.subr.bf16.mxu0 0
      %1278 = vmatpush1.bf16.msra.mxu0 0
      %1279 = vmatprep.subr.bf16.mxu0 0
      %1280 = vmatpush1.bf16.msra.mxu0 0
      %1281 = vmatprep.subr.bf16.mxu0 0
      %1282 = vmatpush1.bf16.msra.mxu0 0
      %1283 = vmatprep.subr.bf16.mxu0 0
      %1284 = vmatpush1.bf16.msra.mxu0 0
      %1285 = vmatprep.subr.bf16.mxu0 0
      %1286 = vmatpush1.bf16.msra.mxu0 0
      %1287 = vmatprep.subr.bf16.mxu0 0
      %1288 = vmatpush1.bf16.msra.mxu0 0
      %1289 = vmatprep.subr.bf16.mxu0 0
      %1290 = vmatpush1.bf16.msra.mxu0 0
      %1291 = vmatprep.mubr.bf16.mxu0 0
      %1292 = vmatmul.mubr.bf16.gmra.mrb[0].mxu0 %v1251
      %v1293 = vpop.f32.mrb[0].mxu0
      %v1294 = vadd.f32 0.0, %v1293
      %v1295 = vpop.f32.mrb[0].mxu0
      %v1296 = vpop.f32.mrb[0].mxu0
      %v1297 = vadd.f32 0.0, %v1296
      %v1298 = vpop.f32.mrb[0].mxu0
      %1299 = vmatprep.mubr.bf16.mxu0 0
      %1300 = vmatmul.mubr.bf16.gmra.mrb[0].mxu0 %v1254
      %v1301 = vpop.f32.mrb[0].mxu0
      %v1302 = vadd.f32 0.0, %v1301
      %v1303 = vpop.f32.mrb[0].mxu0
      %v1304 = vpop.f32.mrb[0].mxu0
      %v1305 = vadd.f32 0.0, %v1304
      %v1306 = vpop.f32.mrb[0].mxu0
      %1307 = vdwg.mxu0
      %v1309 = vsel %vm1190, %v1182, 0
      %v1312 = vsel %vm1190, %v1183, 0
      %v1315 = vsel %vm1197, %v1188, 0
      %1317 = vmatprep.subr.bf16.mxu0 0
      %1318 = vmatpush1.bf16.msra.mxu0 %v1315
      %1319 = vmatprep.subr.bf16.mxu0 0
      %1320 = vmatpush1.bf16.msra.mxu0 0
      %1321 = vmatprep.subr.bf16.mxu0 0
      %1322 = vmatpush1.bf16.msra.mxu0 0
      %1323 = vmatprep.subr.bf16.mxu0 0
      %1324 = vmatpush1.bf16.msra.mxu0 0
      %1325 = vmatprep.subr.bf16.mxu0 0
      %1326 = vmatpush1.bf16.msra.mxu0 0
      %1327 = vmatprep.subr.bf16.mxu0 0
      %1328 = vmatpush1.bf16.msra.mxu0 0
      %1329 = vmatprep.subr.bf16.mxu0 0
      %1330 = vmatpush1.bf16.msra.mxu0 0
      %1331 = vmatprep.subr.bf16.mxu0 0
      %1332 = vmatpush1.bf16.msra.mxu0 0
      %1333 = vmatprep.subr.bf16.mxu0 0
      %1334 = vmatpush1.bf16.msra.mxu0 0
      %1335 = vmatprep.subr.bf16.mxu0 0
      %1336 = vmatpush1.bf16.msra.mxu0 0
      %1337 = vmatprep.subr.bf16.mxu0 0
      %1338 = vmatpush1.bf16.msra.mxu0 0
      %1339 = vmatprep.subr.bf16.mxu0 0
      %1340 = vmatpush1.bf16.msra.mxu0 0
      %1341 = vmatprep.subr.bf16.mxu0 0
      %1342 = vmatpush1.bf16.msra.mxu0 0
      %1343 = vmatprep.subr.bf16.mxu0 0
      %1344 = vmatpush1.bf16.msra.mxu0 0
      %1345 = vmatprep.subr.bf16.mxu0 0
      %1346 = vmatpush1.bf16.msra.mxu0 0
      %1347 = vmatprep.subr.bf16.mxu0 0
      %1348 = vmatpush1.bf16.msra.mxu0 0
      %1349 = vmatprep.mubr.bf16.mxu0 0
      %1350 = vmatmul.mubr.bf16.gmra.mrb[0].mxu0 %v1309
      %v1351 = vpop.f32.mrb[0].mxu0
      %v1352 = vadd.f32 0.0, %v1351
      %v1353 = vpop.f32.mrb[0].mxu0
      %v1354 = vpop.f32.mrb[0].mxu0
      %v1355 = vadd.f32 0.0, %v1354
      %v1356 = vpop.f32.mrb[0].mxu0
      %1357 = vmatprep.mubr.bf16.mxu0 0
      %1358 = vmatmul.mubr.bf16.gmra.mrb[0].mxu0 %v1312
      %v1359 = vpop.f32.mrb[0].mxu0
      %v1360 = vadd.f32 0.0, %v1359
      %v1361 = vpop.f32.mrb[0].mxu0
      %v1362 = vpop.f32.mrb[0].mxu0
      %v1363 = vadd.f32 0.0, %v1362
      %v1364 = vpop.f32.mrb[0].mxu0
      %1365 = vdwg.mxu0
      %v1367 = vsel %vm1190, %v1184, 0
      %v1370 = vsel %vm1190, %v1185, 0
      %v1373 = vsel %vm1197, %v1189, 0
      %1375 = vmatprep.subr.bf16.mxu0 0
      %1376 = vmatpush1.bf16.msra.mxu0 %v1373
      %1377 = vmatprep.subr.bf16.mxu0 0
      %1378 = vmatpush1.bf16.msra.mxu0 0
      %1379 = vmatprep.subr.bf16.mxu0 0
      %1380 = vmatpush1.bf16.msra.mxu0 0
      %1381 = vmatprep.subr.bf16.mxu0 0
      %1382 = vmatpush1.bf16.msra.mxu0 0
      %1383 = vmatprep.subr.bf16.mxu0 0
      %1384 = vmatpush1.bf16.msra.mxu0 0
      %1385 = vmatprep.subr.bf16.mxu0 0
      %1386 = vmatpush1.bf16.msra.mxu0 0
      %1387 = vmatprep.subr.bf16.mxu0 0
      %1388 = vmatpush1.bf16.msra.mxu0 0
      %1389 = vmatprep.subr.bf16.mxu0 0
      %1390 = vmatpush1.bf16.msra.mxu0 0
      %1391 = vmatprep.subr.bf16.mxu0 0
      %1392 = vmatpush1.bf16.msra.mxu0 0
      %1393 = vmatprep.subr.bf16.mxu0 0
      %1394 = vmatpush1.bf16.msra.mxu0 0
      %1395 = vmatprep.subr.bf16.mxu0 0
      %1396 = vmatpush1.bf16.msra.mxu0 0
      %1397 = vmatprep.subr.bf16.mxu0 0
      %1398 = vmatpush1.bf16.msra.mxu0 0
      %1399 = vmatprep.subr.bf16.mxu0 0
      %1400 = vmatpush1.bf16.msra.mxu0 0
      %1401 = vmatprep.subr.bf16.mxu0 0
      %1402 = vmatpush1.bf16.msra.mxu0 0
      %1403 = vmatprep.subr.bf16.mxu0 0
      %1404 = vmatpush1.bf16.msra.mxu0 0
      %1405 = vmatprep.subr.bf16.mxu0 0
      %1406 = vmatpush1.bf16.msra.mxu0 0
      %1407 = vmatprep.mubr.bf16.mxu0 0
      %1408 = vmatmul.mubr.bf16.gmra.mrb[0].mxu0 %v1367
      %v1409 = vpop.f32.mrb[0].mxu0
      %v1410 = vadd.f32 0.0, %v1409
      %v1411 = vpop.f32.mrb[0].mxu0
      %v1412 = vpop.f32.mrb[0].mxu0
      %v1413 = vadd.f32 0.0, %v1412
      %v1414 = vpop.f32.mrb[0].mxu0
      %1415 = vmatprep.mubr.bf16.mxu0 0
      %1416 = vmatmul.mubr.bf16.gmra.mrb[0].mxu0 %v1370
      %v1417 = vpop.f32.mrb[0].mxu0
      %v1418 = vadd.f32 0.0, %v1417
      %v1419 = vpop.f32.mrb[0].mxu0
      %v1420 = vpop.f32.mrb[0].mxu0
      %v1421 = vadd.f32 0.0, %v1420
      %v1422 = vpop.f32.mrb[0].mxu0
      %1423 = vdwg.mxu0
      %v1424 = vmul.f32 %v1236, 0.35355338
      %v1425 = vmul.f32 %v1239, 0.35355338
      %v1426 = vmul.f32 %v1244, 0.35355338
      %v1427 = vmul.f32 %v1247, 0.35355338
      %v1428 = vmul.f32 %v1294, 0.35355338
      %v1429 = vmul.f32 %v1297, 0.35355338
      %v1430 = vmul.f32 %v1302, 0.35355338
      %v1431 = vmul.f32 %v1305, 0.35355338
      %v1432 = vmul.f32 %v1352, 0.35355338
      %v1433 = vmul.f32 %v1355, 0.35355338
      %v1434 = vmul.f32 %v1360, 0.35355338
      %v1435 = vmul.f32 %v1363, 0.35355338
      %v1436 = vmul.f32 %v1410, 0.35355338
      %v1437 = vmul.f32 %v1413, 0.35355338
      %v1438 = vmul.f32 %v1418, 0.35355338
      %v1439 = vmul.f32 %v1421, 0.35355338
      %v1440 = vsel %vm729, %v1424, -inf
      %1441 = vmax.xlane.f32.xlu0 %v1440
      %v1442 = vpop.xlane.xlu0 %1441
      %v1443 = vsel %vm729, %v1425, -inf
      %1444 = vmax.xlane.f32.xlu0 %v1443
      %v1445 = vpop.xlane.xlu0 %1444
      %v1446 = vsel %vm729, %v1426, -inf
      %1447 = vmax.xlane.f32.xlu0 %v1446
      %v1448 = vpop.xlane.xlu0 %1447
      %v1449 = vsel %vm729, %v1427, -inf
      %1450 = vmax.xlane.f32.xlu0 %v1449
      %v1451 = vpop.xlane.xlu0 %1450
      %v1452 = vsel %vm729, %v1428, -inf
      %1453 = vmax.xlane.f32.xlu0 %v1452
      %v1454 = vpop.xlane.xlu0 %1453
      %v1455 = vsel %vm729, %v1429, -inf
      %1456 = vmax.xlane.f32.xlu0 %v1455
      %v1457 = vpop.xlane.xlu0 %1456
      %v1458 = vsel %vm729, %v1430, -inf
      %1459 = vmax.xlane.f32.xlu0 %v1458
      %v1460 = vpop.xlane.xlu0 %1459
      %v1461 = vsel %vm729, %v1431, -inf
      %1462 = vmax.xlane.f32.xlu0 %v1461
      %v1463 = vpop.xlane.xlu0 %1462
      %v1464 = vsel %vm729, %v1432, -inf
      %1465 = vmax.xlane.f32.xlu0 %v1464
      %v1466 = vpop.xlane.xlu0 %1465
      %v1467 = vsel %vm729, %v1433, -inf
      %1468 = vmax.xlane.f32.xlu0 %v1467
      %v1469 = vpop.xlane.xlu0 %1468
      %v1470 = vsel %vm729, %v1434, -inf
      %1471 = vmax.xlane.f32.xlu0 %v1470
      %v1472 = vpop.xlane.xlu0 %1471
      %v1473 = vsel %vm729, %v1435, -inf
      %1474 = vmax.xlane.f32.xlu0 %v1473
      %v1475 = vpop.xlane.xlu0 %1474
      %v1476 = vsel %vm729, %v1436, -inf
      %1477 = vmax.xlane.f32.xlu0 %v1476
      %v1478 = vpop.xlane.xlu0 %1477
      %v1479 = vsel %vm729, %v1437, -inf
      %1480 = vmax.xlane.f32.xlu0 %v1479
      %v1481 = vpop.xlane.xlu0 %1480
      %v1482 = vsel %vm729, %v1438, -inf
      %1483 = vmax.xlane.f32.xlu0 %v1482
      %v1484 = vpop.xlane.xlu0 %1483
      %v1485 = vsel %vm729, %v1439, -inf
      %1486 = vmax.xlane.f32.xlu0 %v1485
      %v1487 = vpop.xlane.xlu0 %1486
      %v1488 = vsub.f32 %v1424, %v1442
      %v1489 = vsub.f32 %v1425, %v1445
      %v1490 = vsub.f32 %v1426, %v1448
      %v1491 = vsub.f32 %v1427, %v1451
      %v1492 = vsub.f32 %v1428, %v1454
      %v1493 = vsub.f32 %v1429, %v1457
      %v1494 = vsub.f32 %v1430, %v1460
      %v1495 = vsub.f32 %v1431, %v1463
      %v1496 = vsub.f32 %v1432, %v1466
      %v1497 = vsub.f32 %v1433, %v1469
      %v1498 = vsub.f32 %v1434, %v1472
      %v1499 = vsub.f32 %v1435, %v1475
      %v1500 = vsub.f32 %v1436, %v1478
      %v1501 = vsub.f32 %v1437, %v1481
      %v1502 = vsub.f32 %v1438, %v1484
      %v1503 = vsub.f32 %v1439, %v1487
      %v1504 = vmul.f32 %v1488, 1.442695
      %v1505 = vpow.pop %v1504
      %v1506 = vmul.f32 %v1489, 1.442695
      %v1507 = vpow.pop %v1506
      %v1508 = vmul.f32 %v1490, 1.442695
      %v1509 = vpow.pop %v1508
      %v1510 = vmul.f32 %v1491, 1.442695
      %v1511 = vpow.pop %v1510
      %v1512 = vmul.f32 %v1492, 1.442695
      %v1513 = vpow.pop %v1512
      %v1514 = vmul.f32 %v1493, 1.442695
      %v1515 = vpow.pop %v1514
      %v1516 = vmul.f32 %v1494, 1.442695
      %v1517 = vpow.pop %v1516
      %v1518 = vmul.f32 %v1495, 1.442695
      %v1519 = vpow.pop %v1518
      %v1520 = vmul.f32 %v1496, 1.442695
      %v1521 = vpow.pop %v1520
      %v1522 = vmul.f32 %v1497, 1.442695
      %v1523 = vpow.pop %v1522
      %v1524 = vmul.f32 %v1498, 1.442695
      %v1525 = vpow.pop %v1524
      %v1526 = vmul.f32 %v1499, 1.442695
      %v1527 = vpow.pop %v1526
      %v1528 = vmul.f32 %v1500, 1.442695
      %v1529 = vpow.pop %v1528
      %v1530 = vmul.f32 %v1501, 1.442695
      %v1531 = vpow.pop %v1530
      %v1532 = vmul.f32 %v1502, 1.442695
      %v1533 = vpow.pop %v1532
      %v1534 = vmul.f32 %v1503, 1.442695
      %v1535 = vpow.pop %v1534
      %v1536 = vsel %vm729, %v1505, 0.0
      %1537 = vadd.xlane.f32.xlu0 %v1536
      %v1538 = vpop.xlane.xlu0 %1537
      %v1539 = vsel %vm729, %v1507, 0.0
      %1540 = vadd.xlane.f32.xlu0 %v1539
      %v1541 = vpop.xlane.xlu0 %1540
      %v1542 = vsel %vm729, %v1509, 0.0
      %1543 = vadd.xlane.f32.xlu0 %v1542
      %v1544 = vpop.xlane.xlu0 %1543
      %v1545 = vsel %vm729, %v1511, 0.0
      %1546 = vadd.xlane.f32.xlu0 %v1545
      %v1547 = vpop.xlane.xlu0 %1546
      %v1548 = vsel %vm729, %v1513, 0.0
      %1549 = vadd.xlane.f32.xlu0 %v1548
      %v1550 = vpop.xlane.xlu0 %1549
      %v1551 = vsel %vm729, %v1515, 0.0
      %1552 = vadd.xlane.f32.xlu0 %v1551
      %v1553 = vpop.xlane.xlu0 %1552
      %v1554 = vsel %vm729, %v1517, 0.0
      %1555 = vadd.xlane.f32.xlu0 %v1554
      %v1556 = vpop.xlane.xlu0 %1555
      %v1557 = vsel %vm729, %v1519, 0.0
      %1558 = vadd.xlane.f32.xlu0 %v1557
      %v1559 = vpop.xlane.xlu0 %1558
      %v1560 = vsel %vm729, %v1521, 0.0
      %1561 = vadd.xlane.f32.xlu0 %v1560
      %v1562 = vpop.xlane.xlu0 %1561
      %v1563 = vsel %vm729, %v1523, 0.0
      %1564 = vadd.xlane.f32.xlu0 %v1563
      %v1565 = vpop.xlane.xlu0 %1564
      %v1566 = vsel %vm729, %v1525, 0.0
      %1567 = vadd.xlane.f32.xlu0 %v1566
      %v1568 = vpop.xlane.xlu0 %1567
      %v1569 = vsel %vm729, %v1527, 0.0
      %1570 = vadd.xlane.f32.xlu0 %v1569
      %v1571 = vpop.xlane.xlu0 %1570
      %v1572 = vsel %vm729, %v1529, 0.0
      %1573 = vadd.xlane.f32.xlu0 %v1572
      %v1574 = vpop.xlane.xlu0 %1573
      %v1575 = vsel %vm729, %v1531, 0.0
      %1576 = vadd.xlane.f32.xlu0 %v1575
      %v1577 = vpop.xlane.xlu0 %1576
      %v1578 = vsel %vm729, %v1533, 0.0
      %1579 = vadd.xlane.f32.xlu0 %v1578
      %v1580 = vpop.xlane.xlu0 %1579
      %v1581 = vsel %vm729, %v1535, 0.0
      %1582 = vadd.xlane.f32.xlu0 %v1581
      %v1583 = vpop.xlane.xlu0 %1582
      %v1584 = vrcp.pop %v1538
      %v1585 = vrcp.pop %v1541
      %v1586 = vrcp.pop %v1544
      %v1587 = vrcp.pop %v1547
      %v1588 = vrcp.pop %v1550
      %v1589 = vrcp.pop %v1553
      %v1590 = vrcp.pop %v1556
      %v1591 = vrcp.pop %v1559
      %v1592 = vrcp.pop %v1562
      %v1593 = vrcp.pop %v1565
      %v1594 = vrcp.pop %v1568
      %v1595 = vrcp.pop %v1571
      %v1596 = vrcp.pop %v1574
      %v1597 = vrcp.pop %v1577
      %v1598 = vrcp.pop %v1580
      %v1599 = vrcp.pop %v1583
      %v1600 = vmul.f32 %v1505, %v1584
      %v1601 = vmul.f32 %v1507, %v1585
      %v1602 = vmul.f32 %v1509, %v1586
      %v1603 = vmul.f32 %v1511, %v1587
      %v1604 = vmul.f32 %v1513, %v1588
      %v1605 = vmul.f32 %v1515, %v1589
      %v1606 = vmul.f32 %v1517, %v1590
      %v1607 = vmul.f32 %v1519, %v1591
      %v1608 = vmul.f32 %v1521, %v1592
      %v1609 = vmul.f32 %v1523, %v1593
      %v1610 = vmul.f32 %v1525, %v1594
      %v1611 = vmul.f32 %v1527, %v1595
      %v1612 = vmul.f32 %v1529, %v1596
      %v1613 = vmul.f32 %v1531, %v1597
      %v1614 = vmul.f32 %v1533, %v1598
      %v1615 = vmul.f32 %v1535, %v1599
      %v1616 = vpack.c.bf16 %v1036, %v1036
      %v1617 = vpack.c.bf16 %v1039, %v1039
      %v1618 = vpack.c.bf16 %v1044, %v1044
      %v1619 = vpack.c.bf16 %v1047, %v1047
      %v1620 = vpack.c.bf16 %v1601, %v1600
      %v1621 = vpack.c.bf16 %v1603, %v1602
      %v1622 = vpack.c.bf16 %v1605, %v1604
      %v1623 = vpack.c.bf16 %v1607, %v1606
      %v1624 = vpack.c.bf16 %v1609, %v1608
      %v1625 = vpack.c.bf16 %v1611, %v1610
      %v1626 = vpack.c.bf16 %v1613, %v1612
      %v1627 = vpack.c.bf16 %v1615, %v1614
      %v1629 = vsel %vm729, %v1616, 0
      %v1632 = vsel %vm729, %v1620, 0
      %v1635 = vsel %vm729, %v1621, 0
      %1637 = vmatprep.subr.bf16.mxu0 0
      %1638 = vmatpush1.bf16.xpose.msra.mxu0 %v1632
      %1639 = vmatprep.subr.bf16.mxu0 0
      %1640 = vmatpush1.bf16.xpose.msra.mxu0 %v1635
      %1641 = vmatprep.subr.bf16.mxu0 0
      %1642 = vmatpush1.bf16.xpose.msra.mxu0 0
      %1643 = vmatprep.subr.bf16.mxu0 0
      %1644 = vmatpush1.bf16.xpose.msra.mxu0 0
      %1645 = vmatprep.subr.bf16.mxu0 0
      %1646 = vmatpush1.bf16.xpose.msra.mxu0 0
      %1647 = vmatprep.subr.bf16.mxu0 0
      %1648 = vmatpush1.bf16.xpose.msra.mxu0 0
      %1649 = vmatprep.subr.bf16.mxu0 0
      %1650 = vmatpush1.bf16.xpose.msra.mxu0 0
      %1651 = vmatprep.subr.bf16.mxu0 0
      %1652 = vmatpush1.bf16.xpose.msra.mxu0 0
      %1653 = vmatprep.subr.bf16.mxu0 0
      %1654 = vmatpush1.bf16.xpose.msra.mxu0 0
      %1655 = vmatprep.subr.bf16.mxu0 0
      %1656 = vmatpush1.bf16.xpose.msra.mxu0 0
      %1657 = vmatprep.subr.bf16.mxu0 0
      %1658 = vmatpush1.bf16.xpose.msra.mxu0 0
      %1659 = vmatprep.subr.bf16.mxu0 0
      %1660 = vmatpush1.bf16.xpose.msra.mxu0 0
      %1661 = vmatprep.subr.bf16.mxu0 0
      %1662 = vmatpush1.bf16.xpose.msra.mxu0 0
      %1663 = vmatprep.subr.bf16.mxu0 0
      %1664 = vmatpush1.bf16.xpose.msra.mxu0 0
      %1665 = vmatprep.subr.bf16.mxu0 0
      %1666 = vmatpush1.bf16.xpose.msra.mxu0 0
      %1667 = vmatprep.subr.bf16.mxu0 0
      %1668 = vmatpush1.bf16.xpose.msra.mxu0 0
      %1669 = vmatprep.mubr.bf16.mxu0 0
      %1670 = vmatmul.mubr.bf16.gmra.mrb[0].mxu0 %v1629
      %v1671 = vpop.f32.mrb[0].mxu0
      %v1672 = vadd.f32 0.0, %v1671
      %v1673 = vpop.f32.mrb[0].mxu0
      %v1674 = vpop.f32.mrb[0].mxu0
      %v1675 = vpop.f32.mrb[0].mxu0
      %1676 = vdwg.mxu0
      %v1678 = vsel %vm729, %v1617, 0
      %v1681 = vsel %vm729, %v1622, 0
      %v1684 = vsel %vm729, %v1623, 0
      %1686 = vmatprep.subr.bf16.mxu0 0
      %1687 = vmatpush1.bf16.xpose.msra.mxu0 %v1681
      %1688 = vmatprep.subr.bf16.mxu0 0
      %1689 = vmatpush1.bf16.xpose.msra.mxu0 %v1684
      %1690 = vmatprep.subr.bf16.mxu0 0
      %1691 = vmatpush1.bf16.xpose.msra.mxu0 0
      %1692 = vmatprep.subr.bf16.mxu0 0
      %1693 = vmatpush1.bf16.xpose.msra.mxu0 0
      %1694 = vmatprep.subr.bf16.mxu0 0
      %1695 = vmatpush1.bf16.xpose.msra.mxu0 0
      %1696 = vmatprep.subr.bf16.mxu0 0
      %1697 = vmatpush1.bf16.xpose.msra.mxu0 0
      %1698 = vmatprep.subr.bf16.mxu0 0
      %1699 = vmatpush1.bf16.xpose.msra.mxu0 0
      %1700 = vmatprep.subr.bf16.mxu0 0
      %1701 = vmatpush1.bf16.xpose.msra.mxu0 0
      %1702 = vmatprep.subr.bf16.mxu0 0
      %1703 = vmatpush1.bf16.xpose.msra.mxu0 0
      %1704 = vmatprep.subr.bf16.mxu0 0
      %1705 = vmatpush1.bf16.xpose.msra.mxu0 0
      %1706 = vmatprep.subr.bf16.mxu0 0
      %1707 = vmatpush1.bf16.xpose.msra.mxu0 0
      %1708 = vmatprep.subr.bf16.mxu0 0
      %1709 = vmatpush1.bf16.xpose.msra.mxu0 0
      %1710 = vmatprep.subr.bf16.mxu0 0
      %1711 = vmatpush1.bf16.xpose.msra.mxu0 0
      %1712 = vmatprep.subr.bf16.mxu0 0
      %1713 = vmatpush1.bf16.xpose.msra.mxu0 0
      %1714 = vmatprep.subr.bf16.mxu0 0
      %1715 = vmatpush1.bf16.xpose.msra.mxu0 0
      %1716 = vmatprep.subr.bf16.mxu0 0
      %1717 = vmatpush1.bf16.xpose.msra.mxu0 0
      %1718 = vmatprep.mubr.bf16.mxu0 0
      %1719 = vmatmul.mubr.bf16.gmra.mrb[0].mxu0 %v1678
      %v1720 = vpop.f32.mrb[0].mxu0
      %v1721 = vadd.f32 0.0, %v1720
      %v1722 = vpop.f32.mrb[0].mxu0
      %v1723 = vpop.f32.mrb[0].mxu0
      %v1724 = vpop.f32.mrb[0].mxu0
      %1725 = vdwg.mxu0
      %v1727 = vsel %vm729, %v1618, 0
      %v1730 = vsel %vm729, %v1624, 0
      %v1733 = vsel %vm729, %v1625, 0
      %1735 = vmatprep.subr.bf16.mxu0 0
      %1736 = vmatpush1.bf16.xpose.msra.mxu0 %v1730
      %1737 = vmatprep.subr.bf16.mxu0 0
      %1738 = vmatpush1.bf16.xpose.msra.mxu0 %v1733
      %1739 = vmatprep.subr.bf16.mxu0 0
      %1740 = vmatpush1.bf16.xpose.msra.mxu0 0
      %1741 = vmatprep.subr.bf16.mxu0 0
      %1742 = vmatpush1.bf16.xpose.msra.mxu0 0
      %1743 = vmatprep.subr.bf16.mxu0 0
      %1744 = vmatpush1.bf16.xpose.msra.mxu0 0
      %1745 = vmatprep.subr.bf16.mxu0 0
      %1746 = vmatpush1.bf16.xpose.msra.mxu0 0
      %1747 = vmatprep.subr.bf16.mxu0 0
      %1748 = vmatpush1.bf16.xpose.msra.mxu0 0
      %1749 = vmatprep.subr.bf16.mxu0 0
      %1750 = vmatpush1.bf16.xpose.msra.mxu0 0
      %1751 = vmatprep.subr.bf16.mxu0 0
      %1752 = vmatpush1.bf16.xpose.msra.mxu0 0
      %1753 = vmatprep.subr.bf16.mxu0 0
      %1754 = vmatpush1.bf16.xpose.msra.mxu0 0
      %1755 = vmatprep.subr.bf16.mxu0 0
      %1756 = vmatpush1.bf16.xpose.msra.mxu0 0
      %1757 = vmatprep.subr.bf16.mxu0 0
      %1758 = vmatpush1.bf16.xpose.msra.mxu0 0
      %1759 = vmatprep.subr.bf16.mxu0 0
      %1760 = vmatpush1.bf16.xpose.msra.mxu0 0
      %1761 = vmatprep.subr.bf16.mxu0 0
      %1762 = vmatpush1.bf16.xpose.msra.mxu0 0
      %1763 = vmatprep.subr.bf16.mxu0 0
      %1764 = vmatpush1.bf16.xpose.msra.mxu0 0
      %1765 = vmatprep.subr.bf16.mxu0 0
      %1766 = vmatpush1.bf16.xpose.msra.mxu0 0
      %1767 = vmatprep.mubr.bf16.mxu0 0
      %1768 = vmatmul.mubr.bf16.gmra.mrb[0].mxu0 %v1727
      %v1769 = vpop.f32.mrb[0].mxu0
      %v1770 = vadd.f32 0.0, %v1769
      %v1771 = vpop.f32.mrb[0].mxu0
      %v1772 = vpop.f32.mrb[0].mxu0
      %v1773 = vpop.f32.mrb[0].mxu0
      %1774 = vdwg.mxu0
      %v1776 = vsel %vm729, %v1619, 0
      %v1779 = vsel %vm729, %v1626, 0
      %v1782 = vsel %vm729, %v1627, 0
      %1784 = vmatprep.subr.bf16.mxu0 0
      %1785 = vmatpush1.bf16.xpose.msra.mxu0 %v1779
      %1786 = vmatprep.subr.bf16.mxu0 0
      %1787 = vmatpush1.bf16.xpose.msra.mxu0 %v1782
      %1788 = vmatprep.subr.bf16.mxu0 0
      %1789 = vmatpush1.bf16.xpose.msra.mxu0 0
      %1790 = vmatprep.subr.bf16.mxu0 0
      %1791 = vmatpush1.bf16.xpose.msra.mxu0 0
      %1792 = vmatprep.subr.bf16.mxu0 0
      %1793 = vmatpush1.bf16.xpose.msra.mxu0 0
      %1794 = vmatprep.subr.bf16.mxu0 0
      %1795 = vmatpush1.bf16.xpose.msra.mxu0 0
      %1796 = vmatprep.subr.bf16.mxu0 0
      %1797 = vmatpush1.bf16.xpose.msra.mxu0 0
      %1798 = vmatprep.subr.bf16.mxu0 0
      %1799 = vmatpush1.bf16.xpose.msra.mxu0 0
      %1800 = vmatprep.subr.bf16.mxu0 0
      %1801 = vmatpush1.bf16.xpose.msra.mxu0 0
      %1802 = vmatprep.subr.bf16.mxu0 0
      %1803 = vmatpush1.bf16.xpose.msra.mxu0 0
      %1804 = vmatprep.subr.bf16.mxu0 0
      %1805 = vmatpush1.bf16.xpose.msra.mxu0 0
      %1806 = vmatprep.subr.bf16.mxu0 0
      %1807 = vmatpush1.bf16.xpose.msra.mxu0 0
      %1808 = vmatprep.subr.bf16.mxu0 0
      %1809 = vmatpush1.bf16.xpose.msra.mxu0 0
      %1810 = vmatprep.subr.bf16.mxu0 0
      %1811 = vmatpush1.bf16.xpose.msra.mxu0 0
      %1812 = vmatprep.subr.bf16.mxu0 0
      %1813 = vmatpush1.bf16.xpose.msra.mxu0 0
      %1814 = vmatprep.subr.bf16.mxu0 0
      %1815 = vmatpush1.bf16.xpose.msra.mxu0 0
      %1816 = vmatprep.mubr.bf16.mxu0 0
      %1817 = vmatmul.mubr.bf16.gmra.mrb[0].mxu0 %v1776
      %v1818 = vpop.f32.mrb[0].mxu0
      %v1819 = vadd.f32 0.0, %v1818
      %v1820 = vpop.f32.mrb[0].mxu0
      %v1821 = vpop.f32.mrb[0].mxu0
      %v1822 = vpop.f32.mrb[0].mxu0
      %1823 = vdwg.mxu0
      %1824 = vxpose.xlu0.b32.start [1/16] %v1672, 128
      %1825 = vxpose.xlu0.b32.cont [2/16] %v1721, 128
      %1826 = vxpose.xlu0.b32.cont [3/16] %v1770, 128
      %1827 = vxpose.xlu0.b32.cont [4/16] %v1819, 128
      %1828 = vxpose.xlu0.b32.cont [5/16] 0.0, 128
      %1829 = vxpose.xlu0.b32.cont [6/16] 0.0, 128
      %1830 = vxpose.xlu0.b32.cont [7/16] 0.0, 128
      %1831 = vxpose.xlu0.b32.cont [8/16] 0.0, 128
      %1832 = vxpose.xlu0.b32.cont [9/16] 0.0, 128
      %1833 = vxpose.xlu0.b32.cont [10/16] 0.0, 128
      %1834 = vxpose.xlu0.b32.cont [11/16] 0.0, 128
      %1835 = vxpose.xlu0.b32.cont [12/16] 0.0, 128
      %1836 = vxpose.xlu0.b32.cont [13/16] 0.0, 128
      %1837 = vxpose.xlu0.b32.cont [14/16] 0.0, 128
      %1838 = vxpose.xlu0.b32.cont [15/16] 0.0, 128
      %1839 = vxpose.xlu0.b32.end [16/16] 0.0, 128
      %v1840 = vpop.trf.xlu0
      %v1841 = vpop.trf.xlu0
      %v1842 = vpop.trf.xlu0
      %v1843 = vpop.trf.xlu0
      %v1844 = vpop.trf.xlu0
      %v1845 = vpop.trf.xlu0
      %v1846 = vpop.trf.xlu0
      %v1847 = vpop.trf.xlu0
      %v1848 = vpop.trf.xlu0
      %v1849 = vpop.trf.xlu0
      %v1850 = vpop.trf.xlu0
      %v1851 = vpop.trf.xlu0
      %v1852 = vpop.trf.xlu0
      %v1853 = vpop.trf.xlu0
      %v1854 = vpop.trf.xlu0
      %v1855 = vpop.trf.xlu0
      %v1856 = vpack.c.bf16 %v1841, %v1840
      %v1857 = vpack.c.bf16 %v1843, %v1842
      %v1858 = vld [vmem:[%s674] sm:$0xf]
      %v1859 = vld [vmem:[%s674 + $0x4] sm:$0xf]
      %v1860 = vld [vmem:[%s674 + $0x8] sm:$0xf]
      %v1861 = vld [vmem:[%s674 + $0xc] sm:$0xf]
      %v1862 = vld [vmem:[%s677] sm:$0x1]
      %v1864 = vlaneseq
      %v1865 = vshrl.u32 %v1864, 7
      %v1866 = vsub.s32 0, %v1865
      %v1867 = vrot.slane %v1862, %v1866
      %v1873 = vunpack.c.l.b16 %v1858
      %v1874 = vunpack.c.l.b16 %v1859
      %v1875 = vunpack.c.l.b16 %v1860
      %v1876 = vunpack.c.l.b16 %v1861
      %v1877 = vpack.c.b16 %v1874, %v1873
      %v1878 = vpack.c.b16 %v1876, %v1875
      %v1882 = vsel %vm729, %v1856, 0
      %v1885 = vsel %vm729, %v1857, 0
      %1887 = vmatprep.subr.bf16.mxu0 0
      %1888 = vmatpush1.bf16.msra.mxu0 %v1877
      %1889 = vmatprep.subr.bf16.mxu0 0
      %1890 = vmatpush1.bf16.msra.mxu0 %v1878
      %1891 = vmatprep.subr.bf16.mxu0 0
      %1892 = vmatpush1.bf16.msra.mxu0 0
      %1893 = vmatprep.subr.bf16.mxu0 0
      %1894 = vmatpush1.bf16.msra.mxu0 0
      %1895 = vmatprep.subr.bf16.mxu0 0
      %1896 = vmatpush1.bf16.msra.mxu0 0
      %1897 = vmatprep.subr.bf16.mxu0 0
      %1898 = vmatpush1.bf16.msra.mxu0 0
      %1899 = vmatprep.subr.bf16.mxu0 0
      %1900 = vmatpush1.bf16.msra.mxu0 0
      %1901 = vmatprep.subr.bf16.mxu0 0
      %1902 = vmatpush1.bf16.msra.mxu0 0
      %1903 = vmatprep.subr.bf16.mxu0 0
      %1904 = vmatpush1.bf16.msra.mxu0 0
      %1905 = vmatprep.subr.bf16.mxu0 0
      %1906 = vmatpush1.bf16.msra.mxu0 0
      %1907 = vmatprep.subr.bf16.mxu0 0
      %1908 = vmatpush1.bf16.msra.mxu0 0
      %1909 = vmatprep.subr.bf16.mxu0 0
      %1910 = vmatpush1.bf16.msra.mxu0 0
      %1911 = vmatprep.subr.bf16.mxu0 0
      %1912 = vmatpush1.bf16.msra.mxu0 0
      %1913 = vmatprep.subr.bf16.mxu0 0
      %1914 = vmatpush1.bf16.msra.mxu0 0
      %1915 = vmatprep.subr.bf16.mxu0 0
      %1916 = vmatpush1.bf16.msra.mxu0 0
      %1917 = vmatprep.subr.bf16.mxu0 0
      %1918 = vmatpush1.bf16.msra.mxu0 0
      %1919 = vmatprep.mubr.bf16.mxu0 0
      %1920 = vmatmul.mubr.bf16.gmra.mrb[0].mxu0 %v1882
      %v1921 = vpop.f32.mrb[0].mxu0
      %v1922 = vadd.f32 %v1867, %v1921
      %v1923 = vpop.f32.mrb[0].mxu0
      %v1924 = vpop.f32.mrb[0].mxu0
      %v1925 = vadd.f32 %v1867, %v1924
      %v1926 = vpop.f32.mrb[0].mxu0
      %1927 = vmatprep.mubr.bf16.mxu0 0
      %1928 = vmatmul.mubr.bf16.gmra.mrb[0].mxu0 %v1885
      %v1929 = vpop.f32.mrb[0].mxu0
      %v1930 = vadd.f32 %v1867, %v1929
      %v1931 = vpop.f32.mrb[0].mxu0
      %v1932 = vpop.f32.mrb[0].mxu0
      %v1933 = vadd.f32 %v1867, %v1932
      %v1934 = vpop.f32.mrb[0].mxu0
      %1935 = vdwg.mxu0
      %v1936 = vadd.f32 %v723, %v1922
      %v1937 = vadd.f32 %v724, %v1925
      %v1938 = vadd.f32 %v725, %v1930
      %v1939 = vadd.f32 %v726, %v1933
      %v1940 = vld [vmem:[%s680] sm:$0x1]
      %v1941 = vld [vmem:[%s683] sm:$0x1]
      %v1942 = vsel %vm729, %v1936, 0.0
      %1943 = vadd.xlane.f32.xlu0 %v1942
      %v1944 = vpop.xlane.xlu0 %1943
      %v1945 = vsel %vm729, %v1937, 0.0
      %1946 = vadd.xlane.f32.xlu0 %v1945
      %v1947 = vpop.xlane.xlu0 %1946
      %v1948 = vsel %vm729, %v1938, 0.0
      %1949 = vadd.xlane.f32.xlu0 %v1948
      %v1950 = vpop.xlane.xlu0 %1949
      %v1951 = vsel %vm729, %v1939, 0.0
      %1952 = vadd.xlane.f32.xlu0 %v1951
      %v1953 = vpop.xlane.xlu0 %1952
      %v1954 = vmul.f32 %v1944, %v742
      %v1955 = vmul.f32 %v1947, %v742
      %v1956 = vmul.f32 %v1950, %v742
      %v1957 = vmul.f32 %v1953, %v742
      %v1958 = vsub.f32 %v1936, %v1954
      %v1959 = vsub.f32 %v1937, %v1955
      %v1960 = vsub.f32 %v1938, %v1956
      %v1961 = vsub.f32 %v1939, %v1957
      %v1962 = vmul.f32 %v1958, %v1958
      %v1963 = vmul.f32 %v1959, %v1959
      %v1964 = vmul.f32 %v1960, %v1960
      %v1965 = vmul.f32 %v1961, %v1961
      %v1966 = vsel %vm729, %v1962, 0.0
      %1967 = vadd.xlane.f32.xlu0 %v1966
      %v1968 = vpop.xlane.xlu0 %1967
      %v1969 = vsel %vm729, %v1963, 0.0
      %1970 = vadd.xlane.f32.xlu0 %v1969
      %v1971 = vpop.xlane.xlu0 %1970
      %v1972 = vsel %vm729, %v1964, 0.0
      %1973 = vadd.xlane.f32.xlu0 %v1972
      %v1974 = vpop.xlane.xlu0 %1973
      %v1975 = vsel %vm729, %v1965, 0.0
      %1976 = vadd.xlane.f32.xlu0 %v1975
      %v1977 = vpop.xlane.xlu0 %1976
      %v1978 = vmul.f32 %v1968, %v742
      %v1979 = vmul.f32 %v1971, %v742
      %v1980 = vmul.f32 %v1974, %v742
      %v1981 = vmul.f32 %v1977, %v742
      %v1982 = vadd.f32 %v1978, 1e-06
      %v1983 = vadd.f32 %v1979, 1e-06
      %v1984 = vadd.f32 %v1980, 1e-06
      %v1985 = vadd.f32 %v1981, 1e-06
      %v1986 = vrsqrt.pop %v1982
      %v1987 = vrsqrt.pop %v1983
      %v1988 = vrsqrt.pop %v1984
      %v1989 = vrsqrt.pop %v1985
      %v1990 = vmul.f32 %v1958, %v1986
      %v1991 = vmul.f32 %v1959, %v1987
      %v1992 = vmul.f32 %v1960, %v1988
      %v1993 = vmul.f32 %v1961, %v1989
      %v1995 = vlaneseq
      %v1996 = vshrl.u32 %v1995, 7
      %v1997 = vsub.s32 0, %v1996
      %v1998 = vrot.slane %v1940, %v1997
      %v2000 = vmul.f32 %v1990, %v1998
      %v2001 = vmul.f32 %v1991, %v1998
      %v2002 = vmul.f32 %v1992, %v1998
      %v2003 = vmul.f32 %v1993, %v1998
      %v2005 = vlaneseq
      %v2006 = vshrl.u32 %v2005, 7
      %v2007 = vsub.s32 0, %v2006
      %v2008 = vrot.slane %v1941, %v2007
      %v2010 = vadd.f32 %v2000, %v2008
      %v2011 = vadd.f32 %v2001, %v2008
      %v2012 = vadd.f32 %v2002, %v2008
      %v2013 = vadd.f32 %v2003, %v2008
      %v2014 = vpack.c.bf16 %v2011, %v2010
      %v2015 = vpack.c.bf16 %v2013, %v2012
      %v2016 = vld [vmem:[%s688] sm:$0xf]
      %v2017 = vld [vmem:[%s688 + $0x4] sm:$0xf]
      %v2018 = vld [vmem:[%s688 + $0x8] sm:$0xf]
      %v2019 = vld [vmem:[%s688 + $0xc] sm:$0xf]
      %v2020 = vld [vmem:[%s691] sm:$0x1]
      %v2022 = vlaneseq
      %v2023 = vshrl.u32 %v2022, 7
      %v2024 = vsub.s32 0, %v2023
      %v2025 = vrot.slane %v2020, %v2024
      %v2031 = vunpack.c.l.b16 %v2016
      %v2032 = vunpack.c.l.b16 %v2017
      %v2033 = vunpack.c.l.b16 %v2018
      %v2034 = vunpack.c.l.b16 %v2019
      %v2035 = vpack.c.b16 %v2032, %v2031
      %v2036 = vpack.c.b16 %v2034, %v2033
      %v2040 = vsel %vm729, %v2014, 0
      %v2043 = vsel %vm729, %v2015, 0
      %2045 = vmatprep.subr.bf16.mxu0 0
      %2046 = vmatpush1.bf16.msra.mxu0 %v2035
      %2047 = vmatprep.subr.bf16.mxu0 0
      %2048 = vmatpush1.bf16.msra.mxu0 %v2036
      %2049 = vmatprep.subr.bf16.mxu0 0
      %2050 = vmatpush1.bf16.msra.mxu0 0
      %2051 = vmatprep.subr.bf16.mxu0 0
      %2052 = vmatpush1.bf16.msra.mxu0 0
      %2053 = vmatprep.subr.bf16.mxu0 0
      %2054 = vmatpush1.bf16.msra.mxu0 0
      %2055 = vmatprep.subr.bf16.mxu0 0
      %2056 = vmatpush1.bf16.msra.mxu0 0
      %2057 = vmatprep.subr.bf16.mxu0 0
      %2058 = vmatpush1.bf16.msra.mxu0 0
      %2059 = vmatprep.subr.bf16.mxu0 0
      %2060 = vmatpush1.bf16.msra.mxu0 0
      %2061 = vmatprep.subr.bf16.mxu0 0
      %2062 = vmatpush1.bf16.msra.mxu0 0
      %2063 = vmatprep.subr.bf16.mxu0 0
      %2064 = vmatpush1.bf16.msra.mxu0 0
      %2065 = vmatprep.subr.bf16.mxu0 0
      %2066 = vmatpush1.bf16.msra.mxu0 0
      %2067 = vmatprep.subr.bf16.mxu0 0
      %2068 = vmatpush1.bf16.msra.mxu0 0
      %2069 = vmatprep.subr.bf16.mxu0 0
      %2070 = vmatpush1.bf16.msra.mxu0 0
      %2071 = vmatprep.subr.bf16.mxu0 0
      %2072 = vmatpush1.bf16.msra.mxu0 0
      %2073 = vmatprep.subr.bf16.mxu0 0
      %2074 = vmatpush1.bf16.msra.mxu0 0
      %2075 = vmatprep.subr.bf16.mxu0 0
      %2076 = vmatpush1.bf16.msra.mxu0 0
      %2077 = vmatprep.mubr.bf16.mxu0 0
      %2078 = vmatmul.mubr.bf16.gmra.mrb[0].mxu0 %v2040
      %v2079 = vpop.f32.mrb[0].mxu0
      %v2080 = vadd.f32 %v2025, %v2079
      %v2081 = vpop.f32.mrb[0].mxu0
      %v2082 = vpop.f32.mrb[0].mxu0
      %v2083 = vadd.f32 %v2025, %v2082
      %v2084 = vpop.f32.mrb[0].mxu0
      %2085 = vmatprep.mubr.bf16.mxu0 0
      %2086 = vmatmul.mubr.bf16.gmra.mrb[0].mxu0 %v2043
      %v2087 = vpop.f32.mrb[0].mxu0
      %v2088 = vadd.f32 %v2025, %v2087
      %v2089 = vpop.f32.mrb[0].mxu0
      %v2090 = vpop.f32.mrb[0].mxu0
      %v2091 = vadd.f32 %v2025, %v2090
      %v2092 = vpop.f32.mrb[0].mxu0
      %2093 = vdwg.mxu0
      %v2094 = vmul.f32 %v2080, %v2080
      %v2095 = vmul.f32 %v2083, %v2083
      %v2096 = vmul.f32 %v2088, %v2088
      %v2097 = vmul.f32 %v2091, %v2091
      %v2098 = vmul.f32 %v2080, %v2094
      %v2099 = vmul.f32 %v2083, %v2095
      %v2100 = vmul.f32 %v2088, %v2096
      %v2101 = vmul.f32 %v2091, %v2097
      %v2102 = vmul.f32 %v2098, 0.044715
      %v2103 = vmul.f32 %v2099, 0.044715
      %v2104 = vmul.f32 %v2100, 0.044715
      %v2105 = vmul.f32 %v2101, 0.044715
      %v2106 = vadd.f32 %v2080, %v2102
      %v2107 = vadd.f32 %v2083, %v2103
      %v2108 = vadd.f32 %v2088, %v2104
      %v2109 = vadd.f32 %v2091, %v2105
      %v2110 = vmul.f32 %v2106, 0.7978846
      %v2111 = vmul.f32 %v2107, 0.7978846
      %v2112 = vmul.f32 %v2108, 0.7978846
      %v2113 = vmul.f32 %v2109, 0.7978846
      %v2114 = vtanh.pop %v2110
      %v2115 = vtanh.pop %v2111
      %v2116 = vtanh.pop %v2112
      %v2117 = vtanh.pop %v2113
      %v2118 = vadd.f32 %v2114, 1.0
      %v2119 = vadd.f32 %v2115, 1.0
      %v2120 = vadd.f32 %v2116, 1.0
      %v2121 = vadd.f32 %v2117, 1.0
      %v2122 = vmul.f32 %v2118, 0.5
      %v2123 = vmul.f32 %v2119, 0.5
      %v2124 = vmul.f32 %v2120, 0.5
      %v2125 = vmul.f32 %v2121, 0.5
      %v2126 = vmul.f32 %v2080, %v2122
      %v2127 = vmul.f32 %v2083, %v2123
      %v2128 = vmul.f32 %v2088, %v2124
      %v2129 = vmul.f32 %v2091, %v2125
      %v2130 = vpack.c.bf16 %v2127, %v2126
      %v2131 = vpack.c.bf16 %v2129, %v2128
      %v2132 = vld [vmem:[%s696] sm:$0xf]
      %v2133 = vld [vmem:[%s696 + $0x4] sm:$0xf]
      %v2134 = vld [vmem:[%s696 + $0x8] sm:$0xf]
      %v2135 = vld [vmem:[%s696 + $0xc] sm:$0xf]
      %v2136 = vld [vmem:[%s696 + $0x10] sm:$0xf]
      %v2137 = vld [vmem:[%s696 + $0x14] sm:$0xf]
      %v2138 = vld [vmem:[%s696 + $0x18] sm:$0xf]
      %v2139 = vld [vmem:[%s696 + $0x1c] sm:$0xf]
      %v2140 = vld [vmem:[%s699] sm:$0x1]
      %v2142 = vlaneseq
      %v2143 = vshrl.u32 %v2142, 7
      %v2144 = vsub.s32 0, %v2143
      %v2145 = vrot.slane %v2140, %v2144
      %v2155 = vunpack.c.l.b16 %v2132
      %v2156 = vunpack.c.l.b16 %v2133
      %v2157 = vunpack.c.l.b16 %v2134
      %v2158 = vunpack.c.l.b16 %v2135
      %v2159 = vunpack.c.l.b16 %v2136
      %v2160 = vunpack.c.l.b16 %v2137
      %v2161 = vunpack.c.l.b16 %v2138
      %v2162 = vunpack.c.l.b16 %v2139
      %v2163 = vpack.c.b16 %v2156, %v2155
      %v2164 = vpack.c.b16 %v2158, %v2157
      %v2165 = vpack.c.b16 %v2160, %v2159
      %v2166 = vpack.c.b16 %v2162, %v2161
      %vm2171 = vcmask 523264
      %v2173 = vsel %vm2171, %v2130, 0
      %v2176 = vsel %vm2171, %v2131, 0
      %2178 = vmatprep.subr.bf16.mxu0 0
      %2179 = vmatpush1.bf16.msra.mxu0 %v2163
      %2180 = vmatprep.subr.bf16.mxu0 0
      %2181 = vmatpush1.bf16.msra.mxu0 %v2164
      %2182 = vmatprep.subr.bf16.mxu0 0
      %2183 = vmatpush1.bf16.msra.mxu0 %v2165
      %2184 = vmatprep.subr.bf16.mxu0 0
      %2185 = vmatpush1.bf16.msra.mxu0 %v2166
      %2186 = vmatprep.subr.bf16.mxu0 0
      %2187 = vmatpush1.bf16.msra.mxu0 0
      %2188 = vmatprep.subr.bf16.mxu0 0
      %2189 = vmatpush1.bf16.msra.mxu0 0
      %2190 = vmatprep.subr.bf16.mxu0 0
      %2191 = vmatpush1.bf16.msra.mxu0 0
      %2192 = vmatprep.subr.bf16.mxu0 0
      %2193 = vmatpush1.bf16.msra.mxu0 0
      %2194 = vmatprep.subr.bf16.mxu0 0
      %2195 = vmatpush1.bf16.msra.mxu0 0
      %2196 = vmatprep.subr.bf16.mxu0 0
      %2197 = vmatpush1.bf16.msra.mxu0 0
      %2198 = vmatprep.subr.bf16.mxu0 0
      %2199 = vmatpush1.bf16.msra.mxu0 0
      %2200 = vmatprep.subr.bf16.mxu0 0
      %2201 = vmatpush1.bf16.msra.mxu0 0
      %2202 = vmatprep.subr.bf16.mxu0 0
      %2203 = vmatpush1.bf16.msra.mxu0 0
      %2204 = vmatprep.subr.bf16.mxu0 0
      %2205 = vmatpush1.bf16.msra.mxu0 0
      %2206 = vmatprep.subr.bf16.mxu0 0
      %2207 = vmatpush1.bf16.msra.mxu0 0
      %2208 = vmatprep.subr.bf16.mxu0 0
      %2209 = vmatpush1.bf16.msra.mxu0 0
      %2210 = vmatprep.mubr.bf16.mxu0 0
      %2211 = vmatmul.mubr.bf16.gmra.mrb[0].mxu0 %v2173
      %v2212 = vpop.f32.mrb[0].mxu0
      %v2213 = vadd.f32 %v2145, %v2212
      %v2214 = vpop.f32.mrb[0].mxu0
      %v2215 = vpop.f32.mrb[0].mxu0
      %v2216 = vadd.f32 %v2145, %v2215
      %v2217 = vpop.f32.mrb[0].mxu0
      %2218 = vmatprep.mubr.bf16.mxu0 0
      %2219 = vmatmul.mubr.bf16.gmra.mrb[0].mxu0 %v2176
      %v2220 = vpop.f32.mrb[0].mxu0
      %v2221 = vadd.f32 %v2145, %v2220
      %v2222 = vpop.f32.mrb[0].mxu0
      %v2223 = vpop.f32.mrb[0].mxu0
      %v2224 = vadd.f32 %v2145, %v2223
      %v2225 = vpop.f32.mrb[0].mxu0
      %2226 = vdwg.mxu0
      %v2227 = vadd.f32 %v1936, %v2213
      %v2228 = vadd.f32 %v1937, %v2216
      %v2229 = vadd.f32 %v1938, %v2221
      %v2230 = vadd.f32 %v1939, %v2224
      %2231 = vst.msk [vmem:[#allocation2] sm:$0xff] %vm729, %v2227
      %2232 = vst.msk [vmem:[#allocation2 + $0x8] sm:$0xff] %vm729, %v2228
      %2233 = vst.msk [vmem:[#allocation2 + $0x10] sm:$0xff] %vm729, %v2229
      %2234 = vst.msk [vmem:[#allocation2 + $0x18] sm:$0xff] %vm729, %v2230
      %p2235 = scmp.eq.s32.totalorder %s31, 1
      // Predicated region
      $region85: #{forward.4} parent=79 // pred_check
        %p2236 = pneg %p2235
      $region86: #{forward.4} parent=79 // pred_check_branch
        %2238 = sbr.rel (%p2236) target = $region88
      $region87: #{forward.4} parent=79 // pred_region
        %v2239 = vld [vmem:[%s13] sm:$0x1]
        %v2240 = vld [vmem:[%s14] sm:$0x1]
        %v2241 = vsel %vm729, %v2227, 0.0
        %2242 = vadd.xlane.f32.xlu0 %v2241
        %v2243 = vpop.xlane.xlu0 %2242
        %v2244 = vsel %vm729, %v2228, 0.0
        %2245 = vadd.xlane.f32.xlu0 %v2244
        %v2246 = vpop.xlane.xlu0 %2245
        %v2247 = vsel %vm729, %v2229, 0.0
        %2248 = vadd.xlane.f32.xlu0 %v2247
        %v2249 = vpop.xlane.xlu0 %2248
        %v2250 = vsel %vm729, %v2230, 0.0
        %2251 = vadd.xlane.f32.xlu0 %v2250
        %v2252 = vpop.xlane.xlu0 %2251
        %v2253 = vmul.f32 %v2243, %v742
        %v2254 = vmul.f32 %v2246, %v742
        %v2255 = vmul.f32 %v2249, %v742
        %v2256 = vmul.f32 %v2252, %v742
        %v2257 = vsub.f32 %v2227, %v2253
        %v2258 = vsub.f32 %v2228, %v2254
        %v2259 = vsub.f32 %v2229, %v2255
        %v2260 = vsub.f32 %v2230, %v2256
        %v2261 = vmul.f32 %v2257, %v2257
        %v2262 = vmul.f32 %v2258, %v2258
        %v2263 = vmul.f32 %v2259, %v2259
        %v2264 = vmul.f32 %v2260, %v2260
        %v2265 = vsel %vm729, %v2261, 0.0
        %2266 = vadd.xlane.f32.xlu0 %v2265
        %v2267 = vpop.xlane.xlu0 %2266
        %v2268 = vsel %vm729, %v2262, 0.0
        %2269 = vadd.xlane.f32.xlu0 %v2268
        %v2270 = vpop.xlane.xlu0 %2269
        %v2271 = vsel %vm729, %v2263, 0.0
        %2272 = vadd.xlane.f32.xlu0 %v2271
        %v2273 = vpop.xlane.xlu0 %2272
        %v2274 = vsel %vm729, %v2264, 0.0
        %2275 = vadd.xlane.f32.xlu0 %v2274
        %v2276 = vpop.xlane.xlu0 %2275
        %v2277 = vmul.f32 %v2267, %v742
        %v2278 = vmul.f32 %v2270, %v742
        %v2279 = vmul.f32 %v2273, %v742
        %v2280 = vmul.f32 %v2276, %v742
        %v2281 = vadd.f32 %v2277, 1e-06
        %v2282 = vadd.f32 %v2278, 1e-06
        %v2283 = vadd.f32 %v2279, 1e-06
        %v2284 = vadd.f32 %v2280, 1e-06
        %v2285 = vrsqrt.pop %v2281
        %v2286 = vrsqrt.pop %v2282
        %v2287 = vrsqrt.pop %v2283
        %v2288 = vrsqrt.pop %v2284
        %v2289 = vmul.f32 %v2257, %v2285
        %v2290 = vmul.f32 %v2258, %v2286
        %v2291 = vmul.f32 %v2259, %v2287
        %v2292 = vmul.f32 %v2260, %v2288
        %v2294 = vlaneseq
        %v2295 = vshrl.u32 %v2294, 7
        %v2296 = vsub.s32 0, %v2295
        %v2297 = vrot.slane %v2239, %v2296
        %v2299 = vmul.f32 %v2289, %v2297
        %v2300 = vmul.f32 %v2290, %v2297
        %v2301 = vmul.f32 %v2291, %v2297
        %v2302 = vmul.f32 %v2292, %v2297
        %v2304 = vlaneseq
        %v2305 = vshrl.u32 %v2304, 7
        %v2306 = vsub.s32 0, %v2305
        %v2307 = vrot.slane %v2240, %v2306
        %v2309 = vadd.f32 %v2299, %v2307
        %v2310 = vadd.f32 %v2300, %v2307
        %v2311 = vadd.f32 %v2301, %v2307
        %v2312 = vadd.f32 %v2302, %v2307
        %v2313 = vpack.c.bf16 %v2310, %v2309
        %v2314 = vpack.c.bf16 %v2312, %v2311
        %v2317 = vunpack.c.l.b16 %v2313
        %v2318 = vunpack.c.h.b16 %v2313
        %v2319 = vunpack.c.l.b16 %v2314
        %v2320 = vunpack.c.h.b16 %v2314
        %v2321 = vpack.c.b16 %v2317, %v2317
        %v2322 = vpack.c.b16 %v2318, %v2318
        %v2323 = vpack.c.b16 %v2319, %v2319
        %v2324 = vpack.c.b16 %v2320, %v2320
        %vm2329 = vcmask 257024
        %2330 = vst.msk [vmem:[%s704] sm:$0xf] %vm2329, %v2321
        %2331 = vst.msk [vmem:[%s704 + $0x4] sm:$0xf] %vm2329, %v2322
        %2332 = vst.msk [vmem:[%s704 + $0x8] sm:$0xf] %vm2329, %v2323
        %2333 = vst.msk [vmem:[%s704 + $0xc] sm:$0xf] %vm2329, %v2324
      $region88: #{forward.4} parent=79 // pred_fallthru
        _
      %p2334 = scmp.lt.s32.totalorder %s30, 1
      %s2335 = scalar_select %p2334, %s30, 1
      %s2336 = smul.addr %s2335, 4
      %s2337 = smul.addr %s2336, 4
      %s2338 = scalar_lea.vmem %s15, %s2337
      // Predicated region
      $region89: #{forward.4} parent=79 // pred_check
        %p2339 = pneg %p436
      $region90: #{forward.4} parent=79 // pred_check_branch
        %2341 = sbr.rel (%p2339) target = $region92
      $region91: #{forward.4} parent=79 // pred_region
        _
      $region92: #{forward.4} parent=79 // pred_fallthru
        _
    $region80: #{forward.4} parent=5 // pred_fallthru
      _
    %p2342 = scmp.le.s32.totalorder 2, %s21
    // Predicated region
    $region93: #{forward.4} parent=5 // pred_check
      %p2343 = pneg %p2342
    $region94: #{forward.4} parent=5 // pred_check_branch
      %2345 = sbr.rel (%p2343) target = $region96
    $region95: #{forward.4} parent=5 // pred_region
      %s2346 = ssub.s32 %s21, 2
      // Predicated region
      $region97: #{forward.4} parent=95 // pred_check
        %p2347 = pneg %p442
      $region98: #{forward.4} parent=95 // pred_check_branch
        %2349 = sbr.rel (%p2347) target = $region100
      $region99: #{forward.4} parent=95 // pred_region
        %p2350 = scmp.lt.s32.totalorder %s32, 1
        %s2351 = scalar_select %p2350, %s32, 1
        %s2352 = smul.addr %s2351, 4
        %s2353 = smul.addr %s2352, 4
        %s2354 = scalar_lea.vmem %s15, %s2353
      $region100: #{forward.4} parent=95 // pred_fallthru
        _
    $region96: #{forward.4} parent=5 // pred_fallthru
      _
  $region6: #{forward.4} parent=0 // loop_footer
    %s25 = sadd.s32 1, %s21
  $region7: #{forward.4} parent=0 // loop_footer_branch
    %20 = sbr.rel target = $region3
  $region8: #{forward.4} parent=0 // loop_exit
    _

</llo_original>
